<compile_context>
chip_gen: v5e
topology: v5e:2x2
jax: 0.10.0
libtpu: 0.0.40
codegen_flags: <defaults>
</compile_context>

<pallas_src>
import math

import jax
import jax.numpy as jnp
from jax.experimental import pallas as pl
from jax.experimental.pallas import tpu as pltpu

LANES = 128


# ------------------------------------------------------------------ helpers

def _round_up(x, m):
    return ((x + m - 1) // m) * m


def _cdiv(a, b):
    return (a + b - 1) // b


# ------------------------------------------------------------------ kernels

def _conv_pool_kernel(x_ref, w_ref, b_ref, o_ref):
    """Fused conv(+bias)+ReLU+2x2 maxpool, stacked-tap formulation.

    x_ref: (4*TM, 128) bf16 — the 4 pool-tap im2col patch blocks stacked row-wise
           (tap-major, local-row-minor) for this grid step.
    w_ref: (128, 128) bf16 zero-padded conv weight.   b_ref: (1, 128) f32.
    o_ref: (TM, 128) bf16 pooled, ReLU'd conv output (lane-dense).
    maxpool(ReLU(conv+b)) == ReLU(max_t(conv_t) + b): bias is tap-invariant, ReLU monotone.
    """
    tm = o_ref.shape[0]
    s = jnp.dot(x_ref[...], w_ref[...], preferred_element_type=jnp.float32)
    m = jnp.maximum(jnp.maximum(s[0:tm], s[tm:2 * tm]),
                    jnp.maximum(s[2 * tm:3 * tm], s[3 * tm:4 * tm]))
    o_ref[...] = jnp.maximum(m + b_ref[...], 0.0).astype(o_ref.dtype)


def _tail_kernel(x_ref, w3_ref, b3_ref, w5_ref, b5_ref,
                 wh_ref, bh_ref, wo_ref, bo_ref, o_ref):
    """Fused conv3+ReLU+pool -> conv5+ReLU -> [class|domain] fc0+ReLU -> block-diag fc2.

    x_ref : (4*25*Bt, 256) bf16 — stage-2 im2col taps for Bt images, rows ordered
            (tap, pooled-position p, image n); K = 5*5*6 = 150 zero-padded to 256.
    w3_ref: (256, 128) bf16 conv3 weight (150x16 real).  b3_ref: (1, 128) f32.
    w5_ref: (25, 128, 128) bf16 per-position conv5 weights (16x120 real each).
    wh_ref: (128, 256) bf16 [cc_fc0 | dc_fc0] concatenated (120x168 real).
    wo_ref: (256, 128) bf16 block-diagonal fc2 (class -> lanes 0:10, domain -> 10:12).
    o_ref : (Bt, 128) f32; lanes 0:10 class logits, 10:12 domain logits.
    """
    bt = o_ref.shape[0]
    q = 25 * bt

    # conv3: one stacked-tap matmul, then max over the 4 taps (aligned row slices).
    s = jnp.dot(x_ref[...], w3_ref[...], preferred_element_type=jnp.float32)  # (4q,128)
    h2 = jnp.maximum(jnp.maximum(s[0:q], s[q:2 * q]),
                     jnp.maximum(s[2 * q:3 * q], s[3 * q:4 * q]))
    h2 = jnp.maximum(h2 + b3_ref[...], 0.0).astype(jnp.bfloat16)   # (25*Bt, 128), (p, n)

    # conv5: sum over the 25 spatial positions; rows for position p are the
    # contiguous, sublane-aligned block h2[p*Bt:(p+1)*Bt].
    acc = jnp.zeros((bt, LANES), jnp.float32)
    for p in range(25):
        acc = acc + jnp.dot(h2[p * bt:(p + 1) * bt, :], w5_ref[p],
                            preferred_element_type=jnp.float32)
    feat = jnp.maximum(acc + b5_ref[...], 0.0)                      # `feature`, (Bt,128)

    # ReverseLayerF: identity in the forward pass (gradient reversal not modeled here).
    hid = jnp.dot(feat.astype(jnp.bfloat16), wh_ref[...],
                  preferred_element_type=jnp.float32)
    hid = jnp.maximum(hid + bh_ref[...], 0.0)                       # both heads' fc0+ReLU
    out = jnp.dot(hid.astype(jnp.bfloat16), wo_ref[...],
                  preferred_element_type=jnp.float32) + bo_ref[...]
    o_ref[...] = out


# ------------------------------------------------------------------ host-side im2col
# (tiny bf16 tensors; built pre-stacked / pre-padded in the exact row order the
#  kernels consume so no per-tap pads and no in-kernel reshapes are needed)

def _stage1_taps(x_nhwc, tm, g1):
    """x: (N,32,32,3) f32 -> (g1*4*tm, 128) bf16, rows ordered (grid_step, tap, row)."""
    N = x_nhwc.shape[0]
    k, c, hp = 5, 3, 14
    m = N * hp * hp
    taps = []
    for dh in range(2):
        for dw in range(2):
            cols = []
            for i in range(k):
                for j in range(k):
                    cols.append(x_nhwc[:, dh + i: dh + i + 2 * hp: 2,
                                          dw + j: dw + j + 2 * hp: 2, :])
            taps.append(jnp.concatenate(cols, axis=-1).reshape(m, k * k * c))
    t = jnp.stack(taps, axis=0).astype(jnp.bfloat16)                     # (4, M, 75)
    t = jnp.pad(t, ((0, 0), (0, g1 * tm - m), (0, LANES - k * k * c)))
    t = t.reshape(4, g1, tm, LANES).transpose(1, 0, 2, 3)                # (g1,4,tm,128)
    return t.reshape(g1 * 4 * tm, LANES)


def _stage2_taps(h1, bt, g2, k2pad):
    """h1: (N,14,14,6) bf16 -> (g2*100*bt, k2pad) bf16, rows (grid_step, tap, p, n)."""
    N = h1.shape[0]
    k, c, hp = 5, 6, 5
    taps = []
    for dh in range(2):
        for dw in range(2):
            cols = []
            for i in range(k):
                for j in range(k):
                    cols.append(h1[:, dh + i: dh + i + 2 * hp: 2,
                                      dw + j: dw + j + 2 * hp: 2, :])
            patch = jnp.concatenate(cols, axis=-1)                       # (N,5,5,150)
            taps.append(patch.reshape(N, hp * hp, k * k * c))            # (N,25,150)
    t = jnp.stack(taps, axis=0)                                          # (4,N,25,150)
    t = jnp.transpose(t, (0, 2, 1, 3))                                   # (4,25,N,150)
    n_pad = g2 * bt
    t = jnp.pad(t, ((0, 0), (0, 0), (0, n_pad - N), (0, k2pad - k * k * c)))
    t = t.reshape(4, 25, g2, bt, k2pad).transpose(2, 0, 1, 3, 4)         # (g2,4,25,bt,K)
    return t.reshape(g2 * 4 * 25 * bt, k2pad)


# ------------------------------------------------------------------ params

def init_params(key):
    """Deterministic init mimicking PyTorch's default uniform(-1/sqrt(fan_in), ...)."""
    def u(k, shape, fan_in):
        bound = 1.0 / math.sqrt(fan_in)
        return jax.random.uniform(k, shape, jnp.float32, -bound, bound)

    ks = jax.random.split(key, 14)
    p = {}
    # LeNet5 features (PyTorch conv layout: (OC, C, kh, kw))
    p['c1_w'] = u(ks[0], (6, 3, 5, 5), 3 * 25);      p['c1_b'] = u(ks[1], (6,), 3 * 25)
    p['c3_w'] = u(ks[2], (16, 6, 5, 5), 6 * 25);     p['c3_b'] = u(ks[3], (16,), 6 * 25)
    p['c5_w'] = u(ks[4], (120, 16, 5, 5), 16 * 25);  p['c5_b'] = u(ks[5], (120,), 16 * 25)
    # class classifier (Linear weights stored as (in, out))
    p['cc_fc0_w'] = u(ks[6], (120, 84), 120);  p['cc_fc0_b'] = u(ks[7], (84,), 120)
    p['cc_fc2_w'] = u(ks[8], (84, 10), 84);    p['cc_fc2_b'] = u(ks[9], (10,), 84)
    # domain classifier
    p['dc_fc0_w'] = u(ks[10], (120, 84), 120); p['dc_fc0_b'] = u(ks[11], (84,), 120)
    p['dc_fc2_w'] = u(ks[12], (84, 2), 84);    p['dc_fc2_b'] = u(ks[13], (2,), 84)
    return p


def prepare_params(p):
    """One-time packing into bf16, lane-dense, 128-padded, kernel-native layouts."""
    bf = lambda a: a.astype(jnp.bfloat16)
    packed = {}

    # conv1: (6,3,5,5) -> (kh,kw,c) x oc = (75,6) -> (128,128)
    w1 = p['c1_w'].transpose(2, 3, 1, 0).reshape(75, 6)
    packed['w1'] = bf(jnp.pad(w1, ((0, 128 - 75), (0, 128 - 6))))
    packed['b1'] = jnp.pad(p['c1_b'].reshape(1, 6), ((0, 0), (0, 122))).astype(jnp.float32)

    # conv3: (16,6,5,5) -> (150,16) -> (256,128)
    w3 = p['c3_w'].transpose(2, 3, 1, 0).reshape(150, 16)
    packed['w3'] = bf(jnp.pad(w3, ((0, 256 - 150), (0, 128 - 16))))
    packed['b3'] = jnp.pad(p['c3_b'].reshape(1, 16), ((0, 0), (0, 112))).astype(jnp.float32)

    # conv5 split per spatial position p=(kh,kw): (120,16,5,5) -> (25,16,120) -> (25,128,128)
    w5 = p['c5_w'].transpose(2, 3, 1, 0).reshape(25, 16, 120)
    packed['w5'] = bf(jnp.pad(w5, ((0, 0), (0, 112), (0, 8))))
    packed['b5'] = jnp.pad(p['c5_b'].reshape(1, 120), ((0, 0), (0, 8))).astype(jnp.float32)

    # fused head hidden: [cc_fc0 | dc_fc0] -> (120,168) -> (128,256)
    wh = jnp.concatenate([p['cc_fc0_w'], p['dc_fc0_w']], axis=1)
    packed['wh'] = bf(jnp.pad(wh, ((0, 8), (0, 88))))
    bh = jnp.concatenate([p['cc_fc0_b'], p['dc_fc0_b']], axis=0).reshape(1, 168)
    packed['bh'] = jnp.pad(bh, ((0, 0), (0, 88))).astype(jnp.float32)

    # fused head output: block-diagonal (168,12) -> (256,128)
    wo = jnp.zeros((256, 128), jnp.float32)
    wo = wo.at[0:84, 0:10].set(p['cc_fc2_w'])
    wo = wo.at[84:168, 10:12].set(p['dc_fc2_w'])
    packed['wo'] = bf(wo)
    bo = jnp.zeros((1, 128), jnp.float32)
    bo = bo.at[0, 0:10].set(p['cc_fc2_b'])
    bo = bo.at[0, 10:12].set(p['dc_fc2_b'])
    packed['bo'] = bo
    return packed


# ------------------------------------------------------------------ model

@jax.jit
def dann_forward(packed, x, alpha):
    del alpha  # ReverseLayerF: identity in forward; alpha only scales backward grads.

    # NCHW -> NHWC once at entry; stays channels-last (matmul-native) thereafter.
    x = jnp.transpose(x, (0, 2, 3, 1)).astype(jnp.float32)
    N = x.shape[0]

    # -------- stage 1: conv1 + ReLU + maxpool (one kernel, grid over patch rows) -----
    M1 = N * 14 * 14
    tm = min(1024, _round_up(_cdiv(M1, 2), 8))        # >= 2 grid steps (megacore/pipeline)
    g1 = _cdiv(M1, tm)
    taps1 = _stage1_taps(x, tm, g1)                   # (g1*4*tm, 128) bf16

    h1_flat = pl.pallas_call(
        _conv_pool_kernel,
        out_shape=jax.ShapeDtypeStruct((g1 * tm, LANES), jnp.bfloat16),
        grid=(g1,),
        in_specs=[pl.BlockSpec((4 * tm, LANES), lambda i: (i, 0)),
                  pl.BlockSpec((LANES, LANES), lambda i: (0, 0)),
                  pl.BlockSpec((1, LANES), lambda i: (0, 0))],
        out_specs=pl.BlockSpec((tm, LANES), lambda i: (i, 0)),
        compiler_params=pltpu.CompilerParams(dimension_semantics=("parallel",)),
    )(taps1, packed['w1'], packed['b1'])

    h1 = h1_flat[:M1, :6].reshape(N, 14, 14, 6)       # (N,14,14,6) bf16, tiny

    # -------- tail: conv3+pool + conv5 + both heads (one kernel, grid over images) ----
    bt = min(64, max(8, _round_up(_cdiv(N, 2), 8)))
    g2 = max(2, _cdiv(N, bt))                         # force >= 2 grid steps
    K2 = 256
    taps2 = _stage2_taps(h1, bt, g2, K2)              # (g2*100*bt, 256) bf16

    logits = pl.pallas_call(
        _tail_kernel,
        out_shape=jax.ShapeDtypeStruct((g2 * bt, LANES), jnp.float32),
        grid=(g2,),
        in_specs=[pl.BlockSpec((100 * bt, K2), lambda b: (b, 0)),
                  pl.BlockSpec((K2, LANES), lambda b: (0, 0)),
                  pl.BlockSpec((1, LANES), lambda b: (0, 0)),
                  pl.BlockSpec((25, LANES, LANES), lambda b: (0, 0, 0)),
                  pl.BlockSpec((1, LANES), lambda b: (0, 0)),
                  pl.BlockSpec((LANES, 2 * LANES), lambda b: (0, 0)),
                  pl.BlockSpec((1, 2 * LANES), lambda b: (0, 0)),
                  pl.BlockSpec((2 * LANES, LANES), lambda b: (0, 0)),
                  pl.BlockSpec((1, LANES), lambda b: (0, 0))],
        out_specs=pl.BlockSpec((bt, LANES), lambda b: (b, 0)),
        compiler_params=pltpu.CompilerParams(dimension_semantics=("parallel",)),
    )(taps2, packed['w3'], packed['b3'], packed['w5'], packed['b5'],
      packed['wh'], packed['bh'], packed['wo'], packed['bo'])

    return logits[:N, 0:10], logits[:N, 10:12]


if __name__ == "__main__":
    key = jax.random.PRNGKey(0)
    k_param, k_x = jax.random.split(key)

    params = init_params(k_param)
    packed = prepare_params(params)

    # LeNet5 (three valid 5x5 convs + two 2x2 pools) requires 32x32 spatial input.
    x = jax.random.normal(k_x, (2, 3, 32, 32), dtype=jnp.float32)
    alpha = jnp.float32(0.5)

    class_out, domain_out = dann_forward(packed, x, alpha)
    jax.block_until_ready((class_out, domain_out))

    assert class_out.shape == (2, 10), class_out.shape
    assert domain_out.shape == (2, 2), domain_out.shape
    print("KERNEL_OK")
</pallas_src>

<mosaic_0001>
module attributes {stable_mosaic.version = 11 : i64} {
  func.func @_conv_pool_kernel(%arg0: i32, %arg1: memref<800x128xbf16, #tpu.memory_space<vmem>>, %arg2: memref<128x128xbf16, #tpu.memory_space<vmem>>, %arg3: memref<1x128xf32, #tpu.memory_space<vmem>>, %arg4: memref<200x128xbf16, #tpu.memory_space<vmem>>) attributes {dimension_semantics = [#tpu.dimension_semantics<parallel>], iteration_bounds = array<i64: 2>, scalar_prefetch = 0 : i64, scratch_operands = 0 : i64, tpu.core_type = #tpu.core_type<tc>, window_params = [{transform_indices = @transform_0, window_bounds = array<i64: 800, 128>}, {pipeline_mode = #tpu.pipeline_mode<synchronous>, transform_indices = @transform_1, window_bounds = array<i64: 128, 128>}, {pipeline_mode = #tpu.pipeline_mode<synchronous>, transform_indices = @transform_2, window_bounds = array<i64: 1, 128>}, {transform_indices = @transform_3, window_bounds = array<i64: 200, 128>}]} {
    %c0 = arith.constant 0 : index
    %c0_0 = arith.constant 0 : index
    %0 = vector.load %arg1[%c0, %c0_0] : memref<800x128xbf16, #tpu.memory_space<vmem>>, vector<800x128xbf16>
    %c0_1 = arith.constant 0 : index
    %c0_2 = arith.constant 0 : index
    %1 = vector.load %arg2[%c0_1, %c0_2] : memref<128x128xbf16, #tpu.memory_space<vmem>>, vector<128x128xbf16>
    %cst = arith.constant dense<0.000000e+00> : vector<800x128xf32>
    %2 = tpu.matmul %0, %1, %cst {dimension_numbers = #tpu.dot_dimension_numbers<[1], [0], [0], [1], [0, 0, 1, 1], [], []>} : vector<800x128xbf16>, vector<128x128xbf16>, vector<800x128xf32> -> vector<800x128xf32>
    %3 = vector.extract_strided_slice %2 {offsets = [0, 0], sizes = [200, 128], strides = [1, 1]} : vector<800x128xf32> to vector<200x128xf32>
    %4 = vector.extract_strided_slice %2 {offsets = [200, 0], sizes = [200, 128], strides = [1, 1]} : vector<800x128xf32> to vector<200x128xf32>
    %5 = arith.maximumf %3, %4 : vector<200x128xf32>
    %6 = vector.extract_strided_slice %2 {offsets = [400, 0], sizes = [200, 128], strides = [1, 1]} : vector<800x128xf32> to vector<200x128xf32>
    %7 = vector.extract_strided_slice %2 {offsets = [600, 0], sizes = [200, 128], strides = [1, 1]} : vector<800x128xf32> to vector<200x128xf32>
    %8 = arith.maximumf %6, %7 : vector<200x128xf32>
    %9 = arith.maximumf %5, %8 : vector<200x128xf32>
    %c0_3 = arith.constant 0 : index
    %c0_4 = arith.constant 0 : index
    %10 = vector.load %arg3[%c0_3, %c0_4] : memref<1x128xf32, #tpu.memory_space<vmem>>, vector<1x128xf32>
    %11 = vector.broadcast %10 : vector<1x128xf32> to vector<200x128xf32>
    %12 = arith.addf %9, %11 : vector<200x128xf32>
    %cst_5 = arith.constant 0.000000e+00 : f32
    %13 = vector.broadcast %cst_5 : f32 to vector<200x128xf32>
    %14 = arith.maximumf %12, %13 : vector<200x128xf32>
    %15 = arith.truncf %14 : vector<200x128xf32> to vector<200x128xbf16>
    %c0_6 = arith.constant 0 : index
    %c0_7 = arith.constant 0 : index
    %16 = vector.load %arg4[%c0_6, %c0_7] : memref<200x128xbf16, #tpu.memory_space<vmem>>, vector<200x128xbf16>
    tpu.vector_store %arg4[%c0_6, %c0_7], %15 {strides = array<i32>} : memref<200x128xbf16, #tpu.memory_space<vmem>>, vector<200x128xbf16>,
    return
  }
  func.func @transform_0(%arg0: i32) -> (i32, i32) {
    %c0_i32 = arith.constant 0 : i32
    %c0_i32_0 = arith.constant 0 : i32
    return %arg0, %c0_i32 : i32, i32
  }
  func.func @transform_1(%arg0: i32) -> (i32, i32) {
    %c0_i32 = arith.constant 0 : i32
    %c0_i32_0 = arith.constant 0 : i32
    %c0_i32_1 = arith.constant 0 : i32
    return %c0_i32, %c0_i32_0 : i32, i32
  }
  func.func @transform_2(%arg0: i32) -> (i32, i32) {
    %c0_i32 = arith.constant 0 : i32
    %c0_i32_0 = arith.constant 0 : i32
    %c0_i32_1 = arith.constant 0 : i32
    return %c0_i32, %c0_i32_0 : i32, i32
  }
  func.func @transform_3(%arg0: i32) -> (i32, i32) {
    %c0_i32 = arith.constant 0 : i32
    %c0_i32_0 = arith.constant 0 : i32
    return %arg0, %c0_i32 : i32, i32
  }
}

module attributes {stable_mosaic.version = 11 : i64} {
  func.func @_tail_kernel(%arg0: i32, %arg1: memref<800x256xbf16, #tpu.memory_space<vmem>>, %arg2: memref<256x128xbf16, #tpu.memory_space<vmem>>, %arg3: memref<1x128xf32, #tpu.memory_space<vmem>>, %arg4: memref<25x128x128xbf16, #tpu.memory_space<vmem>>, %arg5: memref<1x128xf32, #tpu.memory_space<vmem>>, %arg6: memref<128x256xbf16, #tpu.memory_space<vmem>>, %arg7: memref<1x256xf32, #tpu.memory_space<vmem>>, %arg8: memref<256x128xbf16, #tpu.memory_space<vmem>>, %arg9: memref<1x128xf32, #tpu.memory_space<vmem>>, %arg10: memref<8x128xf32, #tpu.memory_space<vmem>>) attributes {dimension_semantics = [#tpu.dimension_semantics<parallel>], iteration_bounds = array<i64: 2>, scalar_prefetch = 0 : i64, scratch_operands = 0 : i64, tpu.core_type = #tpu.core_type<tc>, window_params = [{transform_indices = @transform_0, window_bounds = array<i64: 800, 256>}, {pipeline_mode = #tpu.pipeline_mode<synchronous>, transform_indices = @transform_1, window_bounds = array<i64: 256, 128>}, {pipeline_mode = #tpu.pipeline_mode<synchronous>, transform_indices = @transform_2, window_bounds = array<i64: 1, 128>}, {pipeline_mode = #tpu.pipeline_mode<synchronous>, transform_indices = @transform_3, window_bounds = array<i64: 25, 128, 128>}, {pipeline_mode = #tpu.pipeline_mode<synchronous>, transform_indices = @transform_4, window_bounds = array<i64: 1, 128>}, {pipeline_mode = #tpu.pipeline_mode<synchronous>, transform_indices = @transform_5, window_bounds = array<i64: 128, 256>}, {pipeline_mode = #tpu.pipeline_mode<synchronous>, transform_indices = @transform_6, window_bounds = array<i64: 1, 256>}, {pipeline_mode = #tpu.pipeline_mode<synchronous>, transform_indices = @transform_7, window_bounds = array<i64: 256, 128>}, {pipeline_mode = #tpu.pipeline_mode<synchronous>, transform_indices = @transform_8, window_bounds = array<i64: 1, 128>}, {transform_indices = @transform_9, window_bounds = array<i64: 8, 128>}]} {
    %c0 = arith.constant 0 : index
    %c0_0 = arith.constant 0 : index
    %0 = vector.load %arg1[%c0, %c0_0] : memref<800x256xbf16, #tpu.memory_space<vmem>>, vector<800x256xbf16>
    %c0_1 = arith.constant 0 : index
    %c0_2 = arith.constant 0 : index
    %1 = vector.load %arg2[%c0_1, %c0_2] : memref<256x128xbf16, #tpu.memory_space<vmem>>, vector<256x128xbf16>
    %cst = arith.constant dense<0.000000e+00> : vector<800x128xf32>
    %2 = tpu.matmul %0, %1, %cst {dimension_numbers = #tpu.dot_dimension_numbers<[1], [0], [0], [1], [0, 0, 1, 1], [], []>} : vector<800x256xbf16>, vector<256x128xbf16>, vector<800x128xf32> -> vector<800x128xf32>
    %3 = vector.extract_strided_slice %2 {offsets = [0, 0], sizes = [200, 128], strides = [1, 1]} : vector<800x128xf32> to vector<200x128xf32>
    %4 = vector.extract_strided_slice %2 {offsets = [200, 0], sizes = [200, 128], strides = [1, 1]} : vector<800x128xf32> to vector<200x128xf32>
    %5 = arith.maximumf %3, %4 : vector<200x128xf32>
    %6 = vector.extract_strided_slice %2 {offsets = [400, 0], sizes = [200, 128], strides = [1, 1]} : vector<800x128xf32> to vector<200x128xf32>
    %7 = vector.extract_strided_slice %2 {offsets = [600, 0], sizes = [200, 128], strides = [1, 1]} : vector<800x128xf32> to vector<200x128xf32>
    %8 = arith.maximumf %6, %7 : vector<200x128xf32>
    %9 = arith.maximumf %5, %8 : vector<200x128xf32>
    %c0_3 = arith.constant 0 : index
    %c0_4 = arith.constant 0 : index
    %10 = vector.load %arg3[%c0_3, %c0_4] : memref<1x128xf32, #tpu.memory_space<vmem>>, vector<1x128xf32>
    %11 = vector.broadcast %10 : vector<1x128xf32> to vector<200x128xf32>
    %12 = arith.addf %9, %11 : vector<200x128xf32>
    %cst_5 = arith.constant 0.000000e+00 : f32
    %13 = vector.broadcast %cst_5 : f32 to vector<200x128xf32>
    %14 = arith.maximumf %12, %13 : vector<200x128xf32>
    %15 = arith.truncf %14 : vector<200x128xf32> to vector<200x128xbf16>
    %cst_6 = arith.constant 0.000000e+00 : f32
    %16 = vector.broadcast %cst_6 : f32 to vector<8x128xf32>
    %17 = vector.extract_strided_slice %15 {offsets = [0, 0], sizes = [8, 128], strides = [1, 1]} : vector<200x128xbf16> to vector<8x128xbf16>
    %c0_7 = arith.constant 0 : index
    %c0_8 = arith.constant 0 : index
    %c0_9 = arith.constant 0 : index
    %18 = vector.load %arg4[%c0_7, %c0_8, %c0_9] : memref<25x128x128xbf16, #tpu.memory_space<vmem>>, vector<1x128x128xbf16>
    %19 = vector.shape_cast %18 : vector<1x128x128xbf16> to vector<128x128xbf16>
    %cst_10 = arith.constant dense<0.000000e+00> : vector<8x128xf32>
    %20 = tpu.matmul %17, %19, %cst_10 {dimension_numbers = #tpu.dot_dimension_numbers<[1], [0], [0], [1], [0, 0, 1, 1], [], []>} : vector<8x128xbf16>, vector<128x128xbf16>, vector<8x128xf32> -> vector<8x128xf32>
    %21 = arith.addf %16, %20 : vector<8x128xf32>
    %22 = vector.extract_strided_slice %15 {offsets = [8, 0], sizes = [8, 128], strides = [1, 1]} : vector<200x128xbf16> to vector<8x128xbf16>
    %c1 = arith.constant 1 : index
    %c0_11 = arith.constant 0 : index
    %c0_12 = arith.constant 0 : index
    %23 = vector.load %arg4[%c1, %c0_11, %c0_12] : memref<25x128x128xbf16, #tpu.memory_space<vmem>>, vector<1x128x128xbf16>
    %24 = vector.shape_cast %23 : vector<1x128x128xbf16> to vector<128x128xbf16>
    %cst_13 = arith.constant dense<0.000000e+00> : vector<8x128xf32>
    %25 = tpu.matmul %22, %24, %cst_13 {dimension_numbers = #tpu.dot_dimension_numbers<[1], [0], [0], [1], [0, 0, 1, 1], [], []>} : vector<8x128xbf16>, vector<128x128xbf16>, vector<8x128xf32> -> vector<8x128xf32>
    %26 = arith.addf %21, %25 : vector<8x128xf32>
    %27 = vector.extract_strided_slice %15 {offsets = [16, 0], sizes = [8, 128], strides = [1, 1]} : vector<200x128xbf16> to vector<8x128xbf16>
    %c2 = arith.constant 2 : index
    %c0_14 = arith.constant 0 : index
    %c0_15 = arith.constant 0 : index
    %28 = vector.load %arg4[%c2, %c0_14, %c0_15] : memref<25x128x128xbf16, #tpu.memory_space<vmem>>, vector<1x128x128xbf16>
    %29 = vector.shape_cast %28 : vector<1x128x128xbf16> to vector<128x128xbf16>
    %cst_16 = arith.constant dense<0.000000e+00> : vector<8x128xf32>
    %30 = tpu.matmul %27, %29, %cst_16 {dimension_numbers = #tpu.dot_dimension_numbers<[1], [0], [0], [1], [0, 0, 1, 1], [], []>} : vector<8x128xbf16>, vector<128x128xbf16>, vector<8x128xf32> -> vector<8x128xf32>
    %31 = arith.addf %26, %30 : vector<8x128xf32>
    %32 = vector.extract_strided_slice %15 {offsets = [24, 0], sizes = [8, 128], strides = [1, 1]} : vector<200x128xbf16> to vector<8x128xbf16>
    %c3 = arith.constant 3 : index
    %c0_17 = arith.constant 0 : index
    %c0_18 = arith.constant 0 : index
    %33 = vector.load %arg4[%c3, %c0_17, %c0_18] : memref<25x128x128xbf16, #tpu.memory_space<vmem>>, vector<1x128x128xbf16>
    %34 = vector.shape_cast %33 : vector<1x128x128xbf16> to vector<128x128xbf16>
    %cst_19 = arith.constant dense<0.000000e+00> : vector<8x128xf32>
    %35 = tpu.matmul %32, %34, %cst_19 {dimension_numbers = #tpu.dot_dimension_numbers<[1], [0], [0], [1], [0, 0, 1, 1], [], []>} : vector<8x128xbf16>, vector<128x128xbf16>, vector<8x128xf32> -> vector<8x128xf32>
    %36 = arith.addf %31, %35 : vector<8x128xf32>
    %37 = vector.extract_strided_slice %15 {offsets = [32, 0], sizes = [8, 128], strides = [1, 1]} : vector<200x128xbf16> to vector<8x128xbf16>
    %c4 = arith.constant 4 : index
    %c0_20 = arith.constant 0 : index
    %c0_21 = arith.constant 0 : index
    %38 = vector.load %arg4[%c4, %c0_20, %c0_21] : memref<25x128x128xbf16, #tpu.memory_space<vmem>>, vector<1x128x128xbf16>
    %39 = vector.shape_cast %38 : vector<1x128x128xbf16> to vector<128x128xbf16>
    %cst_22 = arith.constant dense<0.000000e+00> : vector<8x128xf32>
    %40 = tpu.matmul %37, %39, %cst_22 {dimension_numbers = #tpu.dot_dimension_numbers<[1], [0], [0], [1], [0, 0, 1, 1], [], []>} : vector<8x128xbf16>, vector<128x128xbf16>, vector<8x128xf32> -> vector<8x128xf32>
    %41 = arith.addf %36, %40 : vector<8x128xf32>
    %42 = vector.extract_strided_slice %15 {offsets = [40, 0], sizes = [8, 128], strides = [1, 1]} : vector<200x128xbf16> to vector<8x128xbf16>
    %c5 = arith.constant 5 : index
    %c0_23 = arith.constant 0 : index
    %c0_24 = arith.constant 0 : index
    %43 = vector.load %arg4[%c5, %c0_23, %c0_24] : memref<25x128x128xbf16, #tpu.memory_space<vmem>>, vector<1x128x128xbf16>
    %44 = vector.shape_cast %43 : vector<1x128x128xbf16> to vector<128x128xbf16>
    %cst_25 = arith.constant dense<0.000000e+00> : vector<8x128xf32>
    %45 = tpu.matmul %42, %44, %cst_25 {dimension_numbers = #tpu.dot_dimension_numbers<[1], [0], [0], [1], [0, 0, 1, 1], [], []>} : vector<8x128xbf16>, vector<128x128xbf16>, vector<8x128xf32> -> vector<8x128xf32>
    %46 = arith.addf %41, %45 : vector<8x128xf32>
    %47 = vector.extract_strided_slice %15 {offsets = [48, 0], sizes = [8, 128], strides = [1, 1]} : vector<200x128xbf16> to vector<8x128xbf16>
    %c6 = arith.constant 6 : index
    %c0_26 = arith.constant 0 : index
    %c0_27 = arith.constant 0 : index
    %48 = vector.load %arg4[%c6, %c0_26, %c0_27] : memref<25x128x128xbf16, #tpu.memory_space<vmem>>, vector<1x128x128xbf16>
    %49 = vector.shape_cast %48 : vector<1x128x128xbf16> to vector<128x128xbf16>
    %cst_28 = arith.constant dense<0.000000e+00> : vector<8x128xf32>
    %50 = tpu.matmul %47, %49, %cst_28 {dimension_numbers = #tpu.dot_dimension_numbers<[1], [0], [0], [1], [0, 0, 1, 1], [], []>} : vector<8x128xbf16>, vector<128x128xbf16>, vector<8x128xf32> -> vector<8x128xf32>
    %51 = arith.addf %46, %50 : vector<8x128xf32>
    %52 = vector.extract_strided_slice %15 {offsets = [56, 0], sizes = [8, 128], strides = [1, 1]} : vector<200x128xbf16> to vector<8x128xbf16>
    %c7 = arith.constant 7 : index
    %c0_29 = arith.constant 0 : index
    %c0_30 = arith.constant 0 : index
    %53 = vector.load %arg4[%c7, %c0_29, %c0_30] : memref<25x128x128xbf16, #tpu.memory_space<vmem>>, vector<1x128x128xbf16>
    %54 = vector.shape_cast %53 : vector<1x128x128xbf16> to vector<128x128xbf16>
    %cst_31 = arith.constant dense<0.000000e+00> : vector<8x128xf32>
    %55 = tpu.matmul %52, %54, %cst_31 {dimension_numbers = #tpu.dot_dimension_numbers<[1], [0], [0], [1], [0, 0, 1, 1], [], []>} : vector<8x128xbf16>, vector<128x128xbf16>, vector<8x128xf32> -> vector<8x128xf32>
    %56 = arith.addf %51, %55 : vector<8x128xf32>
    %57 = vector.extract_strided_slice %15 {offsets = [64, 0], sizes = [8, 128], strides = [1, 1]} : vector<200x128xbf16> to vector<8x128xbf16>
    %c8 = arith.constant 8 : index
    %c0_32 = arith.constant 0 : index
    %c0_33 = arith.constant 0 : index
    %58 = vector.load %arg4[%c8, %c0_32, %c0_33] : memref<25x128x128xbf16, #tpu.memory_space<vmem>>, vector<1x128x128xbf16>
    %59 = vector.shape_cast %58 : vector<1x128x128xbf16> to vector<128x128xbf16>
    %cst_34 = arith.constant dense<0.000000e+00> : vector<8x128xf32>
    %60 = tpu.matmul %57, %59, %cst_34 {dimension_numbers = #tpu.dot_dimension_numbers<[1], [0], [0], [1], [0, 0, 1, 1], [], []>} : vector<8x128xbf16>, vector<128x128xbf16>, vector<8x128xf32> -> vector<8x128xf32>
    %61 = arith.addf %56, %60 : vector<8x128xf32>
    %62 = vector.extract_strided_slice %15 {offsets = [72, 0], sizes = [8, 128], strides = [1, 1]} : vector<200x128xbf16> to vector<8x128xbf16>
    %c9 = arith.constant 9 : index
    %c0_35 = arith.constant 0 : index
    %c0_36 = arith.constant 0 : index
    %63 = vector.load %arg4[%c9, %c0_35, %c0_36] : memref<25x128x128xbf16, #tpu.memory_space<vmem>>, vector<1x128x128xbf16>
    %64 = vector.shape_cast %63 : vector<1x128x128xbf16> to vector<128x128xbf16>
    %cst_37 = arith.constant dense<0.000000e+00> : vector<8x128xf32>
    %65 = tpu.matmul %62, %64, %cst_37 {dimension_numbers = #tpu.dot_dimension_numbers<[1], [0], [0], [1], [0, 0, 1, 1], [], []>} : vector<8x128xbf16>, vector<128x128xbf16>, vector<8x128xf32> -> vector<8x128xf32>
    %66 = arith.addf %61, %65 : vector<8x128xf32>
    %67 = vector.extract_strided_slice %15 {offsets = [80, 0], sizes = [8, 128], strides = [1, 1]} : vector<200x128xbf16> to vector<8x128xbf16>
    %c10 = arith.constant 10 : index
    %c0_38 = arith.constant 0 : index
    %c0_39 = arith.constant 0 : index
    %68 = vector.load %arg4[%c10, %c0_38, %c0_39] : memref<25x128x128xbf16, #tpu.memory_space<vmem>>, vector<1x128x128xbf16>
    %69 = vector.shape_cast %68 : vector<1x128x128xbf16> to vector<128x128xbf16>
    %cst_40 = arith.constant dense<0.000000e+00> : vector<8x128xf32>
    %70 = tpu.matmul %67, %69, %cst_40 {dimension_numbers = #tpu.dot_dimension_numbers<[1], [0], [0], [1], [0, 0, 1, 1], [], []>} : vector<8x128xbf16>, vector<128x128xbf16>, vector<8x128xf32> -> vector<8x128xf32>
    %71 = arith.addf %66, %70 : vector<8x128xf32>
    %72 = vector.extract_strided_slice %15 {offsets = [88, 0], sizes = [8, 128], strides = [1, 1]} : vector<200x128xbf16> to vector<8x128xbf16>
    %c11 = arith.constant 11 : index
    %c0_41 = arith.constant 0 : index
    %c0_42 = arith.constant 0 : index
    %73 = vector.load %arg4[%c11, %c0_41, %c0_42] : memref<25x128x128xbf16, #tpu.memory_space<vmem>>, vector<1x128x128xbf16>
    %74 = vector.shape_cast %73 : vector<1x128x128xbf16> to vector<128x128xbf16>
    %cst_43 = arith.constant dense<0.000000e+00> : vector<8x128xf32>
    %75 = tpu.matmul %72, %74, %cst_43 {dimension_numbers = #tpu.dot_dimension_numbers<[1], [0], [0], [1], [0, 0, 1, 1], [], []>} : vector<8x128xbf16>, vector<128x128xbf16>, vector<8x128xf32> -> vector<8x128xf32>
    %76 = arith.addf %71, %75 : vector<8x128xf32>
    %77 = vector.extract_strided_slice %15 {offsets = [96, 0], sizes = [8, 128], strides = [1, 1]} : vector<200x128xbf16> to vector<8x128xbf16>
    %c12 = arith.constant 12 : index
    %c0_44 = arith.constant 0 : index
    %c0_45 = arith.constant 0 : index
    %78 = vector.load %arg4[%c12, %c0_44, %c0_45] : memref<25x128x128xbf16, #tpu.memory_space<vmem>>, vector<1x128x128xbf16>
    %79 = vector.shape_cast %78 : vector<1x128x128xbf16> to vector<128x128xbf16>
    %cst_46 = arith.constant dense<0.000000e+00> : vector<8x128xf32>
    %80 = tpu.matmul %77, %79, %cst_46 {dimension_numbers = #tpu.dot_dimension_numbers<[1], [0], [0], [1], [0, 0, 1, 1], [], []>} : vector<8x128xbf16>, vector<128x128xbf16>, vector<8x128xf32> -> vector<8x128xf32>
    %81 = arith.addf %76, %80 : vector<8x128xf32>
    %82 = vector.extract_strided_slice %15 {offsets = [104, 0], sizes = [8, 128], strides = [1, 1]} : vector<200x128xbf16> to vector<8x128xbf16>
    %c13 = arith.constant 13 : index
    %c0_47 = arith.constant 0 : index
    %c0_48 = arith.constant 0 : index
    %83 = vector.load %arg4[%c13, %c0_47, %c0_48] : memref<25x128x128xbf16, #tpu.memory_space<vmem>>, vector<1x128x128xbf16>
    %84 = vector.shape_cast %83 : vector<1x128x128xbf16> to vector<128x128xbf16>
    %cst_49 = arith.constant dense<0.000000e+00> : vector<8x128xf32>
    %85 = tpu.matmul %82, %84, %cst_49 {dimension_numbers = #tpu.dot_dimension_numbers<[1], [0], [0], [1], [0, 0, 1, 1], [], []>} : vector<8x128xbf16>, vector<128x128xbf16>, vector<8x128xf32> -> vector<8x128xf32>
    %86 = arith.addf %81, %85 : vector<8x128xf32>
    %87 = vector.extract_strided_slice %15 {offsets = [112, 0], sizes = [8, 128], strides = [1, 1]} : vector<200x128xbf16> to vector<8x128xbf16>
    %c14 = arith.constant 14 : index
    %c0_50 = arith.constant 0 : index
    %c0_51 = arith.constant 0 : index
    %88 = vector.load %arg4[%c14, %c0_50, %c0_51] : memref<25x128x128xbf16, #tpu.memory_space<vmem>>, vector<1x128x128xbf16>
    %89 = vector.shape_cast %88 : vector<1x128x128xbf16> to vector<128x128xbf16>
    %cst_52 = arith.constant dense<0.000000e+00> : vector<8x128xf32>
    %90 = tpu.matmul %87, %89, %cst_52 {dimension_numbers = #tpu.dot_dimension_numbers<[1], [0], [0], [1], [0, 0, 1, 1], [], []>} : vector<8x128xbf16>, vector<128x128xbf16>, vector<8x128xf32> -> vector<8x128xf32>
    %91 = arith.addf %86, %90 : vector<8x128xf32>
    %92 = vector.extract_strided_slice %15 {offsets = [120, 0], sizes = [8, 128], strides = [1, 1]} : vector<200x128xbf16> to vector<8x128xbf16>
    %c15 = arith.constant 15 : index
    %c0_53 = arith.constant 0 : index
    %c0_54 = arith.constant 0 : index
    %93 = vector.load %arg4[%c15, %c0_53, %c0_54] : memref<25x128x128xbf16, #tpu.memory_space<vmem>>, vector<1x128x128xbf16>
    %94 = vector.shape_cast %93 : vector<1x128x128xbf16> to vector<128x128xbf16>
    %cst_55 = arith.constant dense<0.000000e+00> : vector<8x128xf32>
    %95 = tpu.matmul %92, %94, %cst_55 {dimension_numbers = #tpu.dot_dimension_numbers<[1], [0], [0], [1], [0, 0, 1, 1], [], []>} : vector<8x128xbf16>, vector<128x128xbf16>, vector<8x128xf32> -> vector<8x128xf32>
    %96 = arith.addf %91, %95 : vector<8x128xf32>
    %97 = vector.extract_strided_slice %15 {offsets = [128, 0], sizes = [8, 128], strides = [1, 1]} : vector<200x128xbf16> to vector<8x128xbf16>
    %c16 = arith.constant 16 : index
    %c0_56 = arith.constant 0 : index
    %c0_57 = arith.constant 0 : index
    %98 = vector.load %arg4[%c16, %c0_56, %c0_57] : memref<25x128x128xbf16, #tpu.memory_space<vmem>>, vector<1x128x128xbf16>
    %99 = vector.shape_cast %98 : vector<1x128x128xbf16> to vector<128x128xbf16>
    %cst_58 = arith.constant dense<0.000000e+00> : vector<8x128xf32>
    %100 = tpu.matmul %97, %99, %cst_58 {dimension_numbers = #tpu.dot_dimension_numbers<[1], [0], [0], [1], [0, 0, 1, 1], [], []>} : vector<8x128xbf16>, vector<128x128xbf16>, vector<8x128xf32> -> vector<8x128xf32>
    %101 = arith.addf %96, %100 : vector<8x128xf32>
    %102 = vector.extract_strided_slice %15 {offsets = [136, 0], sizes = [8, 128], strides = [1, 1]} : vector<200x128xbf16> to vector<8x128xbf16>
    %c17 = arith.constant 17 : index
    %c0_59 = arith.constant 0 : index
    %c0_60 = arith.constant 0 : index
    %103 = vector.load %arg4[%c17, %c0_59, %c0_60] : memref<25x128x128xbf16, #tpu.memory_space<vmem>>, vector<1x128x128xbf16>
    %104 = vector.shape_cast %103 : vector<1x128x128xbf16> to vector<128x128xbf16>
    %cst_61 = arith.constant dense<0.000000e+00> : vector<8x128xf32>
    %105 = tpu.matmul %102, %104, %cst_61 {dimension_numbers = #tpu.dot_dimension_numbers<[1], [0], [0], [1], [0, 0, 1, 1], [], []>} : vector<8x128xbf16>, vector<128x128xbf16>, vector<8x128xf32> -> vector<8x128xf32>
    %106 = arith.addf %101, %105 : vector<8x128xf32>
    %107 = vector.extract_strided_slice %15 {offsets = [144, 0], sizes = [8, 128], strides = [1, 1]} : vector<200x128xbf16> to vector<8x128xbf16>
    %c18 = arith.constant 18 : index
    %c0_62 = arith.constant 0 : index
    %c0_63 = arith.constant 0 : index
    %108 = vector.load %arg4[%c18, %c0_62, %c0_63] : memref<25x128x128xbf16, #tpu.memory_space<vmem>>, vector<1x128x128xbf16>
    %109 = vector.shape_cast %108 : vector<1x128x128xbf16> to vector<128x128xbf16>
    %cst_64 = arith.constant dense<0.000000e+00> : vector<8x128xf32>
    %110 = tpu.matmul %107, %109, %cst_64 {dimension_numbers = #tpu.dot_dimension_numbers<[1], [0], [0], [1], [0, 0, 1, 1], [], []>} : vector<8x128xbf16>, vector<128x128xbf16>, vector<8x128xf32> -> vector<8x128xf32>
    %111 = arith.addf %106, %110 : vector<8x128xf32>
    %112 = vector.extract_strided_slice %15 {offsets = [152, 0], sizes = [8, 128], strides = [1, 1]} : vector<200x128xbf16> to vector<8x128xbf16>
    %c19 = arith.constant 19 : index
    %c0_65 = arith.constant 0 : index
    %c0_66 = arith.constant 0 : index
    %113 = vector.load %arg4[%c19, %c0_65, %c0_66] : memref<25x128x128xbf16, #tpu.memory_space<vmem>>, vector<1x128x128xbf16>
    %114 = vector.shape_cast %113 : vector<1x128x128xbf16> to vector<128x128xbf16>
    %cst_67 = arith.constant dense<0.000000e+00> : vector<8x128xf32>
    %115 = tpu.matmul %112, %114, %cst_67 {dimension_numbers = #tpu.dot_dimension_numbers<[1], [0], [0], [1], [0, 0, 1, 1], [], []>} : vector<8x128xbf16>, vector<128x128xbf16>, vector<8x128xf32> -> vector<8x128xf32>
    %116 = arith.addf %111, %115 : vector<8x128xf32>
    %117 = vector.extract_strided_slice %15 {offsets = [160, 0], sizes = [8, 128], strides = [1, 1]} : vector<200x128xbf16> to vector<8x128xbf16>
    %c20 = arith.constant 20 : index
    %c0_68 = arith.constant 0 : index
    %c0_69 = arith.constant 0 : index
    %118 = vector.load %arg4[%c20, %c0_68, %c0_69] : memref<25x128x128xbf16, #tpu.memory_space<vmem>>, vector<1x128x128xbf16>
    %119 = vector.shape_cast %118 : vector<1x128x128xbf16> to vector<128x128xbf16>
    %cst_70 = arith.constant dense<0.000000e+00> : vector<8x128xf32>
    %120 = tpu.matmul %117, %119, %cst_70 {dimension_numbers = #tpu.dot_dimension_numbers<[1], [0], [0], [1], [0, 0, 1, 1], [], []>} : vector<8x128xbf16>, vector<128x128xbf16>, vector<8x128xf32> -> vector<8x128xf32>
    %121 = arith.addf %116, %120 : vector<8x128xf32>
    %122 = vector.extract_strided_slice %15 {offsets = [168, 0], sizes = [8, 128], strides = [1, 1]} : vector<200x128xbf16> to vector<8x128xbf16>
    %c21 = arith.constant 21 : index
    %c0_71 = arith.constant 0 : index
    %c0_72 = arith.constant 0 : index
    %123 = vector.load %arg4[%c21, %c0_71, %c0_72] : memref<25x128x128xbf16, #tpu.memory_space<vmem>>, vector<1x128x128xbf16>
    %124 = vector.shape_cast %123 : vector<1x128x128xbf16> to vector<128x128xbf16>
    %cst_73 = arith.constant dense<0.000000e+00> : vector<8x128xf32>
    %125 = tpu.matmul %122, %124, %cst_73 {dimension_numbers = #tpu.dot_dimension_numbers<[1], [0], [0], [1], [0, 0, 1, 1], [], []>} : vector<8x128xbf16>, vector<128x128xbf16>, vector<8x128xf32> -> vector<8x128xf32>
    %126 = arith.addf %121, %125 : vector<8x128xf32>
    %127 = vector.extract_strided_slice %15 {offsets = [176, 0], sizes = [8, 128], strides = [1, 1]} : vector<200x128xbf16> to vector<8x128xbf16>
    %c22 = arith.constant 22 : index
    %c0_74 = arith.constant 0 : index
    %c0_75 = arith.constant 0 : index
    %128 = vector.load %arg4[%c22, %c0_74, %c0_75] : memref<25x128x128xbf16, #tpu.memory_space<vmem>>, vector<1x128x128xbf16>
    %129 = vector.shape_cast %128 : vector<1x128x128xbf16> to vector<128x128xbf16>
    %cst_76 = arith.constant dense<0.000000e+00> : vector<8x128xf32>
    %130 = tpu.matmul %127, %129, %cst_76 {dimension_numbers = #tpu.dot_dimension_numbers<[1], [0], [0], [1], [0, 0, 1, 1], [], []>} : vector<8x128xbf16>, vector<128x128xbf16>, vector<8x128xf32> -> vector<8x128xf32>
    %131 = arith.addf %126, %130 : vector<8x128xf32>
    %132 = vector.extract_strided_slice %15 {offsets = [184, 0], sizes = [8, 128], strides = [1, 1]} : vector<200x128xbf16> to vector<8x128xbf16>
    %c23 = arith.constant 23 : index
    %c0_77 = arith.constant 0 : index
    %c0_78 = arith.constant 0 : index
    %133 = vector.load %arg4[%c23, %c0_77, %c0_78] : memref<25x128x128xbf16, #tpu.memory_space<vmem>>, vector<1x128x128xbf16>
    %134 = vector.shape_cast %133 : vector<1x128x128xbf16> to vector<128x128xbf16>
    %cst_79 = arith.constant dense<0.000000e+00> : vector<8x128xf32>
    %135 = tpu.matmul %132, %134, %cst_79 {dimension_numbers = #tpu.dot_dimension_numbers<[1], [0], [0], [1], [0, 0, 1, 1], [], []>} : vector<8x128xbf16>, vector<128x128xbf16>, vector<8x128xf32> -> vector<8x128xf32>
    %136 = arith.addf %131, %135 : vector<8x128xf32>
    %137 = vector.extract_strided_slice %15 {offsets = [192, 0], sizes = [8, 128], strides = [1, 1]} : vector<200x128xbf16> to vector<8x128xbf16>
    %c24 = arith.constant 24 : index
    %c0_80 = arith.constant 0 : index
    %c0_81 = arith.constant 0 : index
    %138 = vector.load %arg4[%c24, %c0_80, %c0_81] : memref<25x128x128xbf16, #tpu.memory_space<vmem>>, vector<1x128x128xbf16>
    %139 = vector.shape_cast %138 : vector<1x128x128xbf16> to vector<128x128xbf16>
    %cst_82 = arith.constant dense<0.000000e+00> : vector<8x128xf32>
    %140 = tpu.matmul %137, %139, %cst_82 {dimension_numbers = #tpu.dot_dimension_numbers<[1], [0], [0], [1], [0, 0, 1, 1], [], []>} : vector<8x128xbf16>, vector<128x128xbf16>, vector<8x128xf32> -> vector<8x128xf32>
    %141 = arith.addf %136, %140 : vector<8x128xf32>
    %c0_83 = arith.constant 0 : index
    %c0_84 = arith.constant 0 : index
    %142 = vector.load %arg5[%c0_83, %c0_84] : memref<1x128xf32, #tpu.memory_space<vmem>>, vector<1x128xf32>
    %143 = vector.broadcast %142 : vector<1x128xf32> to vector<8x128xf32>
    %144 = arith.addf %141, %143 : vector<8x128xf32>
    %cst_85 = arith.constant 0.000000e+00 : f32
    %145 = vector.broadcast %cst_85 : f32 to vector<8x128xf32>
    %146 = arith.maximumf %144, %145 : vector<8x128xf32>
    %147 = arith.truncf %146 : vector<8x128xf32> to vector<8x128xbf16>
    %c0_86 = arith.constant 0 : index
    %c0_87 = arith.constant 0 : index
    %148 = vector.load %arg6[%c0_86, %c0_87] : memref<128x256xbf16, #tpu.memory_space<vmem>>, vector<128x256xbf16>
    %cst_88 = arith.constant dense<0.000000e+00> : vector<8x256xf32>
    %149 = tpu.matmul %147, %148, %cst_88 {dimension_numbers = #tpu.dot_dimension_numbers<[1], [0], [0], [1], [0, 0, 1, 1], [], []>} : vector<8x128xbf16>, vector<128x256xbf16>, vector<8x256xf32> -> vector<8x256xf32>
    %c0_89 = arith.constant 0 : index
    %c0_90 = arith.constant 0 : index
    %150 = vector.load %arg7[%c0_89, %c0_90] : memref<1x256xf32, #tpu.memory_space<vmem>>, vector<1x256xf32>
    %151 = vector.broadcast %150 : vector<1x256xf32> to vector<8x256xf32>
    %152 = arith.addf %149, %151 : vector<8x256xf32>
    %cst_91 = arith.constant 0.000000e+00 : f32
    %153 = vector.broadcast %cst_91 : f32 to vector<8x256xf32>
    %154 = arith.maximumf %152, %153 : vector<8x256xf32>
    %155 = arith.truncf %154 : vector<8x256xf32> to vector<8x256xbf16>
    %c0_92 = arith.constant 0 : index
    %c0_93 = arith.constant 0 : index
    %156 = vector.load %arg8[%c0_92, %c0_93] : memref<256x128xbf16, #tpu.memory_space<vmem>>, vector<256x128xbf16>
    %cst_94 = arith.constant dense<0.000000e+00> : vector<8x128xf32>
    %157 = tpu.matmul %155, %156, %cst_94 {dimension_numbers = #tpu.dot_dimension_numbers<[1], [0], [0], [1], [0, 0, 1, 1], [], []>} : vector<8x256xbf16>, vector<256x128xbf16>, vector<8x128xf32> -> vector<8x128xf32>
    %c0_95 = arith.constant 0 : index
    %c0_96 = arith.constant 0 : index
    %158 = vector.load %arg9[%c0_95, %c0_96] : memref<1x128xf32, #tpu.memory_space<vmem>>, vector<1x128xf32>
    %159 = vector.broadcast %158 : vector<1x128xf32> to vector<8x128xf32>
    %160 = arith.addf %157, %159 : vector<8x128xf32>
    %c0_97 = arith.constant 0 : index
    %c0_98 = arith.constant 0 : index
    %161 = vector.load %arg10[%c0_97, %c0_98] : memref<8x128xf32, #tpu.memory_space<vmem>>, vector<8x128xf32>
    tpu.vector_store %arg10[%c0_97, %c0_98], %160 {strides = array<i32>} : memref<8x128xf32, #tpu.memory_space<vmem>>, vector<8x128xf32>,
    return
  }
  func.func @transform_0(%arg0: i32) -> (i32, i32) {
    %c0_i32 = arith.constant 0 : i32
    %c0_i32_0 = arith.constant 0 : i32
    return %arg0, %c0_i32 : i32, i32
  }
  func.func @transform_1(%arg0: i32) -> (i32, i32) {
    %c0_i32 = arith.constant 0 : i32
    %c0_i32_0 = arith.constant 0 : i32
    %c0_i32_1 = arith.constant 0 : i32
    return %c0_i32, %c0_i32_0 : i32, i32
  }
  func.func @transform_2(%arg0: i32) -> (i32, i32) {
    %c0_i32 = arith.constant 0 : i32
    %c0_i32_0 = arith.constant 0 : i32
    %c0_i32_1 = arith.constant 0 : i32
    return %c0_i32, %c0_i32_0 : i32, i32
  }
  func.func @transform_3(%arg0: i32) -> (i32, i32, i32) {
    %c0_i32 = arith.constant 0 : i32
    %c0_i32_0 = arith.constant 0 : i32
    %c0_i32_1 = arith.constant 0 : i32
    %c0_i32_2 = arith.constant 0 : i32
    return %c0_i32, %c0_i32_0, %c0_i32_1 : i32, i32, i32
  }
  func.func @transform_4(%arg0: i32) -> (i32, i32) {
    %c0_i32 = arith.constant 0 : i32
    %c0_i32_0 = arith.constant 0 : i32
    %c0_i32_1 = arith.constant 0 : i32
    return %c0_i32, %c0_i32_0 : i32, i32
  }
  func.func @transform_5(%arg0: i32) -> (i32, i32) {
    %c0_i32 = arith.constant 0 : i32
    %c0_i32_0 = arith.constant 0 : i32
    %c0_i32_1 = arith.constant 0 : i32
    return %c0_i32, %c0_i32_0 : i32, i32
  }
  func.func @transform_6(%arg0: i32) -> (i32, i32) {
    %c0_i32 = arith.constant 0 : i32
    %c0_i32_0 = arith.constant 0 : i32
    %c0_i32_1 = arith.constant 0 : i32
    return %c0_i32, %c0_i32_0 : i32, i32
  }
  func.func @transform_7(%arg0: i32) -> (i32, i32) {
    %c0_i32 = arith.constant 0 : i32
    %c0_i32_0 = arith.constant 0 : i32
    %c0_i32_1 = arith.constant 0 : i32
    return %c0_i32, %c0_i32_0 : i32, i32
  }
  func.func @transform_8(%arg0: i32) -> (i32, i32) {
    %c0_i32 = arith.constant 0 : i32
    %c0_i32_0 = arith.constant 0 : i32
    %c0_i32_1 = arith.constant 0 : i32
    return %c0_i32, %c0_i32_0 : i32, i32
  }
  func.func @transform_9(%arg0: i32) -> (i32, i32) {
    %c0_i32 = arith.constant 0 : i32
    %c0_i32_0 = arith.constant 0 : i32
    return %arg0, %c0_i32 : i32, i32
  }
}

</mosaic_0001>

<llo_original>
// kernel: dann_forward.2
$region0: #{dann_forward.2}
  #allocation0 [shape = 'u32[]', space=smem, size = 0x4, offset = 0x4, fixed_abs, tag = 'smem constant byte address 0x4 - core index']
  #allocation1 [shape = 'u32[72,128]{1,0:T(1,128)}', space=vmem, size = 0x9000, scoped, tag = 'internal scratch']
  %s0 = inlined_call_operand.vmem [shape: bf16[1600,128], index: 0, kind: input, shape index: {}]
  %s1 = inlined_call_operand.vmem [shape: bf16[128,128], index: 1, kind: input, shape index: {}]
  %s2 = inlined_call_operand.vmem [shape: f32[1,128], index: 2, kind: input, shape index: {}]
  %s3 = inlined_call_operand.vmem [shape: bf16[400,128], index: 3, kind: output, shape index: {}]
  %s4 = sld [smem:[#allocation0]]
  $region45: #{dann_forward.2} parent=0
    _
  %s6 = ssub.s32 1, %s4
  %s7 = scalar_select 0, %s6, %s4
  loop: start=0, step=1, limit=4
  $region2: #{dann_forward.2} parent=0 // loop_pre_header
    _
  $region3: #{dann_forward.2} parent=0 // loop_header
    %s9 = sphi 0, %s13
    %p10 = scmp.ge.s32.totalorder %s9, 4
    %s19 = sphi 0, %s21
    %s22 = sphi 0, %s19
    %s23 = sphi 0, %s22
    %s39 = sphi 0, %s23
    %s43 = sphi 0, %s43
    %s45 = sphi 0, %s43
    %s46 = sphi 0, %s45
    %s60 = sphi 0, %s46
    %s64 = sphi 0, %s64
    %s66 = sphi 0, %s64
    %s67 = sphi 0, %s66
    %s81 = sphi 0, %s67
    %s87 = sphi 0, %s89
    %s90 = sphi 0, %s87
    %s91 = sphi 0, %s90
    %s107 = sphi 0, %s91
  $region4: #{dann_forward.2} parent=0 // loop_header_branch
    %12 = sbr.rel (%p10) target = $region8
  $region5: #{dann_forward.2} parent=0 // loop_body
    %s14 = ssub.s32 %s9, 1
    %s15 = ssub.s32 %s9, 2
    %s16 = sadd.s32 %s9, 1
    %s17 = ssub.s32 %s9, %s16
    %p18 = scmp.eq.s32.totalorder %s17, 0
    %s20 = sadd.s32 %s19, 1
    %s21 = scalar_select %p18, %s19, %s20
    %p24 = pneg %p18
    %p25 = scmp.eq.s32.totalorder %s9, 1
    %p26 = por %p24, %p25
    %p27 = scmp.ne.s32.totalorder %s19, %s22
    %p28 = scmp.eq.s32.totalorder %s9, 0
    %p29 = por %p27, %p28
    %p30 = scmp.ne.s32.totalorder %s19, %s22
    %p31 = scmp.eq.s32.totalorder %s14, 1
    %p32 = por %p30, %p31
    %p33 = scmp.ne.s32.totalorder %s22, %s23
    %p34 = scmp.eq.s32.totalorder %s14, 0
    %p35 = por %p33, %p34
    %p36 = scmp.ne.s32.totalorder %s22, %s23
    %p37 = scmp.eq.s32.totalorder %s15, 1
    %p38 = por %p36, %p37
    %p40 = scmp.ne.s32.totalorder %s23, %s39
    %p41 = scmp.eq.s32.totalorder %s15, 0
    %p42 = por %p40, %p41
    %s44 = sadd.s32 %s43, 1
    %p47 = scmp.eq.s32.totalorder %s9, 1
    %p48 = scmp.ne.s32.totalorder %s43, %s45
    %p49 = scmp.eq.s32.totalorder %s9, 0
    %p50 = por %p48, %p49
    %p51 = scmp.ne.s32.totalorder %s43, %s45
    %p52 = scmp.eq.s32.totalorder %s14, 1
    %p53 = por %p51, %p52
    %p54 = scmp.ne.s32.totalorder %s45, %s46
    %p55 = scmp.eq.s32.totalorder %s14, 0
    %p56 = por %p54, %p55
    %p57 = scmp.ne.s32.totalorder %s45, %s46
    %p58 = scmp.eq.s32.totalorder %s15, 1
    %p59 = por %p57, %p58
    %p61 = scmp.ne.s32.totalorder %s46, %s60
    %p62 = scmp.eq.s32.totalorder %s15, 0
    %p63 = por %p61, %p62
    %s65 = sadd.s32 %s64, 1
    %p68 = scmp.eq.s32.totalorder %s9, 1
    %p69 = scmp.ne.s32.totalorder %s64, %s66
    %p70 = scmp.eq.s32.totalorder %s9, 0
    %p71 = por %p69, %p70
    %p72 = scmp.ne.s32.totalorder %s64, %s66
    %p73 = scmp.eq.s32.totalorder %s14, 1
    %p74 = por %p72, %p73
    %p75 = scmp.ne.s32.totalorder %s66, %s67
    %p76 = scmp.eq.s32.totalorder %s14, 0
    %p77 = por %p75, %p76
    %p78 = scmp.ne.s32.totalorder %s66, %s67
    %p79 = scmp.eq.s32.totalorder %s15, 1
    %p80 = por %p78, %p79
    %p82 = scmp.ne.s32.totalorder %s67, %s81
    %p83 = scmp.eq.s32.totalorder %s15, 0
    %p84 = por %p82, %p83
    %s85 = ssub.s32 %s9, %s16
    %p86 = scmp.eq.s32.totalorder %s85, 0
    %s88 = sadd.s32 %s87, 1
    %s89 = scalar_select %p86, %s87, %s88
    %p92 = pneg %p86
    %p93 = scmp.eq.s32.totalorder %s9, 1
    %p94 = por %p92, %p93
    %p95 = scmp.ne.s32.totalorder %s87, %s90
    %p96 = scmp.eq.s32.totalorder %s9, 0
    %p97 = por %p95, %p96
    %p98 = scmp.ne.s32.totalorder %s87, %s90
    %p99 = scmp.eq.s32.totalorder %s14, 1
    %p100 = por %p98, %p99
    %p101 = scmp.ne.s32.totalorder %s90, %s91
    %p102 = scmp.eq.s32.totalorder %s14, 0
    %p103 = por %p101, %p102
    %p104 = scmp.ne.s32.totalorder %s90, %s91
    %p105 = scmp.eq.s32.totalorder %s15, 1
    %p106 = por %p104, %p105
    %p108 = scmp.ne.s32.totalorder %s91, %s107
    %p109 = scmp.eq.s32.totalorder %s15, 0
    %p110 = por %p108, %p109
    %p111 = scmp.le.s32.totalorder 1, %s9
    %p112 = scmp.lt.s32.totalorder %s9, 3
    %p113 = pnand %p111, %p112
    %p114 = pneg %p113
    // Predicated region
    $region9: #{dann_forward.2} parent=5 // pred_check
      _
    $region10: #{dann_forward.2} parent=5 // pred_check_branch
      %116 = sbr.rel (%p113) target = $region12
    $region11: #{dann_forward.2} parent=5 // pred_region
      %s117 = ssub.s32 %s9, 1
      // Predicated region
      $region13: #{dann_forward.2} parent=11 // pred_check
        %p118 = pneg %p56
      $region14: #{dann_forward.2} parent=11 // pred_check_branch
        %120 = sbr.rel (%p118) target = $region16
      $region15: #{dann_forward.2} parent=11 // pred_region
        _
      $region16: #{dann_forward.2} parent=11 // pred_fallthru
        _
      // Predicated region
      $region17: #{dann_forward.2} parent=11 // pred_check
        %p121 = pneg %p77
      $region18: #{dann_forward.2} parent=11 // pred_check_branch
        %123 = sbr.rel (%p121) target = $region20
      $region19: #{dann_forward.2} parent=11 // pred_region
        _
      $region20: #{dann_forward.2} parent=11 // pred_fallthru
        _
    $region12: #{dann_forward.2} parent=5 // pred_fallthru
      _
    %p124 = scmp.lt.s32.totalorder %s9, 2
    // Predicated region
    $region21: #{dann_forward.2} parent=5 // pred_check
      %p125 = pneg %p124
    $region22: #{dann_forward.2} parent=5 // pred_check_branch
      %127 = sbr.rel (%p125) target = $region24
    $region23: #{dann_forward.2} parent=5 // pred_region
      // Predicated region
      $region25: #{dann_forward.2} parent=23 // pred_check
        %p128 = pneg %p29
      $region26: #{dann_forward.2} parent=23 // pred_check_branch
        %130 = sbr.rel (%p128) target = $region28
      $region27: #{dann_forward.2} parent=23 // pred_region
        %s131 = smul.u32 100, %s9
        %p132 = scmp.lt.s32.totalorder %s131, 199
        %s133 = scalar_select %p132, %s131, 199
        %s134 = smul.addr %s133, 4
        %s135 = scalar_lea.vmem %s0, %s134
        %s136 = smul.u32 100, %s9
      $region28: #{dann_forward.2} parent=23 // pred_fallthru
        _
    $region24: #{dann_forward.2} parent=5 // pred_fallthru
      _
    %p137 = scmp.le.s32.totalorder 1, %s9
    %p138 = scmp.lt.s32.totalorder %s9, 3
    %p139 = pnand %p137, %p138
    %p140 = pneg %p139
    // Predicated region
    $region29: #{dann_forward.2} parent=5 // pred_check
      _
    $region30: #{dann_forward.2} parent=5 // pred_check_branch
      %142 = sbr.rel (%p139) target = $region32
    $region31: #{dann_forward.2} parent=5 // pred_region
      %s143 = ssub.s32 %s9, 1
      %s144 = smul.u32 100, %s14
      %p145 = scmp.lt.s32.totalorder %s144, 199
      %s146 = scalar_select %p145, %s144, 199
      %s147 = smul.addr %s146, 4
      %s148 = scalar_lea.vmem %s0, %s147
      %p149 = pneg %p35
      %p150 = pneg %p32
      %p151 = pneg %p56
      %p152 = pneg %p53
      %p153 = pneg %p77
      %p154 = pneg %p74
      %p155 = pneg %p103
      %p156 = pneg %p100
      %s157 = smul.u32 25, %s14
      %p158 = scmp.lt.s32.totalorder %s157, 49
      %s159 = scalar_select %p158, %s157, 49
      %s160 = smul.addr %s159, 4
      %s161 = scalar_lea.vmem %s3, %s160
      %s162 = smul.u32 100, %s14
      %p163 = scmp.lt.s32.totalorder %s162, 199
      %s164 = scalar_select %p163, %s162, 199
      %s165 = smul.addr %s164, 4
      %s166 = scalar_lea.vmem %s0, %s165
      %s167 = smul.u32 100, %s14
      %s168 = smul.u32 25, %s14
      %p169 = scmp.lt.s32.totalorder %s168, 49
      %s170 = scalar_select %p169, %s168, 49
      %s171 = smul.addr %s170, 4
      %s172 = scalar_lea.vmem %s3, %s171
      %s173 = smul.u32 25, %s14
      %v174 = vld [vmem:[%s166] sm:$0xf]
      %v175 = vld [vmem:[%s166 + $0x4] sm:$0xf]
      %v176 = vld [vmem:[%s166 + $0x8] sm:$0xf]
      %v177 = vld [vmem:[%s166 + $0xc] sm:$0xf]
      %v178 = vld [vmem:[%s166 + $0x10] sm:$0xf]
      %v179 = vld [vmem:[%s166 + $0x14] sm:$0xf]
      %v180 = vld [vmem:[%s166 + $0x18] sm:$0xf]
      %v181 = vld [vmem:[%s166 + $0x1c] sm:$0xf]
      %v182 = vld [vmem:[%s166 + $0x20] sm:$0xf]
      %v183 = vld [vmem:[%s166 + $0x24] sm:$0xf]
      %v184 = vld [vmem:[%s166 + $0x28] sm:$0xf]
      %v185 = vld [vmem:[%s166 + $0x2c] sm:$0xf]
      %v186 = vld [vmem:[%s166 + $0x30] sm:$0xf]
      %v187 = vld [vmem:[%s166 + $0x34] sm:$0xf]
      %v188 = vld [vmem:[%s166 + $0x38] sm:$0xf]
      %v189 = vld [vmem:[%s166 + $0x3c] sm:$0xf]
      %v190 = vld [vmem:[%s166 + $0x40] sm:$0xf]
      %v191 = vld [vmem:[%s166 + $0x44] sm:$0xf]
      %v192 = vld [vmem:[%s166 + $0x48] sm:$0xf]
      %v193 = vld [vmem:[%s166 + $0x4c] sm:$0xf]
      %v194 = vld [vmem:[%s166 + $0x50] sm:$0xf]
      %v195 = vld [vmem:[%s166 + $0x54] sm:$0xf]
      %v196 = vld [vmem:[%s166 + $0x58] sm:$0xf]
      %v197 = vld [vmem:[%s166 + $0x5c] sm:$0xf]
      %v198 = vld [vmem:[%s166 + $0x60] sm:$0xf]
      %v199 = vld [vmem:[%s166 + $0x64] sm:$0xf]
      %v200 = vld [vmem:[%s166 + $0x68] sm:$0xf]
      %v201 = vld [vmem:[%s166 + $0x6c] sm:$0xf]
      %v202 = vld [vmem:[%s166 + $0x70] sm:$0xf]
      %v203 = vld [vmem:[%s166 + $0x74] sm:$0xf]
      %v204 = vld [vmem:[%s166 + $0x78] sm:$0xf]
      %v205 = vld [vmem:[%s166 + $0x7c] sm:$0xf]
      %v206 = vld [vmem:[%s166 + $0x80] sm:$0xf]
      %v207 = vld [vmem:[%s166 + $0x84] sm:$0xf]
      %v208 = vld [vmem:[%s166 + $0x88] sm:$0xf]
      %v209 = vld [vmem:[%s166 + $0x8c] sm:$0xf]
      %v210 = vld [vmem:[%s166 + $0x90] sm:$0xf]
      %v211 = vld [vmem:[%s166 + $0x94] sm:$0xf]
      %v212 = vld [vmem:[%s166 + $0x98] sm:$0xf]
      %v213 = vld [vmem:[%s166 + $0x9c] sm:$0xf]
      %v214 = vld [vmem:[%s166 + $0xa0] sm:$0xf]
      %v215 = vld [vmem:[%s166 + $0xa4] sm:$0xf]
      %v216 = vld [vmem:[%s166 + $0xa8] sm:$0xf]
      %v217 = vld [vmem:[%s166 + $0xac] sm:$0xf]
      %v218 = vld [vmem:[%s166 + $0xb0] sm:$0xf]
      %v219 = vld [vmem:[%s166 + $0xb4] sm:$0xf]
      %v220 = vld [vmem:[%s166 + $0xb8] sm:$0xf]
      %v221 = vld [vmem:[%s166 + $0xbc] sm:$0xf]
      %v222 = vld [vmem:[%s166 + $0xc0] sm:$0xf]
      %v223 = vld [vmem:[%s166 + $0xc4] sm:$0xf]
      %v224 = vld [vmem:[%s166 + $0xc8] sm:$0xf]
      %v225 = vld [vmem:[%s166 + $0xcc] sm:$0xf]
      %v226 = vld [vmem:[%s166 + $0xd0] sm:$0xf]
      %v227 = vld [vmem:[%s166 + $0xd4] sm:$0xf]
      %v228 = vld [vmem:[%s166 + $0xd8] sm:$0xf]
      %v229 = vld [vmem:[%s166 + $0xdc] sm:$0xf]
      %v230 = vld [vmem:[%s166 + $0xe0] sm:$0xf]
      %v231 = vld [vmem:[%s166 + $0xe4] sm:$0xf]
      %v232 = vld [vmem:[%s166 + $0xe8] sm:$0xf]
      %v233 = vld [vmem:[%s166 + $0xec] sm:$0xf]
      %v234 = vld [vmem:[%s166 + $0xf0] sm:$0xf]
      %v235 = vld [vmem:[%s166 + $0xf4] sm:$0xf]
      %v236 = vld [vmem:[%s166 + $0xf8] sm:$0xf]
      %v237 = vld [vmem:[%s166 + $0xfc] sm:$0xf]
      %v238 = vld [vmem:[%s166 + $0x100] sm:$0xf]
      %v239 = vld [vmem:[%s166 + $0x104] sm:$0xf]
      %v240 = vld [vmem:[%s166 + $0x108] sm:$0xf]
      %v241 = vld [vmem:[%s166 + $0x10c] sm:$0xf]
      %v242 = vld [vmem:[%s166 + $0x110] sm:$0xf]
      %v243 = vld [vmem:[%s166 + $0x114] sm:$0xf]
      %v244 = vld [vmem:[%s166 + $0x118] sm:$0xf]
      %v245 = vld [vmem:[%s166 + $0x11c] sm:$0xf]
      %v246 = vld [vmem:[%s166 + $0x120] sm:$0xf]
      %v247 = vld [vmem:[%s166 + $0x124] sm:$0xf]
      %v248 = vld [vmem:[%s166 + $0x128] sm:$0xf]
      %v249 = vld [vmem:[%s166 + $0x12c] sm:$0xf]
      %v250 = vld [vmem:[%s166 + $0x130] sm:$0xf]
      %v251 = vld [vmem:[%s166 + $0x134] sm:$0xf]
      %v252 = vld [vmem:[%s166 + $0x138] sm:$0xf]
      %v253 = vld [vmem:[%s166 + $0x13c] sm:$0xf]
      %v254 = vld [vmem:[%s166 + $0x140] sm:$0xf]
      %v255 = vld [vmem:[%s166 + $0x144] sm:$0xf]
      %v256 = vld [vmem:[%s166 + $0x148] sm:$0xf]
      %v257 = vld [vmem:[%s166 + $0x14c] sm:$0xf]
      %v258 = vld [vmem:[%s166 + $0x150] sm:$0xf]
      %v259 = vld [vmem:[%s166 + $0x154] sm:$0xf]
      %v260 = vld [vmem:[%s166 + $0x158] sm:$0xf]
      %v261 = vld [vmem:[%s166 + $0x15c] sm:$0xf]
      %v262 = vld [vmem:[%s166 + $0x160] sm:$0xf]
      %v263 = vld [vmem:[%s166 + $0x164] sm:$0xf]
      %v264 = vld [vmem:[%s166 + $0x168] sm:$0xf]
      %v265 = vld [vmem:[%s166 + $0x16c] sm:$0xf]
      %v266 = vld [vmem:[%s166 + $0x170] sm:$0xf]
      %v267 = vld [vmem:[%s166 + $0x174] sm:$0xf]
      %v268 = vld [vmem:[%s166 + $0x178] sm:$0xf]
      %v269 = vld [vmem:[%s166 + $0x17c] sm:$0xf]
      %v270 = vld [vmem:[%s166 + $0x180] sm:$0xf]
      %v271 = vld [vmem:[%s166 + $0x184] sm:$0xf]
      %v272 = vld [vmem:[%s166 + $0x188] sm:$0xf]
      %v273 = vld [vmem:[%s166 + $0x18c] sm:$0xf]
      %v274 = vld [vmem:[%s1] sm:$0xf]
      %v275 = vld [vmem:[%s1 + $0x4] sm:$0xf]
      %v276 = vld [vmem:[%s1 + $0x8] sm:$0xf]
      %v277 = vld [vmem:[%s1 + $0xc] sm:$0xf]
      %v278 = vld [vmem:[%s1 + $0x10] sm:$0xf]
      %v279 = vld [vmem:[%s1 + $0x14] sm:$0xf]
      %v280 = vld [vmem:[%s1 + $0x18] sm:$0xf]
      %v281 = vld [vmem:[%s1 + $0x1c] sm:$0xf]
      %v282 = vld [vmem:[%s1 + $0x20] sm:$0xf]
      %v283 = vld [vmem:[%s1 + $0x24] sm:$0xf]
      %v284 = vld [vmem:[%s1 + $0x28] sm:$0xf]
      %v285 = vld [vmem:[%s1 + $0x2c] sm:$0xf]
      %v286 = vld [vmem:[%s1 + $0x30] sm:$0xf]
      %v287 = vld [vmem:[%s1 + $0x34] sm:$0xf]
      %v288 = vld [vmem:[%s1 + $0x38] sm:$0xf]
      %v289 = vld [vmem:[%s1 + $0x3c] sm:$0xf]
      %v390 = vunpack.c.l.b16 %v174
      %v391 = vunpack.c.l.b16 %v175
      %v392 = vunpack.c.l.b16 %v176
      %v393 = vunpack.c.l.b16 %v177
      %v394 = vunpack.c.l.b16 %v178
      %v395 = vunpack.c.l.b16 %v179
      %v396 = vunpack.c.l.b16 %v180
      %v397 = vunpack.c.l.b16 %v181
      %v398 = vunpack.c.l.b16 %v182
      %v399 = vunpack.c.l.b16 %v183
      %v400 = vunpack.c.l.b16 %v184
      %v401 = vunpack.c.l.b16 %v185
      %v402 = vunpack.c.l.b16 %v186
      %v403 = vunpack.c.l.b16 %v187
      %v404 = vunpack.c.l.b16 %v188
      %v405 = vunpack.c.l.b16 %v189
      %v406 = vunpack.c.l.b16 %v190
      %v407 = vunpack.c.l.b16 %v191
      %v408 = vunpack.c.l.b16 %v192
      %v409 = vunpack.c.l.b16 %v193
      %v410 = vunpack.c.l.b16 %v194
      %v411 = vunpack.c.l.b16 %v195
      %v412 = vunpack.c.l.b16 %v196
      %v413 = vunpack.c.l.b16 %v197
      %v414 = vunpack.c.l.b16 %v198
      %v415 = vunpack.c.l.b16 %v199
      %v416 = vunpack.c.l.b16 %v200
      %v417 = vunpack.c.l.b16 %v201
      %v418 = vunpack.c.l.b16 %v202
      %v419 = vunpack.c.l.b16 %v203
      %v420 = vunpack.c.l.b16 %v204
      %v421 = vunpack.c.l.b16 %v205
      %v422 = vunpack.c.l.b16 %v206
      %v423 = vunpack.c.l.b16 %v207
      %v424 = vunpack.c.l.b16 %v208
      %v425 = vunpack.c.l.b16 %v209
      %v426 = vunpack.c.l.b16 %v210
      %v427 = vunpack.c.l.b16 %v211
      %v428 = vunpack.c.l.b16 %v212
      %v429 = vunpack.c.l.b16 %v213
      %v430 = vunpack.c.l.b16 %v214
      %v431 = vunpack.c.l.b16 %v215
      %v432 = vunpack.c.l.b16 %v216
      %v433 = vunpack.c.l.b16 %v217
      %v434 = vunpack.c.l.b16 %v218
      %v435 = vunpack.c.l.b16 %v219
      %v436 = vunpack.c.l.b16 %v220
      %v437 = vunpack.c.l.b16 %v221
      %v438 = vunpack.c.l.b16 %v222
      %v439 = vunpack.c.l.b16 %v223
      %v440 = vunpack.c.l.b16 %v224
      %v441 = vunpack.c.l.b16 %v225
      %v442 = vunpack.c.l.b16 %v226
      %v443 = vunpack.c.l.b16 %v227
      %v444 = vunpack.c.l.b16 %v228
      %v445 = vunpack.c.l.b16 %v229
      %v446 = vunpack.c.l.b16 %v230
      %v447 = vunpack.c.l.b16 %v231
      %v448 = vunpack.c.l.b16 %v232
      %v449 = vunpack.c.l.b16 %v233
      %v450 = vunpack.c.l.b16 %v234
      %v451 = vunpack.c.l.b16 %v235
      %v452 = vunpack.c.l.b16 %v236
      %v453 = vunpack.c.l.b16 %v237
      %v454 = vunpack.c.l.b16 %v238
      %v455 = vunpack.c.l.b16 %v239
      %v456 = vunpack.c.l.b16 %v240
      %v457 = vunpack.c.l.b16 %v241
      %v458 = vunpack.c.l.b16 %v242
      %v459 = vunpack.c.l.b16 %v243
      %v460 = vunpack.c.l.b16 %v244
      %v461 = vunpack.c.l.b16 %v245
      %v462 = vunpack.c.l.b16 %v246
      %v463 = vunpack.c.l.b16 %v247
      %v464 = vunpack.c.l.b16 %v248
      %v465 = vunpack.c.l.b16 %v249
      %v466 = vunpack.c.l.b16 %v250
      %v467 = vunpack.c.l.b16 %v251
      %v468 = vunpack.c.l.b16 %v252
      %v469 = vunpack.c.l.b16 %v253
      %v470 = vunpack.c.l.b16 %v254
      %v471 = vunpack.c.l.b16 %v255
      %v472 = vunpack.c.l.b16 %v256
      %v473 = vunpack.c.l.b16 %v257
      %v474 = vunpack.c.l.b16 %v258
      %v475 = vunpack.c.l.b16 %v259
      %v476 = vunpack.c.l.b16 %v260
      %v477 = vunpack.c.l.b16 %v261
      %v478 = vunpack.c.l.b16 %v262
      %v479 = vunpack.c.l.b16 %v263
      %v480 = vunpack.c.l.b16 %v264
      %v481 = vunpack.c.l.b16 %v265
      %v482 = vunpack.c.l.b16 %v266
      %v483 = vunpack.c.l.b16 %v267
      %v484 = vunpack.c.l.b16 %v268
      %v485 = vunpack.c.l.b16 %v269
      %v486 = vunpack.c.l.b16 %v270
      %v487 = vunpack.c.l.b16 %v271
      %v488 = vunpack.c.l.b16 %v272
      %v489 = vunpack.c.l.b16 %v273
      %v490 = vpack.c.b16 %v391, %v390
      %v491 = vpack.c.b16 %v393, %v392
      %v492 = vpack.c.b16 %v395, %v394
      %v493 = vpack.c.b16 %v397, %v396
      %v494 = vpack.c.b16 %v399, %v398
      %v495 = vpack.c.b16 %v401, %v400
      %v496 = vpack.c.b16 %v403, %v402
      %v497 = vpack.c.b16 %v405, %v404
      %v498 = vpack.c.b16 %v407, %v406
      %v499 = vpack.c.b16 %v409, %v408
      %v500 = vpack.c.b16 %v411, %v410
      %v501 = vpack.c.b16 %v413, %v412
      %v502 = vpack.c.b16 %v415, %v414
      %v503 = vpack.c.b16 %v417, %v416
      %v504 = vpack.c.b16 %v419, %v418
      %v505 = vpack.c.b16 %v421, %v420
      %v506 = vpack.c.b16 %v423, %v422
      %v507 = vpack.c.b16 %v425, %v424
      %v508 = vpack.c.b16 %v427, %v426
      %v509 = vpack.c.b16 %v429, %v428
      %v510 = vpack.c.b16 %v431, %v430
      %v511 = vpack.c.b16 %v433, %v432
      %v512 = vpack.c.b16 %v435, %v434
      %v513 = vpack.c.b16 %v437, %v436
      %v514 = vpack.c.b16 %v439, %v438
      %v515 = vpack.c.b16 %v441, %v440
      %v516 = vpack.c.b16 %v443, %v442
      %v517 = vpack.c.b16 %v445, %v444
      %v518 = vpack.c.b16 %v447, %v446
      %v519 = vpack.c.b16 %v449, %v448
      %v520 = vpack.c.b16 %v451, %v450
      %v521 = vpack.c.b16 %v453, %v452
      %v522 = vpack.c.b16 %v455, %v454
      %v523 = vpack.c.b16 %v457, %v456
      %v524 = vpack.c.b16 %v459, %v458
      %v525 = vpack.c.b16 %v461, %v460
      %v526 = vpack.c.b16 %v463, %v462
      %v527 = vpack.c.b16 %v465, %v464
      %v528 = vpack.c.b16 %v467, %v466
      %v529 = vpack.c.b16 %v469, %v468
      %v530 = vpack.c.b16 %v471, %v470
      %v531 = vpack.c.b16 %v473, %v472
      %v532 = vpack.c.b16 %v475, %v474
      %v533 = vpack.c.b16 %v477, %v476
      %v534 = vpack.c.b16 %v479, %v478
      %v535 = vpack.c.b16 %v481, %v480
      %v536 = vpack.c.b16 %v483, %v482
      %v537 = vpack.c.b16 %v485, %v484
      %v538 = vpack.c.b16 %v487, %v486
      %v539 = vpack.c.b16 %v489, %v488
      %v606 = vunpack.c.l.b16 %v274
      %v607 = vunpack.c.l.b16 %v275
      %v608 = vunpack.c.l.b16 %v276
      %v609 = vunpack.c.l.b16 %v277
      %v610 = vunpack.c.l.b16 %v278
      %v611 = vunpack.c.l.b16 %v279
      %v612 = vunpack.c.l.b16 %v280
      %v613 = vunpack.c.l.b16 %v281
      %v614 = vunpack.c.l.b16 %v282
      %v615 = vunpack.c.l.b16 %v283
      %v616 = vunpack.c.l.b16 %v284
      %v617 = vunpack.c.l.b16 %v285
      %v618 = vunpack.c.l.b16 %v286
      %v619 = vunpack.c.l.b16 %v287
      %v620 = vunpack.c.l.b16 %v288
      %v621 = vunpack.c.l.b16 %v289
      %v622 = vpack.c.b16 %v607, %v606
      %v623 = vpack.c.b16 %v609, %v608
      %v624 = vpack.c.b16 %v611, %v610
      %v625 = vpack.c.b16 %v613, %v612
      %v626 = vpack.c.b16 %v615, %v614
      %v627 = vpack.c.b16 %v617, %v616
      %v628 = vpack.c.b16 %v619, %v618
      %v629 = vpack.c.b16 %v621, %v620
      %638 = vmatpush.bf16.msra.mxu0 %v629
      %639 = vmatpush.bf16.msra.mxu0 %v628
      %640 = vmatpush.bf16.msra.mxu0 %v627
      %641 = vmatpush.bf16.msra.mxu0 %v626
      %642 = vmatpush.bf16.msra.mxu0 %v625
      %643 = vmatpush.bf16.msra.mxu0 %v624
      %644 = vmatpush.bf16.msra.mxu0 %v623
      %645 = vmatpush.bf16.msra.mxu0 %v622
      %646 = vmatmul.bf16.gmra.mxu0 %v490
      %v647 = vpop.f32.mrf.mxu0
      %v648 = vadd.f32 0.0, %v647
      %v649 = vpop.f32.mrf.mxu0
      %v650 = vadd.f32 0.0, %v649
      %651 = vmatmul.bf16.gmra.mxu0 %v491
      %v652 = vpop.f32.mrf.mxu0
      %v653 = vadd.f32 0.0, %v652
      %v654 = vpop.f32.mrf.mxu0
      %v655 = vadd.f32 0.0, %v654
      %656 = vmatmul.bf16.gmra.mxu0 %v492
      %v657 = vpop.f32.mrf.mxu0
      %v658 = vadd.f32 0.0, %v657
      %v659 = vpop.f32.mrf.mxu0
      %v660 = vadd.f32 0.0, %v659
      %661 = vmatmul.bf16.gmra.mxu0 %v493
      %v662 = vpop.f32.mrf.mxu0
      %v663 = vadd.f32 0.0, %v662
      %v664 = vpop.f32.mrf.mxu0
      %v665 = vadd.f32 0.0, %v664
      %666 = vmatmul.bf16.gmra.mxu0 %v494
      %v667 = vpop.f32.mrf.mxu0
      %v668 = vadd.f32 0.0, %v667
      %v669 = vpop.f32.mrf.mxu0
      %v670 = vadd.f32 0.0, %v669
      %671 = vmatmul.bf16.gmra.mxu0 %v495
      %v672 = vpop.f32.mrf.mxu0
      %v673 = vadd.f32 0.0, %v672
      %v674 = vpop.f32.mrf.mxu0
      %v675 = vadd.f32 0.0, %v674
      %676 = vmatmul.bf16.gmra.mxu0 %v496
      %v677 = vpop.f32.mrf.mxu0
      %v678 = vadd.f32 0.0, %v677
      %v679 = vpop.f32.mrf.mxu0
      %v680 = vadd.f32 0.0, %v679
      %681 = vmatmul.bf16.gmra.mxu0 %v497
      %v682 = vpop.f32.mrf.mxu0
      %v683 = vadd.f32 0.0, %v682
      %v684 = vpop.f32.mrf.mxu0
      %v685 = vadd.f32 0.0, %v684
      %686 = vmatmul.bf16.gmra.mxu0 %v498
      %v687 = vpop.f32.mrf.mxu0
      %v688 = vadd.f32 0.0, %v687
      %v689 = vpop.f32.mrf.mxu0
      %v690 = vadd.f32 0.0, %v689
      %691 = vmatmul.bf16.gmra.mxu0 %v499
      %v692 = vpop.f32.mrf.mxu0
      %v693 = vadd.f32 0.0, %v692
      %v694 = vpop.f32.mrf.mxu0
      %v695 = vadd.f32 0.0, %v694
      %696 = vmatmul.bf16.gmra.mxu0 %v500
      %v697 = vpop.f32.mrf.mxu0
      %v698 = vadd.f32 0.0, %v697
      %v699 = vpop.f32.mrf.mxu0
      %v700 = vadd.f32 0.0, %v699
      %701 = vmatmul.bf16.gmra.mxu0 %v501
      %v702 = vpop.f32.mrf.mxu0
      %v703 = vadd.f32 0.0, %v702
      %v704 = vpop.f32.mrf.mxu0
      %v705 = vadd.f32 0.0, %v704
      %706 = vmatmul.bf16.gmra.mxu0 %v502
      %v707 = vpop.f32.mrf.mxu0
      %v708 = vadd.f32 0.0, %v707
      %v709 = vpop.f32.mrf.mxu0
      %v710 = vadd.f32 0.0, %v709
      %711 = vmatmul.bf16.gmra.mxu0 %v503
      %v712 = vpop.f32.mrf.mxu0
      %v713 = vadd.f32 0.0, %v712
      %v714 = vpop.f32.mrf.mxu0
      %v715 = vadd.f32 0.0, %v714
      %716 = vmatmul.bf16.gmra.mxu0 %v504
      %v717 = vpop.f32.mrf.mxu0
      %v718 = vadd.f32 0.0, %v717
      %v719 = vpop.f32.mrf.mxu0
      %v720 = vadd.f32 0.0, %v719
      %721 = vmatmul.bf16.gmra.mxu0 %v505
      %v722 = vpop.f32.mrf.mxu0
      %v723 = vadd.f32 0.0, %v722
      %v724 = vpop.f32.mrf.mxu0
      %v725 = vadd.f32 0.0, %v724
      %726 = vmatmul.bf16.gmra.mxu0 %v506
      %v727 = vpop.f32.mrf.mxu0
      %v728 = vadd.f32 0.0, %v727
      %v729 = vpop.f32.mrf.mxu0
      %v730 = vadd.f32 0.0, %v729
      %731 = vmatmul.bf16.gmra.mxu0 %v507
      %v732 = vpop.f32.mrf.mxu0
      %v733 = vadd.f32 0.0, %v732
      %v734 = vpop.f32.mrf.mxu0
      %v735 = vadd.f32 0.0, %v734
      %736 = vmatmul.bf16.gmra.mxu0 %v508
      %v737 = vpop.f32.mrf.mxu0
      %v738 = vadd.f32 0.0, %v737
      %v739 = vpop.f32.mrf.mxu0
      %v740 = vadd.f32 0.0, %v739
      %741 = vmatmul.bf16.gmra.mxu0 %v509
      %v742 = vpop.f32.mrf.mxu0
      %v743 = vadd.f32 0.0, %v742
      %v744 = vpop.f32.mrf.mxu0
      %v745 = vadd.f32 0.0, %v744
      %746 = vmatmul.bf16.gmra.mxu0 %v510
      %v747 = vpop.f32.mrf.mxu0
      %v748 = vadd.f32 0.0, %v747
      %v749 = vpop.f32.mrf.mxu0
      %v750 = vadd.f32 0.0, %v749
      %751 = vmatmul.bf16.gmra.mxu0 %v511
      %v752 = vpop.f32.mrf.mxu0
      %v753 = vadd.f32 0.0, %v752
      %v754 = vpop.f32.mrf.mxu0
      %v755 = vadd.f32 0.0, %v754
      %756 = vmatmul.bf16.gmra.mxu0 %v512
      %v757 = vpop.f32.mrf.mxu0
      %v758 = vadd.f32 0.0, %v757
      %v759 = vpop.f32.mrf.mxu0
      %v760 = vadd.f32 0.0, %v759
      %761 = vmatmul.bf16.gmra.mxu0 %v513
      %v762 = vpop.f32.mrf.mxu0
      %v763 = vadd.f32 0.0, %v762
      %v764 = vpop.f32.mrf.mxu0
      %v765 = vadd.f32 0.0, %v764
      %766 = vmatmul.bf16.gmra.mxu0 %v514
      %v767 = vpop.f32.mrf.mxu0
      %v768 = vadd.f32 0.0, %v767
      %v769 = vpop.f32.mrf.mxu0
      %v770 = vadd.f32 0.0, %v769
      %771 = vmatmul.bf16.gmra.mxu0 %v515
      %v772 = vpop.f32.mrf.mxu0
      %v773 = vadd.f32 0.0, %v772
      %v774 = vpop.f32.mrf.mxu0
      %v775 = vadd.f32 0.0, %v774
      %776 = vmatmul.bf16.gmra.mxu0 %v516
      %v777 = vpop.f32.mrf.mxu0
      %v778 = vadd.f32 0.0, %v777
      %v779 = vpop.f32.mrf.mxu0
      %v780 = vadd.f32 0.0, %v779
      %781 = vmatmul.bf16.gmra.mxu0 %v517
      %v782 = vpop.f32.mrf.mxu0
      %v783 = vadd.f32 0.0, %v782
      %v784 = vpop.f32.mrf.mxu0
      %v785 = vadd.f32 0.0, %v784
      %786 = vmatmul.bf16.gmra.mxu0 %v518
      %v787 = vpop.f32.mrf.mxu0
      %v788 = vadd.f32 0.0, %v787
      %v789 = vpop.f32.mrf.mxu0
      %v790 = vadd.f32 0.0, %v789
      %791 = vmatmul.bf16.gmra.mxu0 %v519
      %v792 = vpop.f32.mrf.mxu0
      %v793 = vadd.f32 0.0, %v792
      %v794 = vpop.f32.mrf.mxu0
      %v795 = vadd.f32 0.0, %v794
      %796 = vmatmul.bf16.gmra.mxu0 %v520
      %v797 = vpop.f32.mrf.mxu0
      %v798 = vadd.f32 0.0, %v797
      %v799 = vpop.f32.mrf.mxu0
      %v800 = vadd.f32 0.0, %v799
      %801 = vmatmul.bf16.gmra.mxu0 %v521
      %v802 = vpop.f32.mrf.mxu0
      %v803 = vadd.f32 0.0, %v802
      %v804 = vpop.f32.mrf.mxu0
      %v805 = vadd.f32 0.0, %v804
      %806 = vmatmul.bf16.gmra.mxu0 %v522
      %v807 = vpop.f32.mrf.mxu0
      %v808 = vadd.f32 0.0, %v807
      %v809 = vpop.f32.mrf.mxu0
      %v810 = vadd.f32 0.0, %v809
      %811 = vmatmul.bf16.gmra.mxu0 %v523
      %v812 = vpop.f32.mrf.mxu0
      %v813 = vadd.f32 0.0, %v812
      %v814 = vpop.f32.mrf.mxu0
      %v815 = vadd.f32 0.0, %v814
      %816 = vmatmul.bf16.gmra.mxu0 %v524
      %v817 = vpop.f32.mrf.mxu0
      %v818 = vadd.f32 0.0, %v817
      %v819 = vpop.f32.mrf.mxu0
      %v820 = vadd.f32 0.0, %v819
      %821 = vmatmul.bf16.gmra.mxu0 %v525
      %v822 = vpop.f32.mrf.mxu0
      %v823 = vadd.f32 0.0, %v822
      %v824 = vpop.f32.mrf.mxu0
      %v825 = vadd.f32 0.0, %v824
      %826 = vmatmul.bf16.gmra.mxu0 %v526
      %v827 = vpop.f32.mrf.mxu0
      %v828 = vadd.f32 0.0, %v827
      %v829 = vpop.f32.mrf.mxu0
      %v830 = vadd.f32 0.0, %v829
      %831 = vmatmul.bf16.gmra.mxu0 %v527
      %v832 = vpop.f32.mrf.mxu0
      %v833 = vadd.f32 0.0, %v832
      %v834 = vpop.f32.mrf.mxu0
      %v835 = vadd.f32 0.0, %v834
      %836 = vmatmul.bf16.gmra.mxu0 %v528
      %v837 = vpop.f32.mrf.mxu0
      %v838 = vadd.f32 0.0, %v837
      %v839 = vpop.f32.mrf.mxu0
      %v840 = vadd.f32 0.0, %v839
      %841 = vmatmul.bf16.gmra.mxu0 %v529
      %v842 = vpop.f32.mrf.mxu0
      %v843 = vadd.f32 0.0, %v842
      %v844 = vpop.f32.mrf.mxu0
      %v845 = vadd.f32 0.0, %v844
      %846 = vmatmul.bf16.gmra.mxu0 %v530
      %v847 = vpop.f32.mrf.mxu0
      %v848 = vadd.f32 0.0, %v847
      %v849 = vpop.f32.mrf.mxu0
      %v850 = vadd.f32 0.0, %v849
      %851 = vmatmul.bf16.gmra.mxu0 %v531
      %v852 = vpop.f32.mrf.mxu0
      %v853 = vadd.f32 0.0, %v852
      %v854 = vpop.f32.mrf.mxu0
      %v855 = vadd.f32 0.0, %v854
      %856 = vmatmul.bf16.gmra.mxu0 %v532
      %v857 = vpop.f32.mrf.mxu0
      %v858 = vadd.f32 0.0, %v857
      %v859 = vpop.f32.mrf.mxu0
      %v860 = vadd.f32 0.0, %v859
      %861 = vmatmul.bf16.gmra.mxu0 %v533
      %v862 = vpop.f32.mrf.mxu0
      %v863 = vadd.f32 0.0, %v862
      %v864 = vpop.f32.mrf.mxu0
      %v865 = vadd.f32 0.0, %v864
      %866 = vmatmul.bf16.gmra.mxu0 %v534
      %v867 = vpop.f32.mrf.mxu0
      %v868 = vadd.f32 0.0, %v867
      %v869 = vpop.f32.mrf.mxu0
      %v870 = vadd.f32 0.0, %v869
      %871 = vmatmul.bf16.gmra.mxu0 %v535
      %v872 = vpop.f32.mrf.mxu0
      %v873 = vadd.f32 0.0, %v872
      %v874 = vpop.f32.mrf.mxu0
      %v875 = vadd.f32 0.0, %v874
      %876 = vmatmul.bf16.gmra.mxu0 %v536
      %v877 = vpop.f32.mrf.mxu0
      %v878 = vadd.f32 0.0, %v877
      %v879 = vpop.f32.mrf.mxu0
      %v880 = vadd.f32 0.0, %v879
      %881 = vmatmul.bf16.gmra.mxu0 %v537
      %v882 = vpop.f32.mrf.mxu0
      %v883 = vadd.f32 0.0, %v882
      %v884 = vpop.f32.mrf.mxu0
      %v885 = vadd.f32 0.0, %v884
      %886 = vmatmul.bf16.gmra.mxu0 %v538
      %v887 = vpop.f32.mrf.mxu0
      %v888 = vadd.f32 0.0, %v887
      %v889 = vpop.f32.mrf.mxu0
      %v890 = vadd.f32 0.0, %v889
      %891 = vmatmul.bf16.gmra.mxu0 %v539
      %v892 = vpop.f32.mrf.mxu0
      %v893 = vadd.f32 0.0, %v892
      %v894 = vpop.f32.mrf.mxu0
      %v895 = vadd.f32 0.0, %v894
      %896 = vdwg.mxu0
      %v897 = vmax.f32 %v648, %v710
      %v898 = vmax.f32 %v650, %v713
      %v899 = vmax.f32 %v653, %v715
      %v900 = vmax.f32 %v655, %v718
      %v901 = vmax.f32 %v658, %v720
      %v902 = vmax.f32 %v660, %v723
      %v903 = vmax.f32 %v663, %v725
      %v904 = vmax.f32 %v665, %v728
      %v905 = vmax.f32 %v668, %v730
      %v906 = vmax.f32 %v670, %v733
      %v907 = vmax.f32 %v673, %v735
      %v908 = vmax.f32 %v675, %v738
      %v909 = vmax.f32 %v678, %v740
      %v910 = vmax.f32 %v680, %v743
      %v911 = vmax.f32 %v683, %v745
      %v912 = vmax.f32 %v685, %v748
      %v913 = vmax.f32 %v688, %v750
      %v914 = vmax.f32 %v690, %v753
      %v915 = vmax.f32 %v693, %v755
      %v916 = vmax.f32 %v695, %v758
      %v917 = vmax.f32 %v698, %v760
      %v918 = vmax.f32 %v700, %v763
      %v919 = vmax.f32 %v703, %v765
      %v920 = vmax.f32 %v705, %v768
      %v921 = vmax.f32 %v708, %v770
      %v922 = vmax.f32 %v773, %v835
      %v923 = vmax.f32 %v775, %v838
      %v924 = vmax.f32 %v778, %v840
      %v925 = vmax.f32 %v780, %v843
      %v926 = vmax.f32 %v783, %v845
      %v927 = vmax.f32 %v785, %v848
      %v928 = vmax.f32 %v788, %v850
      %v929 = vmax.f32 %v790, %v853
      %v930 = vmax.f32 %v793, %v855
      %v931 = vmax.f32 %v795, %v858
      %v932 = vmax.f32 %v798, %v860
      %v933 = vmax.f32 %v800, %v863
      %v934 = vmax.f32 %v803, %v865
      %v935 = vmax.f32 %v805, %v868
      %v936 = vmax.f32 %v808, %v870
      %v937 = vmax.f32 %v810, %v873
      %v938 = vmax.f32 %v813, %v875
      %v939 = vmax.f32 %v815, %v878
      %v940 = vmax.f32 %v818, %v880
      %v941 = vmax.f32 %v820, %v883
      %v942 = vmax.f32 %v823, %v885
      %v943 = vmax.f32 %v825, %v888
      %v944 = vmax.f32 %v828, %v890
      %v945 = vmax.f32 %v830, %v893
      %v946 = vmax.f32 %v833, %v895
      %v947 = vmax.f32 %v897, %v922
      %v948 = vmax.f32 %v898, %v923
      %v949 = vmax.f32 %v899, %v924
      %v950 = vmax.f32 %v900, %v925
      %v951 = vmax.f32 %v901, %v926
      %v952 = vmax.f32 %v902, %v927
      %v953 = vmax.f32 %v903, %v928
      %v954 = vmax.f32 %v904, %v929
      %v955 = vmax.f32 %v905, %v930
      %v956 = vmax.f32 %v906, %v931
      %v957 = vmax.f32 %v907, %v932
      %v958 = vmax.f32 %v908, %v933
      %v959 = vmax.f32 %v909, %v934
      %v960 = vmax.f32 %v910, %v935
      %v961 = vmax.f32 %v911, %v936
      %v962 = vmax.f32 %v912, %v937
      %v963 = vmax.f32 %v913, %v938
      %v964 = vmax.f32 %v914, %v939
      %v965 = vmax.f32 %v915, %v940
      %v966 = vmax.f32 %v916, %v941
      %v967 = vmax.f32 %v917, %v942
      %v968 = vmax.f32 %v918, %v943
      %v969 = vmax.f32 %v919, %v944
      %v970 = vmax.f32 %v920, %v945
      %v971 = vmax.f32 %v921, %v946
      %v972 = vld [vmem:[%s2] sm:$0x1]
      %v974 = vperm.slane %v972, 0
      %v976 = vadd.f32 %v947, %v974
      %v977 = vadd.f32 %v948, %v974
      %v978 = vadd.f32 %v949, %v974
      %v979 = vadd.f32 %v950, %v974
      %v980 = vadd.f32 %v951, %v974
      %v981 = vadd.f32 %v952, %v974
      %v982 = vadd.f32 %v953, %v974
      %v983 = vadd.f32 %v954, %v974
      %v984 = vadd.f32 %v955, %v974
      %v985 = vadd.f32 %v956, %v974
      %v986 = vadd.f32 %v957, %v974
      %v987 = vadd.f32 %v958, %v974
      %v988 = vadd.f32 %v959, %v974
      %v989 = vadd.f32 %v960, %v974
      %v990 = vadd.f32 %v961, %v974
      %v991 = vadd.f32 %v962, %v974
      %v992 = vadd.f32 %v963, %v974
      %v993 = vadd.f32 %v964, %v974
      %v994 = vadd.f32 %v965, %v974
      %v995 = vadd.f32 %v966, %v974
      %v996 = vadd.f32 %v967, %v974
      %v997 = vadd.f32 %v968, %v974
      %v998 = vadd.f32 %v969, %v974
      %v999 = vadd.f32 %v970, %v974
      %v1000 = vadd.f32 %v971, %v974
      %v1001 = vmax.f32 %v976, 0.0
      %v1002 = vmax.f32 %v977, 0.0
      %v1003 = vmax.f32 %v978, 0.0
      %v1004 = vmax.f32 %v979, 0.0
      %v1005 = vmax.f32 %v980, 0.0
      %v1006 = vmax.f32 %v981, 0.0
      %v1007 = vmax.f32 %v982, 0.0
      %v1008 = vmax.f32 %v983, 0.0
      %v1009 = vmax.f32 %v984, 0.0
      %v1010 = vmax.f32 %v985, 0.0
      %v1011 = vmax.f32 %v986, 0.0
      %v1012 = vmax.f32 %v987, 0.0
      %v1013 = vmax.f32 %v988, 0.0
      %v1014 = vmax.f32 %v989, 0.0
      %v1015 = vmax.f32 %v990, 0.0
      %v1016 = vmax.f32 %v991, 0.0
      %v1017 = vmax.f32 %v992, 0.0
      %v1018 = vmax.f32 %v993, 0.0
      %v1019 = vmax.f32 %v994, 0.0
      %v1020 = vmax.f32 %v995, 0.0
      %v1021 = vmax.f32 %v996, 0.0
      %v1022 = vmax.f32 %v997, 0.0
      %v1023 = vmax.f32 %v998, 0.0
      %v1024 = vmax.f32 %v999, 0.0
      %v1025 = vmax.f32 %v1000, 0.0
      %v1026 = vpack.c.bf16 %v1001, %v1001
      %v1027 = vpack.c.bf16 %v1002, %v1002
      %v1028 = vpack.c.bf16 %v1003, %v1003
      %v1029 = vpack.c.bf16 %v1004, %v1004
      %v1030 = vpack.c.bf16 %v1005, %v1005
      %v1031 = vpack.c.bf16 %v1006, %v1006
      %v1032 = vpack.c.bf16 %v1007, %v1007
      %v1033 = vpack.c.bf16 %v1008, %v1008
      %v1034 = vpack.c.bf16 %v1009, %v1009
      %v1035 = vpack.c.bf16 %v1010, %v1010
      %v1036 = vpack.c.bf16 %v1011, %v1011
      %v1037 = vpack.c.bf16 %v1012, %v1012
      %v1038 = vpack.c.bf16 %v1013, %v1013
      %v1039 = vpack.c.bf16 %v1014, %v1014
      %v1040 = vpack.c.bf16 %v1015, %v1015
      %v1041 = vpack.c.bf16 %v1016, %v1016
      %v1042 = vpack.c.bf16 %v1017, %v1017
      %v1043 = vpack.c.bf16 %v1018, %v1018
      %v1044 = vpack.c.bf16 %v1019, %v1019
      %v1045 = vpack.c.bf16 %v1020, %v1020
      %v1046 = vpack.c.bf16 %v1021, %v1021
      %v1047 = vpack.c.bf16 %v1022, %v1022
      %v1048 = vpack.c.bf16 %v1023, %v1023
      %v1049 = vpack.c.bf16 %v1024, %v1024
      %v1050 = vpack.c.bf16 %v1025, %v1025
      %1051 = vst [vmem:[%s172] sm:$0xf] %v1026
      %1052 = vst [vmem:[%s172 + $0x4] sm:$0xf] %v1027
      %1053 = vst [vmem:[%s172 + $0x8] sm:$0xf] %v1028
      %1054 = vst [vmem:[%s172 + $0xc] sm:$0xf] %v1029
      %1055 = vst [vmem:[%s172 + $0x10] sm:$0xf] %v1030
      %1056 = vst [vmem:[%s172 + $0x14] sm:$0xf] %v1031
      %1057 = vst [vmem:[%s172 + $0x18] sm:$0xf] %v1032
      %1058 = vst [vmem:[%s172 + $0x1c] sm:$0xf] %v1033
      %1059 = vst [vmem:[%s172 + $0x20] sm:$0xf] %v1034
      %1060 = vst [vmem:[%s172 + $0x24] sm:$0xf] %v1035
      %1061 = vst [vmem:[%s172 + $0x28] sm:$0xf] %v1036
      %1062 = vst [vmem:[%s172 + $0x2c] sm:$0xf] %v1037
      %1063 = vst [vmem:[%s172 + $0x30] sm:$0xf] %v1038
      %1064 = vst [vmem:[%s172 + $0x34] sm:$0xf] %v1039
      %1065 = vst [vmem:[%s172 + $0x38] sm:$0xf] %v1040
      %1066 = vst [vmem:[%s172 + $0x3c] sm:$0xf] %v1041
      %1067 = vst [vmem:[%s172 + $0x40] sm:$0xf] %v1042
      %1068 = vst [vmem:[%s172 + $0x44] sm:$0xf] %v1043
      %1069 = vst [vmem:[%s172 + $0x48] sm:$0xf] %v1044
      %1070 = vst [vmem:[%s172 + $0x4c] sm:$0xf] %v1045
      %1071 = vst [vmem:[%s172 + $0x50] sm:$0xf] %v1046
      %1072 = vst [vmem:[%s172 + $0x54] sm:$0xf] %v1047
      %1073 = vst [vmem:[%s172 + $0x58] sm:$0xf] %v1048
      %1074 = vst [vmem:[%s172 + $0x5c] sm:$0xf] %v1049
      %1075 = vst [vmem:[%s172 + $0x60] sm:$0xf] %v1050
      %s1076 = smul.u32 25, %s14
      %p1077 = scmp.lt.s32.totalorder %s1076, 49
      %s1078 = scalar_select %p1077, %s1076, 49
      %s1079 = smul.addr %s1078, 4
      %s1080 = scalar_lea.vmem %s3, %s1079
      // Predicated region
      $region33: #{dann_forward.2} parent=31 // pred_check
        %p1081 = pneg %p100
      $region34: #{dann_forward.2} parent=31 // pred_check_branch
        %1083 = sbr.rel (%p1081) target = $region36
      $region35: #{dann_forward.2} parent=31 // pred_region
        %s1084 = smul.u32 25, %s14
      $region36: #{dann_forward.2} parent=31 // pred_fallthru
        _
    $region32: #{dann_forward.2} parent=5 // pred_fallthru
      _
    %p1085 = scmp.le.s32.totalorder 2, %s9
    // Predicated region
    $region37: #{dann_forward.2} parent=5 // pred_check
      %p1086 = pneg %p1085
    $region38: #{dann_forward.2} parent=5 // pred_check_branch
      %1088 = sbr.rel (%p1086) target = $region40
    $region39: #{dann_forward.2} parent=5 // pred_region
      %s1089 = ssub.s32 %s9, 2
      // Predicated region
      $region41: #{dann_forward.2} parent=39 // pred_check
        %p1090 = pneg %p106
      $region42: #{dann_forward.2} parent=39 // pred_check_branch
        %1092 = sbr.rel (%p1090) target = $region44
      $region43: #{dann_forward.2} parent=39 // pred_region
        %s1093 = smul.u32 25, %s15
        %p1094 = scmp.lt.s32.totalorder %s1093, 49
        %s1095 = scalar_select %p1094, %s1093, 49
        %s1096 = smul.addr %s1095, 4
        %s1097 = scalar_lea.vmem %s3, %s1096
      $region44: #{dann_forward.2} parent=39 // pred_fallthru
        _
    $region40: #{dann_forward.2} parent=5 // pred_fallthru
      _
  $region6: #{dann_forward.2} parent=0 // loop_footer
    %s13 = sadd.s32 1, %s9
  $region7: #{dann_forward.2} parent=0 // loop_footer_branch
    %8 = sbr.rel target = $region3
  $region8: #{dann_forward.2} parent=0 // loop_exit
    _

// kernel: dann_forward.3
$region0: #{dann_forward.3}
  #allocation0 [shape = 'u32[]', space=smem, size = 0x4, offset = 0x4, fixed_abs, tag = 'smem constant byte address 0x4 - core index']
  #allocation1 [shape = 'u32[72,128]{1,0:T(1,128)}', space=vmem, size = 0x9000, scoped, tag = 'internal scratch']
  %s0 = inlined_call_operand.vmem [shape: bf16[1600,256], index: 0, kind: input, shape index: {}]
  %s1 = inlined_call_operand.vmem [shape: bf16[256,128], index: 1, kind: input, shape index: {}]
  %s2 = inlined_call_operand.vmem [shape: f32[1,128], index: 2, kind: input, shape index: {}]
  %s3 = inlined_call_operand.vmem [shape: bf16[25,128,128], index: 3, kind: input, shape index: {}]
  %s4 = inlined_call_operand.vmem [shape: f32[1,128], index: 4, kind: input, shape index: {}]
  %s5 = inlined_call_operand.vmem [shape: bf16[128,256], index: 5, kind: input, shape index: {}]
  %s6 = inlined_call_operand.vmem [shape: f32[1,256], index: 6, kind: input, shape index: {}]
  %s7 = inlined_call_operand.vmem [shape: bf16[256,128], index: 7, kind: input, shape index: {}]
  %s8 = inlined_call_operand.vmem [shape: f32[1,128], index: 8, kind: input, shape index: {}]
  %s9 = inlined_call_operand.vmem [shape: f32[16,128], index: 9, kind: output, shape index: {}]
  %s10 = sld [smem:[#allocation0]]
  $region69: #{dann_forward.3} parent=0
    _
  %s12 = ssub.s32 1, %s10
  %s13 = scalar_select 0, %s12, %s10
  loop: start=0, step=1, limit=4
  $region2: #{dann_forward.3} parent=0 // loop_pre_header
    _
  $region3: #{dann_forward.3} parent=0 // loop_header
    %s15 = sphi 0, %s19
    %p16 = scmp.ge.s32.totalorder %s15, 4
    %s25 = sphi 0, %s27
    %s28 = sphi 0, %s25
    %s29 = sphi 0, %s28
    %s45 = sphi 0, %s29
    %s49 = sphi 0, %s49
    %s51 = sphi 0, %s49
    %s52 = sphi 0, %s51
    %s66 = sphi 0, %s52
    %s70 = sphi 0, %s70
    %s72 = sphi 0, %s70
    %s73 = sphi 0, %s72
    %s87 = sphi 0, %s73
    %s91 = sphi 0, %s91
    %s93 = sphi 0, %s91
    %s94 = sphi 0, %s93
    %s108 = sphi 0, %s94
    %s112 = sphi 0, %s112
    %s114 = sphi 0, %s112
    %s115 = sphi 0, %s114
    %s129 = sphi 0, %s115
    %s133 = sphi 0, %s133
    %s135 = sphi 0, %s133
    %s136 = sphi 0, %s135
    %s150 = sphi 0, %s136
    %s154 = sphi 0, %s154
    %s156 = sphi 0, %s154
    %s157 = sphi 0, %s156
    %s171 = sphi 0, %s157
    %s175 = sphi 0, %s175
    %s177 = sphi 0, %s175
    %s178 = sphi 0, %s177
    %s192 = sphi 0, %s178
    %s196 = sphi 0, %s196
    %s198 = sphi 0, %s196
    %s199 = sphi 0, %s198
    %s213 = sphi 0, %s199
    %s219 = sphi 0, %s221
    %s222 = sphi 0, %s219
    %s223 = sphi 0, %s222
    %s239 = sphi 0, %s223
  $region4: #{dann_forward.3} parent=0 // loop_header_branch
    %18 = sbr.rel (%p16) target = $region8
  $region5: #{dann_forward.3} parent=0 // loop_body
    %s20 = ssub.s32 %s15, 1
    %s21 = ssub.s32 %s15, 2
    %s22 = sadd.s32 %s15, 1
    %s23 = ssub.s32 %s15, %s22
    %p24 = scmp.eq.s32.totalorder %s23, 0
    %s26 = sadd.s32 %s25, 1
    %s27 = scalar_select %p24, %s25, %s26
    %p30 = pneg %p24
    %p31 = scmp.eq.s32.totalorder %s15, 1
    %p32 = por %p30, %p31
    %p33 = scmp.ne.s32.totalorder %s25, %s28
    %p34 = scmp.eq.s32.totalorder %s15, 0
    %p35 = por %p33, %p34
    %p36 = scmp.ne.s32.totalorder %s25, %s28
    %p37 = scmp.eq.s32.totalorder %s20, 1
    %p38 = por %p36, %p37
    %p39 = scmp.ne.s32.totalorder %s28, %s29
    %p40 = scmp.eq.s32.totalorder %s20, 0
    %p41 = por %p39, %p40
    %p42 = scmp.ne.s32.totalorder %s28, %s29
    %p43 = scmp.eq.s32.totalorder %s21, 1
    %p44 = por %p42, %p43
    %p46 = scmp.ne.s32.totalorder %s29, %s45
    %p47 = scmp.eq.s32.totalorder %s21, 0
    %p48 = por %p46, %p47
    %s50 = sadd.s32 %s49, 1
    %p53 = scmp.eq.s32.totalorder %s15, 1
    %p54 = scmp.ne.s32.totalorder %s49, %s51
    %p55 = scmp.eq.s32.totalorder %s15, 0
    %p56 = por %p54, %p55
    %p57 = scmp.ne.s32.totalorder %s49, %s51
    %p58 = scmp.eq.s32.totalorder %s20, 1
    %p59 = por %p57, %p58
    %p60 = scmp.ne.s32.totalorder %s51, %s52
    %p61 = scmp.eq.s32.totalorder %s20, 0
    %p62 = por %p60, %p61
    %p63 = scmp.ne.s32.totalorder %s51, %s52
    %p64 = scmp.eq.s32.totalorder %s21, 1
    %p65 = por %p63, %p64
    %p67 = scmp.ne.s32.totalorder %s52, %s66
    %p68 = scmp.eq.s32.totalorder %s21, 0
    %p69 = por %p67, %p68
    %s71 = sadd.s32 %s70, 1
    %p74 = scmp.eq.s32.totalorder %s15, 1
    %p75 = scmp.ne.s32.totalorder %s70, %s72
    %p76 = scmp.eq.s32.totalorder %s15, 0
    %p77 = por %p75, %p76
    %p78 = scmp.ne.s32.totalorder %s70, %s72
    %p79 = scmp.eq.s32.totalorder %s20, 1
    %p80 = por %p78, %p79
    %p81 = scmp.ne.s32.totalorder %s72, %s73
    %p82 = scmp.eq.s32.totalorder %s20, 0
    %p83 = por %p81, %p82
    %p84 = scmp.ne.s32.totalorder %s72, %s73
    %p85 = scmp.eq.s32.totalorder %s21, 1
    %p86 = por %p84, %p85
    %p88 = scmp.ne.s32.totalorder %s73, %s87
    %p89 = scmp.eq.s32.totalorder %s21, 0
    %p90 = por %p88, %p89
    %s92 = sadd.s32 %s91, 1
    %p95 = scmp.eq.s32.totalorder %s15, 1
    %p96 = scmp.ne.s32.totalorder %s91, %s93
    %p97 = scmp.eq.s32.totalorder %s15, 0
    %p98 = por %p96, %p97
    %p99 = scmp.ne.s32.totalorder %s91, %s93
    %p100 = scmp.eq.s32.totalorder %s20, 1
    %p101 = por %p99, %p100
    %p102 = scmp.ne.s32.totalorder %s93, %s94
    %p103 = scmp.eq.s32.totalorder %s20, 0
    %p104 = por %p102, %p103
    %p105 = scmp.ne.s32.totalorder %s93, %s94
    %p106 = scmp.eq.s32.totalorder %s21, 1
    %p107 = por %p105, %p106
    %p109 = scmp.ne.s32.totalorder %s94, %s108
    %p110 = scmp.eq.s32.totalorder %s21, 0
    %p111 = por %p109, %p110
    %s113 = sadd.s32 %s112, 1
    %p116 = scmp.eq.s32.totalorder %s15, 1
    %p117 = scmp.ne.s32.totalorder %s112, %s114
    %p118 = scmp.eq.s32.totalorder %s15, 0
    %p119 = por %p117, %p118
    %p120 = scmp.ne.s32.totalorder %s112, %s114
    %p121 = scmp.eq.s32.totalorder %s20, 1
    %p122 = por %p120, %p121
    %p123 = scmp.ne.s32.totalorder %s114, %s115
    %p124 = scmp.eq.s32.totalorder %s20, 0
    %p125 = por %p123, %p124
    %p126 = scmp.ne.s32.totalorder %s114, %s115
    %p127 = scmp.eq.s32.totalorder %s21, 1
    %p128 = por %p126, %p127
    %p130 = scmp.ne.s32.totalorder %s115, %s129
    %p131 = scmp.eq.s32.totalorder %s21, 0
    %p132 = por %p130, %p131
    %s134 = sadd.s32 %s133, 1
    %p137 = scmp.eq.s32.totalorder %s15, 1
    %p138 = scmp.ne.s32.totalorder %s133, %s135
    %p139 = scmp.eq.s32.totalorder %s15, 0
    %p140 = por %p138, %p139
    %p141 = scmp.ne.s32.totalorder %s133, %s135
    %p142 = scmp.eq.s32.totalorder %s20, 1
    %p143 = por %p141, %p142
    %p144 = scmp.ne.s32.totalorder %s135, %s136
    %p145 = scmp.eq.s32.totalorder %s20, 0
    %p146 = por %p144, %p145
    %p147 = scmp.ne.s32.totalorder %s135, %s136
    %p148 = scmp.eq.s32.totalorder %s21, 1
    %p149 = por %p147, %p148
    %p151 = scmp.ne.s32.totalorder %s136, %s150
    %p152 = scmp.eq.s32.totalorder %s21, 0
    %p153 = por %p151, %p152
    %s155 = sadd.s32 %s154, 1
    %p158 = scmp.eq.s32.totalorder %s15, 1
    %p159 = scmp.ne.s32.totalorder %s154, %s156
    %p160 = scmp.eq.s32.totalorder %s15, 0
    %p161 = por %p159, %p160
    %p162 = scmp.ne.s32.totalorder %s154, %s156
    %p163 = scmp.eq.s32.totalorder %s20, 1
    %p164 = por %p162, %p163
    %p165 = scmp.ne.s32.totalorder %s156, %s157
    %p166 = scmp.eq.s32.totalorder %s20, 0
    %p167 = por %p165, %p166
    %p168 = scmp.ne.s32.totalorder %s156, %s157
    %p169 = scmp.eq.s32.totalorder %s21, 1
    %p170 = por %p168, %p169
    %p172 = scmp.ne.s32.totalorder %s157, %s171
    %p173 = scmp.eq.s32.totalorder %s21, 0
    %p174 = por %p172, %p173
    %s176 = sadd.s32 %s175, 1
    %p179 = scmp.eq.s32.totalorder %s15, 1
    %p180 = scmp.ne.s32.totalorder %s175, %s177
    %p181 = scmp.eq.s32.totalorder %s15, 0
    %p182 = por %p180, %p181
    %p183 = scmp.ne.s32.totalorder %s175, %s177
    %p184 = scmp.eq.s32.totalorder %s20, 1
    %p185 = por %p183, %p184
    %p186 = scmp.ne.s32.totalorder %s177, %s178
    %p187 = scmp.eq.s32.totalorder %s20, 0
    %p188 = por %p186, %p187
    %p189 = scmp.ne.s32.totalorder %s177, %s178
    %p190 = scmp.eq.s32.totalorder %s21, 1
    %p191 = por %p189, %p190
    %p193 = scmp.ne.s32.totalorder %s178, %s192
    %p194 = scmp.eq.s32.totalorder %s21, 0
    %p195 = por %p193, %p194
    %s197 = sadd.s32 %s196, 1
    %p200 = scmp.eq.s32.totalorder %s15, 1
    %p201 = scmp.ne.s32.totalorder %s196, %s198
    %p202 = scmp.eq.s32.totalorder %s15, 0
    %p203 = por %p201, %p202
    %p204 = scmp.ne.s32.totalorder %s196, %s198
    %p205 = scmp.eq.s32.totalorder %s20, 1
    %p206 = por %p204, %p205
    %p207 = scmp.ne.s32.totalorder %s198, %s199
    %p208 = scmp.eq.s32.totalorder %s20, 0
    %p209 = por %p207, %p208
    %p210 = scmp.ne.s32.totalorder %s198, %s199
    %p211 = scmp.eq.s32.totalorder %s21, 1
    %p212 = por %p210, %p211
    %p214 = scmp.ne.s32.totalorder %s199, %s213
    %p215 = scmp.eq.s32.totalorder %s21, 0
    %p216 = por %p214, %p215
    %s217 = ssub.s32 %s15, %s22
    %p218 = scmp.eq.s32.totalorder %s217, 0
    %s220 = sadd.s32 %s219, 1
    %s221 = scalar_select %p218, %s219, %s220
    %p224 = pneg %p218
    %p225 = scmp.eq.s32.totalorder %s15, 1
    %p226 = por %p224, %p225
    %p227 = scmp.ne.s32.totalorder %s219, %s222
    %p228 = scmp.eq.s32.totalorder %s15, 0
    %p229 = por %p227, %p228
    %p230 = scmp.ne.s32.totalorder %s219, %s222
    %p231 = scmp.eq.s32.totalorder %s20, 1
    %p232 = por %p230, %p231
    %p233 = scmp.ne.s32.totalorder %s222, %s223
    %p234 = scmp.eq.s32.totalorder %s20, 0
    %p235 = por %p233, %p234
    %p236 = scmp.ne.s32.totalorder %s222, %s223
    %p237 = scmp.eq.s32.totalorder %s21, 1
    %p238 = por %p236, %p237
    %p240 = scmp.ne.s32.totalorder %s223, %s239
    %p241 = scmp.eq.s32.totalorder %s21, 0
    %p242 = por %p240, %p241
    %p243 = scmp.le.s32.totalorder 1, %s15
    %p244 = scmp.lt.s32.totalorder %s15, 3
    %p245 = pnand %p243, %p244
    %p246 = pneg %p245
    // Predicated region
    $region9: #{dann_forward.3} parent=5 // pred_check
      _
    $region10: #{dann_forward.3} parent=5 // pred_check_branch
      %248 = sbr.rel (%p245) target = $region12
    $region11: #{dann_forward.3} parent=5 // pred_region
      %s249 = ssub.s32 %s15, 1
      // Predicated region
      $region13: #{dann_forward.3} parent=11 // pred_check
        %p250 = pneg %p62
      $region14: #{dann_forward.3} parent=11 // pred_check_branch
        %252 = sbr.rel (%p250) target = $region16
      $region15: #{dann_forward.3} parent=11 // pred_region
        _
      $region16: #{dann_forward.3} parent=11 // pred_fallthru
        _
      // Predicated region
      $region17: #{dann_forward.3} parent=11 // pred_check
        %p253 = pneg %p83
      $region18: #{dann_forward.3} parent=11 // pred_check_branch
        %255 = sbr.rel (%p253) target = $region20
      $region19: #{dann_forward.3} parent=11 // pred_region
        _
      $region20: #{dann_forward.3} parent=11 // pred_fallthru
        _
      // Predicated region
      $region21: #{dann_forward.3} parent=11 // pred_check
        %p256 = pneg %p104
      $region22: #{dann_forward.3} parent=11 // pred_check_branch
        %258 = sbr.rel (%p256) target = $region24
      $region23: #{dann_forward.3} parent=11 // pred_region
        _
      $region24: #{dann_forward.3} parent=11 // pred_fallthru
        _
      // Predicated region
      $region25: #{dann_forward.3} parent=11 // pred_check
        %p259 = pneg %p125
      $region26: #{dann_forward.3} parent=11 // pred_check_branch
        %261 = sbr.rel (%p259) target = $region28
      $region27: #{dann_forward.3} parent=11 // pred_region
        _
      $region28: #{dann_forward.3} parent=11 // pred_fallthru
        _
      // Predicated region
      $region29: #{dann_forward.3} parent=11 // pred_check
        %p262 = pneg %p146
      $region30: #{dann_forward.3} parent=11 // pred_check_branch
        %264 = sbr.rel (%p262) target = $region32
      $region31: #{dann_forward.3} parent=11 // pred_region
        _
      $region32: #{dann_forward.3} parent=11 // pred_fallthru
        _
      // Predicated region
      $region33: #{dann_forward.3} parent=11 // pred_check
        %p265 = pneg %p167
      $region34: #{dann_forward.3} parent=11 // pred_check_branch
        %267 = sbr.rel (%p265) target = $region36
      $region35: #{dann_forward.3} parent=11 // pred_region
        _
      $region36: #{dann_forward.3} parent=11 // pred_fallthru
        _
      // Predicated region
      $region37: #{dann_forward.3} parent=11 // pred_check
        %p268 = pneg %p188
      $region38: #{dann_forward.3} parent=11 // pred_check_branch
        %270 = sbr.rel (%p268) target = $region40
      $region39: #{dann_forward.3} parent=11 // pred_region
        _
      $region40: #{dann_forward.3} parent=11 // pred_fallthru
        _
      // Predicated region
      $region41: #{dann_forward.3} parent=11 // pred_check
        %p271 = pneg %p209
      $region42: #{dann_forward.3} parent=11 // pred_check_branch
        %273 = sbr.rel (%p271) target = $region44
      $region43: #{dann_forward.3} parent=11 // pred_region
        _
      $region44: #{dann_forward.3} parent=11 // pred_fallthru
        _
    $region12: #{dann_forward.3} parent=5 // pred_fallthru
      _
    %p274 = scmp.lt.s32.totalorder %s15, 2
    // Predicated region
    $region45: #{dann_forward.3} parent=5 // pred_check
      %p275 = pneg %p274
    $region46: #{dann_forward.3} parent=5 // pred_check_branch
      %277 = sbr.rel (%p275) target = $region48
    $region47: #{dann_forward.3} parent=5 // pred_region
      // Predicated region
      $region49: #{dann_forward.3} parent=47 // pred_check
        %p278 = pneg %p35
      $region50: #{dann_forward.3} parent=47 // pred_check_branch
        %280 = sbr.rel (%p278) target = $region52
      $region51: #{dann_forward.3} parent=47 // pred_region
        %s281 = smul.u32 100, %s15
        %p282 = scmp.lt.s32.totalorder %s281, 199
        %s283 = scalar_select %p282, %s281, 199
        %s284 = smul.addr %s283, 2
        %s285 = smul.addr %s284, 4
        %s286 = scalar_lea.vmem %s0, %s285
        %s287 = smul.u32 100, %s15
      $region52: #{dann_forward.3} parent=47 // pred_fallthru
        _
    $region48: #{dann_forward.3} parent=5 // pred_fallthru
      _
    %p288 = scmp.le.s32.totalorder 1, %s15
    %p289 = scmp.lt.s32.totalorder %s15, 3
    %p290 = pnand %p288, %p289
    %p291 = pneg %p290
    // Predicated region
    $region53: #{dann_forward.3} parent=5 // pred_check
      _
    $region54: #{dann_forward.3} parent=5 // pred_check_branch
      %293 = sbr.rel (%p290) target = $region56
    $region55: #{dann_forward.3} parent=5 // pred_region
      %s294 = ssub.s32 %s15, 1
      %s295 = smul.u32 100, %s20
      %p296 = scmp.lt.s32.totalorder %s295, 199
      %s297 = scalar_select %p296, %s295, 199
      %s298 = smul.addr %s297, 2
      %s299 = smul.addr %s298, 4
      %s300 = scalar_lea.vmem %s0, %s299
      %p301 = pneg %p41
      %p302 = pneg %p38
      %p303 = pneg %p62
      %p304 = pneg %p59
      %p305 = pneg %p83
      %p306 = pneg %p80
      %p307 = pneg %p104
      %p308 = pneg %p101
      %p309 = pneg %p125
      %p310 = pneg %p122
      %p311 = pneg %p146
      %p312 = pneg %p143
      %p313 = pneg %p167
      %p314 = pneg %p164
      %p315 = pneg %p188
      %p316 = pneg %p185
      %p317 = pneg %p209
      %p318 = pneg %p206
      %p319 = pneg %p235
      %p320 = pneg %p232
      %p321 = scmp.lt.s32.totalorder %s20, 1
      %s322 = scalar_select %p321, %s20, 1
      %s323 = smul.addr %s322, 8
      %s324 = scalar_lea.vmem %s9, %s323
      %s325 = smul.u32 100, %s20
      %p326 = scmp.lt.s32.totalorder %s325, 199
      %s327 = scalar_select %p326, %s325, 199
      %s328 = smul.addr %s327, 2
      %s329 = smul.addr %s328, 4
      %s330 = scalar_lea.vmem %s0, %s329
      %s331 = smul.u32 100, %s20
      %p332 = scmp.lt.s32.totalorder %s20, 1
      %s333 = scalar_select %p332, %s20, 1
      %s334 = smul.addr %s333, 8
      %s335 = scalar_lea.vmem %s9, %s334
      %v336 = vld [vmem:[%s330] sm:$0xff]
      %v337 = vld [vmem:[%s330 + $0x8] sm:$0xff]
      %v338 = vld [vmem:[%s330 + $0x10] sm:$0xff]
      %v339 = vld [vmem:[%s330 + $0x18] sm:$0xff]
      %v340 = vld [vmem:[%s330 + $0x20] sm:$0xff]
      %v341 = vld [vmem:[%s330 + $0x28] sm:$0xff]
      %v342 = vld [vmem:[%s330 + $0x30] sm:$0xff]
      %v343 = vld [vmem:[%s330 + $0x38] sm:$0xff]
      %v344 = vld [vmem:[%s330 + $0x40] sm:$0xff]
      %v345 = vld [vmem:[%s330 + $0x48] sm:$0xff]
      %v346 = vld [vmem:[%s330 + $0x50] sm:$0xff]
      %v347 = vld [vmem:[%s330 + $0x58] sm:$0xff]
      %v348 = vld [vmem:[%s330 + $0x60] sm:$0xff]
      %v349 = vld [vmem:[%s330 + $0x68] sm:$0xff]
      %v350 = vld [vmem:[%s330 + $0x70] sm:$0xff]
      %v351 = vld [vmem:[%s330 + $0x78] sm:$0xff]
      %v352 = vld [vmem:[%s330 + $0x80] sm:$0xff]
      %v353 = vld [vmem:[%s330 + $0x88] sm:$0xff]
      %v354 = vld [vmem:[%s330 + $0x90] sm:$0xff]
      %v355 = vld [vmem:[%s330 + $0x98] sm:$0xff]
      %v356 = vld [vmem:[%s330 + $0xa0] sm:$0xff]
      %v357 = vld [vmem:[%s330 + $0xa8] sm:$0xff]
      %v358 = vld [vmem:[%s330 + $0xb0] sm:$0xff]
      %v359 = vld [vmem:[%s330 + $0xb8] sm:$0xff]
      %v360 = vld [vmem:[%s330 + $0xc0] sm:$0xff]
      %v361 = vld [vmem:[%s330 + $0xc8] sm:$0xff]
      %v362 = vld [vmem:[%s330 + $0xd0] sm:$0xff]
      %v363 = vld [vmem:[%s330 + $0xd8] sm:$0xff]
      %v364 = vld [vmem:[%s330 + $0xe0] sm:$0xff]
      %v365 = vld [vmem:[%s330 + $0xe8] sm:$0xff]
      %v366 = vld [vmem:[%s330 + $0xf0] sm:$0xff]
      %v367 = vld [vmem:[%s330 + $0xf8] sm:$0xff]
      %v368 = vld [vmem:[%s330 + $0x100] sm:$0xff]
      %v369 = vld [vmem:[%s330 + $0x108] sm:$0xff]
      %v370 = vld [vmem:[%s330 + $0x110] sm:$0xff]
      %v371 = vld [vmem:[%s330 + $0x118] sm:$0xff]
      %v372 = vld [vmem:[%s330 + $0x120] sm:$0xff]
      %v373 = vld [vmem:[%s330 + $0x128] sm:$0xff]
      %v374 = vld [vmem:[%s330 + $0x130] sm:$0xff]
      %v375 = vld [vmem:[%s330 + $0x138] sm:$0xff]
      %v376 = vld [vmem:[%s330 + $0x140] sm:$0xff]
      %v377 = vld [vmem:[%s330 + $0x148] sm:$0xff]
      %v378 = vld [vmem:[%s330 + $0x150] sm:$0xff]
      %v379 = vld [vmem:[%s330 + $0x158] sm:$0xff]
      %v380 = vld [vmem:[%s330 + $0x160] sm:$0xff]
      %v381 = vld [vmem:[%s330 + $0x168] sm:$0xff]
      %v382 = vld [vmem:[%s330 + $0x170] sm:$0xff]
      %v383 = vld [vmem:[%s330 + $0x178] sm:$0xff]
      %v384 = vld [vmem:[%s330 + $0x180] sm:$0xff]
      %v385 = vld [vmem:[%s330 + $0x188] sm:$0xff]
      %v386 = vld [vmem:[%s330 + $0x190] sm:$0xff]
      %v387 = vld [vmem:[%s330 + $0x198] sm:$0xff]
      %v388 = vld [vmem:[%s330 + $0x1a0] sm:$0xff]
      %v389 = vld [vmem:[%s330 + $0x1a8] sm:$0xff]
      %v390 = vld [vmem:[%s330 + $0x1b0] sm:$0xff]
      %v391 = vld [vmem:[%s330 + $0x1b8] sm:$0xff]
      %v392 = vld [vmem:[%s330 + $0x1c0] sm:$0xff]
      %v393 = vld [vmem:[%s330 + $0x1c8] sm:$0xff]
      %v394 = vld [vmem:[%s330 + $0x1d0] sm:$0xff]
      %v395 = vld [vmem:[%s330 + $0x1d8] sm:$0xff]
      %v396 = vld [vmem:[%s330 + $0x1e0] sm:$0xff]
      %v397 = vld [vmem:[%s330 + $0x1e8] sm:$0xff]
      %v398 = vld [vmem:[%s330 + $0x1f0] sm:$0xff]
      %v399 = vld [vmem:[%s330 + $0x1f8] sm:$0xff]
      %v400 = vld [vmem:[%s330 + $0x200] sm:$0xff]
      %v401 = vld [vmem:[%s330 + $0x208] sm:$0xff]
      %v402 = vld [vmem:[%s330 + $0x210] sm:$0xff]
      %v403 = vld [vmem:[%s330 + $0x218] sm:$0xff]
      %v404 = vld [vmem:[%s330 + $0x220] sm:$0xff]
      %v405 = vld [vmem:[%s330 + $0x228] sm:$0xff]
      %v406 = vld [vmem:[%s330 + $0x230] sm:$0xff]
      %v407 = vld [vmem:[%s330 + $0x238] sm:$0xff]
      %v408 = vld [vmem:[%s330 + $0x240] sm:$0xff]
      %v409 = vld [vmem:[%s330 + $0x248] sm:$0xff]
      %v410 = vld [vmem:[%s330 + $0x250] sm:$0xff]
      %v411 = vld [vmem:[%s330 + $0x258] sm:$0xff]
      %v412 = vld [vmem:[%s330 + $0x260] sm:$0xff]
      %v413 = vld [vmem:[%s330 + $0x268] sm:$0xff]
      %v414 = vld [vmem:[%s330 + $0x270] sm:$0xff]
      %v415 = vld [vmem:[%s330 + $0x278] sm:$0xff]
      %v416 = vld [vmem:[%s330 + $0x280] sm:$0xff]
      %v417 = vld [vmem:[%s330 + $0x288] sm:$0xff]
      %v418 = vld [vmem:[%s330 + $0x290] sm:$0xff]
      %v419 = vld [vmem:[%s330 + $0x298] sm:$0xff]
      %v420 = vld [vmem:[%s330 + $0x2a0] sm:$0xff]
      %v421 = vld [vmem:[%s330 + $0x2a8] sm:$0xff]
      %v422 = vld [vmem:[%s330 + $0x2b0] sm:$0xff]
      %v423 = vld [vmem:[%s330 + $0x2b8] sm:$0xff]
      %v424 = vld [vmem:[%s330 + $0x2c0] sm:$0xff]
      %v425 = vld [vmem:[%s330 + $0x2c8] sm:$0xff]
      %v426 = vld [vmem:[%s330 + $0x2d0] sm:$0xff]
      %v427 = vld [vmem:[%s330 + $0x2d8] sm:$0xff]
      %v428 = vld [vmem:[%s330 + $0x2e0] sm:$0xff]
      %v429 = vld [vmem:[%s330 + $0x2e8] sm:$0xff]
      %v430 = vld [vmem:[%s330 + $0x2f0] sm:$0xff]
      %v431 = vld [vmem:[%s330 + $0x2f8] sm:$0xff]
      %v432 = vld [vmem:[%s330 + $0x300] sm:$0xff]
      %v433 = vld [vmem:[%s330 + $0x308] sm:$0xff]
      %v434 = vld [vmem:[%s330 + $0x310] sm:$0xff]
      %v435 = vld [vmem:[%s330 + $0x318] sm:$0xff]
      %v436 = vld [vmem:[%s1] sm:$0xf]
      %v437 = vld [vmem:[%s1 + $0x4] sm:$0xf]
      %v438 = vld [vmem:[%s1 + $0x8] sm:$0xf]
      %v439 = vld [vmem:[%s1 + $0xc] sm:$0xf]
      %v440 = vld [vmem:[%s1 + $0x10] sm:$0xf]
      %v441 = vld [vmem:[%s1 + $0x14] sm:$0xf]
      %v442 = vld [vmem:[%s1 + $0x18] sm:$0xf]
      %v443 = vld [vmem:[%s1 + $0x1c] sm:$0xf]
      %v444 = vld [vmem:[%s1 + $0x20] sm:$0xf]
      %v445 = vld [vmem:[%s1 + $0x24] sm:$0xf]
      %v446 = vld [vmem:[%s1 + $0x28] sm:$0xf]
      %v447 = vld [vmem:[%s1 + $0x2c] sm:$0xf]
      %v448 = vld [vmem:[%s1 + $0x30] sm:$0xf]
      %v449 = vld [vmem:[%s1 + $0x34] sm:$0xf]
      %v450 = vld [vmem:[%s1 + $0x38] sm:$0xf]
      %v451 = vld [vmem:[%s1 + $0x3c] sm:$0xf]
      %v452 = vld [vmem:[%s1 + $0x40] sm:$0xf]
      %v453 = vld [vmem:[%s1 + $0x44] sm:$0xf]
      %v454 = vld [vmem:[%s1 + $0x48] sm:$0xf]
      %v455 = vld [vmem:[%s1 + $0x4c] sm:$0xf]
      %v456 = vld [vmem:[%s1 + $0x50] sm:$0xf]
      %v457 = vld [vmem:[%s1 + $0x54] sm:$0xf]
      %v458 = vld [vmem:[%s1 + $0x58] sm:$0xf]
      %v459 = vld [vmem:[%s1 + $0x5c] sm:$0xf]
      %v460 = vld [vmem:[%s1 + $0x60] sm:$0xf]
      %v461 = vld [vmem:[%s1 + $0x64] sm:$0xf]
      %v462 = vld [vmem:[%s1 + $0x68] sm:$0xf]
      %v463 = vld [vmem:[%s1 + $0x6c] sm:$0xf]
      %v464 = vld [vmem:[%s1 + $0x70] sm:$0xf]
      %v465 = vld [vmem:[%s1 + $0x74] sm:$0xf]
      %v466 = vld [vmem:[%s1 + $0x78] sm:$0xf]
      %v467 = vld [vmem:[%s1 + $0x7c] sm:$0xf]
      %v568 = vunpack.c.l.b16 %v336
      %v569 = vunpack.c.h.b16 %v336
      %v570 = vunpack.c.l.b16 %v337
      %v571 = vunpack.c.h.b16 %v337
      %v572 = vunpack.c.l.b16 %v338
      %v573 = vunpack.c.h.b16 %v338
      %v574 = vunpack.c.l.b16 %v339
      %v575 = vunpack.c.h.b16 %v339
      %v576 = vunpack.c.l.b16 %v340
      %v577 = vunpack.c.h.b16 %v340
      %v578 = vunpack.c.l.b16 %v341
      %v579 = vunpack.c.h.b16 %v341
      %v580 = vunpack.c.l.b16 %v342
      %v581 = vunpack.c.h.b16 %v342
      %v582 = vunpack.c.l.b16 %v343
      %v583 = vunpack.c.h.b16 %v343
      %v584 = vunpack.c.l.b16 %v344
      %v585 = vunpack.c.h.b16 %v344
      %v586 = vunpack.c.l.b16 %v345
      %v587 = vunpack.c.h.b16 %v345
      %v588 = vunpack.c.l.b16 %v346
      %v589 = vunpack.c.h.b16 %v346
      %v590 = vunpack.c.l.b16 %v347
      %v591 = vunpack.c.h.b16 %v347
      %v592 = vunpack.c.l.b16 %v348
      %v593 = vunpack.c.h.b16 %v348
      %v594 = vunpack.c.l.b16 %v349
      %v595 = vunpack.c.h.b16 %v349
      %v596 = vunpack.c.l.b16 %v350
      %v597 = vunpack.c.h.b16 %v350
      %v598 = vunpack.c.l.b16 %v351
      %v599 = vunpack.c.h.b16 %v351
      %v600 = vunpack.c.l.b16 %v352
      %v601 = vunpack.c.h.b16 %v352
      %v602 = vunpack.c.l.b16 %v353
      %v603 = vunpack.c.h.b16 %v353
      %v604 = vunpack.c.l.b16 %v354
      %v605 = vunpack.c.h.b16 %v354
      %v606 = vunpack.c.l.b16 %v355
      %v607 = vunpack.c.h.b16 %v355
      %v608 = vunpack.c.l.b16 %v356
      %v609 = vunpack.c.h.b16 %v356
      %v610 = vunpack.c.l.b16 %v357
      %v611 = vunpack.c.h.b16 %v357
      %v612 = vunpack.c.l.b16 %v358
      %v613 = vunpack.c.h.b16 %v358
      %v614 = vunpack.c.l.b16 %v359
      %v615 = vunpack.c.h.b16 %v359
      %v616 = vunpack.c.l.b16 %v360
      %v617 = vunpack.c.h.b16 %v360
      %v618 = vunpack.c.l.b16 %v361
      %v619 = vunpack.c.h.b16 %v361
      %v620 = vunpack.c.l.b16 %v362
      %v621 = vunpack.c.h.b16 %v362
      %v622 = vunpack.c.l.b16 %v363
      %v623 = vunpack.c.h.b16 %v363
      %v624 = vunpack.c.l.b16 %v364
      %v625 = vunpack.c.h.b16 %v364
      %v626 = vunpack.c.l.b16 %v365
      %v627 = vunpack.c.h.b16 %v365
      %v628 = vunpack.c.l.b16 %v366
      %v629 = vunpack.c.h.b16 %v366
      %v630 = vunpack.c.l.b16 %v367
      %v631 = vunpack.c.h.b16 %v367
      %v632 = vunpack.c.l.b16 %v368
      %v633 = vunpack.c.h.b16 %v368
      %v634 = vunpack.c.l.b16 %v369
      %v635 = vunpack.c.h.b16 %v369
      %v636 = vunpack.c.l.b16 %v370
      %v637 = vunpack.c.h.b16 %v370
      %v638 = vunpack.c.l.b16 %v371
      %v639 = vunpack.c.h.b16 %v371
      %v640 = vunpack.c.l.b16 %v372
      %v641 = vunpack.c.h.b16 %v372
      %v642 = vunpack.c.l.b16 %v373
      %v643 = vunpack.c.h.b16 %v373
      %v644 = vunpack.c.l.b16 %v374
      %v645 = vunpack.c.h.b16 %v374
      %v646 = vunpack.c.l.b16 %v375
      %v647 = vunpack.c.h.b16 %v375
      %v648 = vunpack.c.l.b16 %v376
      %v649 = vunpack.c.h.b16 %v376
      %v650 = vunpack.c.l.b16 %v377
      %v651 = vunpack.c.h.b16 %v377
      %v652 = vunpack.c.l.b16 %v378
      %v653 = vunpack.c.h.b16 %v378
      %v654 = vunpack.c.l.b16 %v379
      %v655 = vunpack.c.h.b16 %v379
      %v656 = vunpack.c.l.b16 %v380
      %v657 = vunpack.c.h.b16 %v380
      %v658 = vunpack.c.l.b16 %v381
      %v659 = vunpack.c.h.b16 %v381
      %v660 = vunpack.c.l.b16 %v382
      %v661 = vunpack.c.h.b16 %v382
      %v662 = vunpack.c.l.b16 %v383
      %v663 = vunpack.c.h.b16 %v383
      %v664 = vunpack.c.l.b16 %v384
      %v665 = vunpack.c.h.b16 %v384
      %v666 = vunpack.c.l.b16 %v385
      %v667 = vunpack.c.h.b16 %v385
      %v668 = vunpack.c.l.b16 %v386
      %v669 = vunpack.c.h.b16 %v386
      %v670 = vunpack.c.l.b16 %v387
      %v671 = vunpack.c.h.b16 %v387
      %v672 = vunpack.c.l.b16 %v388
      %v673 = vunpack.c.h.b16 %v388
      %v674 = vunpack.c.l.b16 %v389
      %v675 = vunpack.c.h.b16 %v389
      %v676 = vunpack.c.l.b16 %v390
      %v677 = vunpack.c.h.b16 %v390
      %v678 = vunpack.c.l.b16 %v391
      %v679 = vunpack.c.h.b16 %v391
      %v680 = vunpack.c.l.b16 %v392
      %v681 = vunpack.c.h.b16 %v392
      %v682 = vunpack.c.l.b16 %v393
      %v683 = vunpack.c.h.b16 %v393
      %v684 = vunpack.c.l.b16 %v394
      %v685 = vunpack.c.h.b16 %v394
      %v686 = vunpack.c.l.b16 %v395
      %v687 = vunpack.c.h.b16 %v395
      %v688 = vunpack.c.l.b16 %v396
      %v689 = vunpack.c.h.b16 %v396
      %v690 = vunpack.c.l.b16 %v397
      %v691 = vunpack.c.h.b16 %v397
      %v692 = vunpack.c.l.b16 %v398
      %v693 = vunpack.c.h.b16 %v398
      %v694 = vunpack.c.l.b16 %v399
      %v695 = vunpack.c.h.b16 %v399
      %v696 = vunpack.c.l.b16 %v400
      %v697 = vunpack.c.h.b16 %v400
      %v698 = vunpack.c.l.b16 %v401
      %v699 = vunpack.c.h.b16 %v401
      %v700 = vunpack.c.l.b16 %v402
      %v701 = vunpack.c.h.b16 %v402
      %v702 = vunpack.c.l.b16 %v403
      %v703 = vunpack.c.h.b16 %v403
      %v704 = vunpack.c.l.b16 %v404
      %v705 = vunpack.c.h.b16 %v404
      %v706 = vunpack.c.l.b16 %v405
      %v707 = vunpack.c.h.b16 %v405
      %v708 = vunpack.c.l.b16 %v406
      %v709 = vunpack.c.h.b16 %v406
      %v710 = vunpack.c.l.b16 %v407
      %v711 = vunpack.c.h.b16 %v407
      %v712 = vunpack.c.l.b16 %v408
      %v713 = vunpack.c.h.b16 %v408
      %v714 = vunpack.c.l.b16 %v409
      %v715 = vunpack.c.h.b16 %v409
      %v716 = vunpack.c.l.b16 %v410
      %v717 = vunpack.c.h.b16 %v410
      %v718 = vunpack.c.l.b16 %v411
      %v719 = vunpack.c.h.b16 %v411
      %v720 = vunpack.c.l.b16 %v412
      %v721 = vunpack.c.h.b16 %v412
      %v722 = vunpack.c.l.b16 %v413
      %v723 = vunpack.c.h.b16 %v413
      %v724 = vunpack.c.l.b16 %v414
      %v725 = vunpack.c.h.b16 %v414
      %v726 = vunpack.c.l.b16 %v415
      %v727 = vunpack.c.h.b16 %v415
      %v728 = vunpack.c.l.b16 %v416
      %v729 = vunpack.c.h.b16 %v416
      %v730 = vunpack.c.l.b16 %v417
      %v731 = vunpack.c.h.b16 %v417
      %v732 = vunpack.c.l.b16 %v418
      %v733 = vunpack.c.h.b16 %v418
      %v734 = vunpack.c.l.b16 %v419
      %v735 = vunpack.c.h.b16 %v419
      %v736 = vunpack.c.l.b16 %v420
      %v737 = vunpack.c.h.b16 %v420
      %v738 = vunpack.c.l.b16 %v421
      %v739 = vunpack.c.h.b16 %v421
      %v740 = vunpack.c.l.b16 %v422
      %v741 = vunpack.c.h.b16 %v422
      %v742 = vunpack.c.l.b16 %v423
      %v743 = vunpack.c.h.b16 %v423
      %v744 = vunpack.c.l.b16 %v424
      %v745 = vunpack.c.h.b16 %v424
      %v746 = vunpack.c.l.b16 %v425
      %v747 = vunpack.c.h.b16 %v425
      %v748 = vunpack.c.l.b16 %v426
      %v749 = vunpack.c.h.b16 %v426
      %v750 = vunpack.c.l.b16 %v427
      %v751 = vunpack.c.h.b16 %v427
      %v752 = vunpack.c.l.b16 %v428
      %v753 = vunpack.c.h.b16 %v428
      %v754 = vunpack.c.l.b16 %v429
      %v755 = vunpack.c.h.b16 %v429
      %v756 = vunpack.c.l.b16 %v430
      %v757 = vunpack.c.h.b16 %v430
      %v758 = vunpack.c.l.b16 %v431
      %v759 = vunpack.c.h.b16 %v431
      %v760 = vunpack.c.l.b16 %v432
      %v761 = vunpack.c.h.b16 %v432
      %v762 = vunpack.c.l.b16 %v433
      %v763 = vunpack.c.h.b16 %v433
      %v764 = vunpack.c.l.b16 %v434
      %v765 = vunpack.c.h.b16 %v434
      %v766 = vunpack.c.l.b16 %v435
      %v767 = vunpack.c.h.b16 %v435
      %v768 = vpack.c.b16 %v570, %v568
      %v769 = vpack.c.b16 %v571, %v569
      %v770 = vpack.c.b16 %v574, %v572
      %v771 = vpack.c.b16 %v575, %v573
      %v772 = vpack.c.b16 %v578, %v576
      %v773 = vpack.c.b16 %v579, %v577
      %v774 = vpack.c.b16 %v582, %v580
      %v775 = vpack.c.b16 %v583, %v581
      %v776 = vpack.c.b16 %v586, %v584
      %v777 = vpack.c.b16 %v587, %v585
      %v778 = vpack.c.b16 %v590, %v588
      %v779 = vpack.c.b16 %v591, %v589
      %v780 = vpack.c.b16 %v594, %v592
      %v781 = vpack.c.b16 %v595, %v593
      %v782 = vpack.c.b16 %v598, %v596
      %v783 = vpack.c.b16 %v599, %v597
      %v784 = vpack.c.b16 %v602, %v600
      %v785 = vpack.c.b16 %v603, %v601
      %v786 = vpack.c.b16 %v606, %v604
      %v787 = vpack.c.b16 %v607, %v605
      %v788 = vpack.c.b16 %v610, %v608
      %v789 = vpack.c.b16 %v611, %v609
      %v790 = vpack.c.b16 %v614, %v612
      %v791 = vpack.c.b16 %v615, %v613
      %v792 = vpack.c.b16 %v618, %v616
      %v793 = vpack.c.b16 %v619, %v617
      %v794 = vpack.c.b16 %v622, %v620
      %v795 = vpack.c.b16 %v623, %v621
      %v796 = vpack.c.b16 %v626, %v624
      %v797 = vpack.c.b16 %v627, %v625
      %v798 = vpack.c.b16 %v630, %v628
      %v799 = vpack.c.b16 %v631, %v629
      %v800 = vpack.c.b16 %v634, %v632
      %v801 = vpack.c.b16 %v635, %v633
      %v802 = vpack.c.b16 %v638, %v636
      %v803 = vpack.c.b16 %v639, %v637
      %v804 = vpack.c.b16 %v642, %v640
      %v805 = vpack.c.b16 %v643, %v641
      %v806 = vpack.c.b16 %v646, %v644
      %v807 = vpack.c.b16 %v647, %v645
      %v808 = vpack.c.b16 %v650, %v648
      %v809 = vpack.c.b16 %v651, %v649
      %v810 = vpack.c.b16 %v654, %v652
      %v811 = vpack.c.b16 %v655, %v653
      %v812 = vpack.c.b16 %v658, %v656
      %v813 = vpack.c.b16 %v659, %v657
      %v814 = vpack.c.b16 %v662, %v660
      %v815 = vpack.c.b16 %v663, %v661
      %v816 = vpack.c.b16 %v666, %v664
      %v817 = vpack.c.b16 %v667, %v665
      %v818 = vpack.c.b16 %v670, %v668
      %v819 = vpack.c.b16 %v671, %v669
      %v820 = vpack.c.b16 %v674, %v672
      %v821 = vpack.c.b16 %v675, %v673
      %v822 = vpack.c.b16 %v678, %v676
      %v823 = vpack.c.b16 %v679, %v677
      %v824 = vpack.c.b16 %v682, %v680
      %v825 = vpack.c.b16 %v683, %v681
      %v826 = vpack.c.b16 %v686, %v684
      %v827 = vpack.c.b16 %v687, %v685
      %v828 = vpack.c.b16 %v690, %v688
      %v829 = vpack.c.b16 %v691, %v689
      %v830 = vpack.c.b16 %v694, %v692
      %v831 = vpack.c.b16 %v695, %v693
      %v832 = vpack.c.b16 %v698, %v696
      %v833 = vpack.c.b16 %v699, %v697
      %v834 = vpack.c.b16 %v702, %v700
      %v835 = vpack.c.b16 %v703, %v701
      %v836 = vpack.c.b16 %v706, %v704
      %v837 = vpack.c.b16 %v707, %v705
      %v838 = vpack.c.b16 %v710, %v708
      %v839 = vpack.c.b16 %v711, %v709
      %v840 = vpack.c.b16 %v714, %v712
      %v841 = vpack.c.b16 %v715, %v713
      %v842 = vpack.c.b16 %v718, %v716
      %v843 = vpack.c.b16 %v719, %v717
      %v844 = vpack.c.b16 %v722, %v720
      %v845 = vpack.c.b16 %v723, %v721
      %v846 = vpack.c.b16 %v726, %v724
      %v847 = vpack.c.b16 %v727, %v725
      %v848 = vpack.c.b16 %v730, %v728
      %v849 = vpack.c.b16 %v731, %v729
      %v850 = vpack.c.b16 %v734, %v732
      %v851 = vpack.c.b16 %v735, %v733
      %v852 = vpack.c.b16 %v738, %v736
      %v853 = vpack.c.b16 %v739, %v737
      %v854 = vpack.c.b16 %v742, %v740
      %v855 = vpack.c.b16 %v743, %v741
      %v856 = vpack.c.b16 %v746, %v744
      %v857 = vpack.c.b16 %v747, %v745
      %v858 = vpack.c.b16 %v750, %v748
      %v859 = vpack.c.b16 %v751, %v749
      %v860 = vpack.c.b16 %v754, %v752
      %v861 = vpack.c.b16 %v755, %v753
      %v862 = vpack.c.b16 %v758, %v756
      %v863 = vpack.c.b16 %v759, %v757
      %v864 = vpack.c.b16 %v762, %v760
      %v865 = vpack.c.b16 %v763, %v761
      %v866 = vpack.c.b16 %v766, %v764
      %v867 = vpack.c.b16 %v767, %v765
      %v1000 = vunpack.c.l.b16 %v436
      %v1001 = vunpack.c.l.b16 %v437
      %v1002 = vunpack.c.l.b16 %v438
      %v1003 = vunpack.c.l.b16 %v439
      %v1004 = vunpack.c.l.b16 %v440
      %v1005 = vunpack.c.l.b16 %v441
      %v1006 = vunpack.c.l.b16 %v442
      %v1007 = vunpack.c.l.b16 %v443
      %v1008 = vunpack.c.l.b16 %v444
      %v1009 = vunpack.c.l.b16 %v445
      %v1010 = vunpack.c.l.b16 %v446
      %v1011 = vunpack.c.l.b16 %v447
      %v1012 = vunpack.c.l.b16 %v448
      %v1013 = vunpack.c.l.b16 %v449
      %v1014 = vunpack.c.l.b16 %v450
      %v1015 = vunpack.c.l.b16 %v451
      %v1016 = vunpack.c.l.b16 %v452
      %v1017 = vunpack.c.l.b16 %v453
      %v1018 = vunpack.c.l.b16 %v454
      %v1019 = vunpack.c.l.b16 %v455
      %v1020 = vunpack.c.l.b16 %v456
      %v1021 = vunpack.c.l.b16 %v457
      %v1022 = vunpack.c.l.b16 %v458
      %v1023 = vunpack.c.l.b16 %v459
      %v1024 = vunpack.c.l.b16 %v460
      %v1025 = vunpack.c.l.b16 %v461
      %v1026 = vunpack.c.l.b16 %v462
      %v1027 = vunpack.c.l.b16 %v463
      %v1028 = vunpack.c.l.b16 %v464
      %v1029 = vunpack.c.l.b16 %v465
      %v1030 = vunpack.c.l.b16 %v466
      %v1031 = vunpack.c.l.b16 %v467
      %v1032 = vpack.c.b16 %v1001, %v1000
      %v1033 = vpack.c.b16 %v1003, %v1002
      %v1034 = vpack.c.b16 %v1005, %v1004
      %v1035 = vpack.c.b16 %v1007, %v1006
      %v1036 = vpack.c.b16 %v1009, %v1008
      %v1037 = vpack.c.b16 %v1011, %v1010
      %v1038 = vpack.c.b16 %v1013, %v1012
      %v1039 = vpack.c.b16 %v1015, %v1014
      %v1040 = vpack.c.b16 %v1017, %v1016
      %v1041 = vpack.c.b16 %v1019, %v1018
      %v1042 = vpack.c.b16 %v1021, %v1020
      %v1043 = vpack.c.b16 %v1023, %v1022
      %v1044 = vpack.c.b16 %v1025, %v1024
      %v1045 = vpack.c.b16 %v1027, %v1026
      %v1046 = vpack.c.b16 %v1029, %v1028
      %v1047 = vpack.c.b16 %v1031, %v1030
      %1064 = vmatpush.bf16.msra.mxu0 %v1039
      %1065 = vmatpush.bf16.msra.mxu0 %v1038
      %1066 = vmatpush.bf16.msra.mxu0 %v1037
      %1067 = vmatpush.bf16.msra.mxu0 %v1036
      %1068 = vmatpush.bf16.msra.mxu0 %v1035
      %1069 = vmatpush.bf16.msra.mxu0 %v1034
      %1070 = vmatpush.bf16.msra.mxu0 %v1033
      %1071 = vmatpush.bf16.msra.mxu0 %v1032
      %1072 = vmatmul.bf16.gmra.mxu0 %v768
      %v1073 = vpop.f32.mrf.mxu0
      %v1074 = vadd.f32 0.0, %v1073
      %v1075 = vpop.f32.mrf.mxu0
      %v1076 = vadd.f32 0.0, %v1075
      %1077 = vmatmul.bf16.gmra.mxu0 %v770
      %v1078 = vpop.f32.mrf.mxu0
      %v1079 = vadd.f32 0.0, %v1078
      %v1080 = vpop.f32.mrf.mxu0
      %v1081 = vadd.f32 0.0, %v1080
      %1082 = vmatmul.bf16.gmra.mxu0 %v772
      %v1083 = vpop.f32.mrf.mxu0
      %v1084 = vadd.f32 0.0, %v1083
      %v1085 = vpop.f32.mrf.mxu0
      %v1086 = vadd.f32 0.0, %v1085
      %1087 = vmatmul.bf16.gmra.mxu0 %v774
      %v1088 = vpop.f32.mrf.mxu0
      %v1089 = vadd.f32 0.0, %v1088
      %v1090 = vpop.f32.mrf.mxu0
      %v1091 = vadd.f32 0.0, %v1090
      %1092 = vmatmul.bf16.gmra.mxu0 %v776
      %v1093 = vpop.f32.mrf.mxu0
      %v1094 = vadd.f32 0.0, %v1093
      %v1095 = vpop.f32.mrf.mxu0
      %v1096 = vadd.f32 0.0, %v1095
      %1097 = vmatmul.bf16.gmra.mxu0 %v778
      %v1098 = vpop.f32.mrf.mxu0
      %v1099 = vadd.f32 0.0, %v1098
      %v1100 = vpop.f32.mrf.mxu0
      %v1101 = vadd.f32 0.0, %v1100
      %1102 = vmatmul.bf16.gmra.mxu0 %v780
      %v1103 = vpop.f32.mrf.mxu0
      %v1104 = vadd.f32 0.0, %v1103
      %v1105 = vpop.f32.mrf.mxu0
      %v1106 = vadd.f32 0.0, %v1105
      %1107 = vmatmul.bf16.gmra.mxu0 %v782
      %v1108 = vpop.f32.mrf.mxu0
      %v1109 = vadd.f32 0.0, %v1108
      %v1110 = vpop.f32.mrf.mxu0
      %v1111 = vadd.f32 0.0, %v1110
      %1112 = vmatmul.bf16.gmra.mxu0 %v784
      %v1113 = vpop.f32.mrf.mxu0
      %v1114 = vadd.f32 0.0, %v1113
      %v1115 = vpop.f32.mrf.mxu0
      %v1116 = vadd.f32 0.0, %v1115
      %1117 = vmatmul.bf16.gmra.mxu0 %v786
      %v1118 = vpop.f32.mrf.mxu0
      %v1119 = vadd.f32 0.0, %v1118
      %v1120 = vpop.f32.mrf.mxu0
      %v1121 = vadd.f32 0.0, %v1120
      %1122 = vmatmul.bf16.gmra.mxu0 %v788
      %v1123 = vpop.f32.mrf.mxu0
      %v1124 = vadd.f32 0.0, %v1123
      %v1125 = vpop.f32.mrf.mxu0
      %v1126 = vadd.f32 0.0, %v1125
      %1127 = vmatmul.bf16.gmra.mxu0 %v790
      %v1128 = vpop.f32.mrf.mxu0
      %v1129 = vadd.f32 0.0, %v1128
      %v1130 = vpop.f32.mrf.mxu0
      %v1131 = vadd.f32 0.0, %v1130
      %1132 = vmatmul.bf16.gmra.mxu0 %v792
      %v1133 = vpop.f32.mrf.mxu0
      %v1134 = vadd.f32 0.0, %v1133
      %v1135 = vpop.f32.mrf.mxu0
      %v1136 = vadd.f32 0.0, %v1135
      %1137 = vmatmul.bf16.gmra.mxu0 %v794
      %v1138 = vpop.f32.mrf.mxu0
      %v1139 = vadd.f32 0.0, %v1138
      %v1140 = vpop.f32.mrf.mxu0
      %v1141 = vadd.f32 0.0, %v1140
      %1142 = vmatmul.bf16.gmra.mxu0 %v796
      %v1143 = vpop.f32.mrf.mxu0
      %v1144 = vadd.f32 0.0, %v1143
      %v1145 = vpop.f32.mrf.mxu0
      %v1146 = vadd.f32 0.0, %v1145
      %1147 = vmatmul.bf16.gmra.mxu0 %v798
      %v1148 = vpop.f32.mrf.mxu0
      %v1149 = vadd.f32 0.0, %v1148
      %v1150 = vpop.f32.mrf.mxu0
      %v1151 = vadd.f32 0.0, %v1150
      %1152 = vmatmul.bf16.gmra.mxu0 %v800
      %v1153 = vpop.f32.mrf.mxu0
      %v1154 = vadd.f32 0.0, %v1153
      %v1155 = vpop.f32.mrf.mxu0
      %v1156 = vadd.f32 0.0, %v1155
      %1157 = vmatmul.bf16.gmra.mxu0 %v802
      %v1158 = vpop.f32.mrf.mxu0
      %v1159 = vadd.f32 0.0, %v1158
      %v1160 = vpop.f32.mrf.mxu0
      %v1161 = vadd.f32 0.0, %v1160
      %1162 = vmatmul.bf16.gmra.mxu0 %v804
      %v1163 = vpop.f32.mrf.mxu0
      %v1164 = vadd.f32 0.0, %v1163
      %v1165 = vpop.f32.mrf.mxu0
      %v1166 = vadd.f32 0.0, %v1165
      %1167 = vmatmul.bf16.gmra.mxu0 %v806
      %v1168 = vpop.f32.mrf.mxu0
      %v1169 = vadd.f32 0.0, %v1168
      %v1170 = vpop.f32.mrf.mxu0
      %v1171 = vadd.f32 0.0, %v1170
      %1172 = vmatmul.bf16.gmra.mxu0 %v808
      %v1173 = vpop.f32.mrf.mxu0
      %v1174 = vadd.f32 0.0, %v1173
      %v1175 = vpop.f32.mrf.mxu0
      %v1176 = vadd.f32 0.0, %v1175
      %1177 = vmatmul.bf16.gmra.mxu0 %v810
      %v1178 = vpop.f32.mrf.mxu0
      %v1179 = vadd.f32 0.0, %v1178
      %v1180 = vpop.f32.mrf.mxu0
      %v1181 = vadd.f32 0.0, %v1180
      %1182 = vmatmul.bf16.gmra.mxu0 %v812
      %v1183 = vpop.f32.mrf.mxu0
      %v1184 = vadd.f32 0.0, %v1183
      %v1185 = vpop.f32.mrf.mxu0
      %v1186 = vadd.f32 0.0, %v1185
      %1187 = vmatmul.bf16.gmra.mxu0 %v814
      %v1188 = vpop.f32.mrf.mxu0
      %v1189 = vadd.f32 0.0, %v1188
      %v1190 = vpop.f32.mrf.mxu0
      %v1191 = vadd.f32 0.0, %v1190
      %1192 = vmatmul.bf16.gmra.mxu0 %v816
      %v1193 = vpop.f32.mrf.mxu0
      %v1194 = vadd.f32 0.0, %v1193
      %v1195 = vpop.f32.mrf.mxu0
      %v1196 = vadd.f32 0.0, %v1195
      %1197 = vmatmul.bf16.gmra.mxu0 %v818
      %v1198 = vpop.f32.mrf.mxu0
      %v1199 = vadd.f32 0.0, %v1198
      %v1200 = vpop.f32.mrf.mxu0
      %v1201 = vadd.f32 0.0, %v1200
      %1202 = vmatmul.bf16.gmra.mxu0 %v820
      %v1203 = vpop.f32.mrf.mxu0
      %v1204 = vadd.f32 0.0, %v1203
      %v1205 = vpop.f32.mrf.mxu0
      %v1206 = vadd.f32 0.0, %v1205
      %1207 = vmatmul.bf16.gmra.mxu0 %v822
      %v1208 = vpop.f32.mrf.mxu0
      %v1209 = vadd.f32 0.0, %v1208
      %v1210 = vpop.f32.mrf.mxu0
      %v1211 = vadd.f32 0.0, %v1210
      %1212 = vmatmul.bf16.gmra.mxu0 %v824
      %v1213 = vpop.f32.mrf.mxu0
      %v1214 = vadd.f32 0.0, %v1213
      %v1215 = vpop.f32.mrf.mxu0
      %v1216 = vadd.f32 0.0, %v1215
      %1217 = vmatmul.bf16.gmra.mxu0 %v826
      %v1218 = vpop.f32.mrf.mxu0
      %v1219 = vadd.f32 0.0, %v1218
      %v1220 = vpop.f32.mrf.mxu0
      %v1221 = vadd.f32 0.0, %v1220
      %1222 = vmatmul.bf16.gmra.mxu0 %v828
      %v1223 = vpop.f32.mrf.mxu0
      %v1224 = vadd.f32 0.0, %v1223
      %v1225 = vpop.f32.mrf.mxu0
      %v1226 = vadd.f32 0.0, %v1225
      %1227 = vmatmul.bf16.gmra.mxu0 %v830
      %v1228 = vpop.f32.mrf.mxu0
      %v1229 = vadd.f32 0.0, %v1228
      %v1230 = vpop.f32.mrf.mxu0
      %v1231 = vadd.f32 0.0, %v1230
      %1232 = vmatmul.bf16.gmra.mxu0 %v832
      %v1233 = vpop.f32.mrf.mxu0
      %v1234 = vadd.f32 0.0, %v1233
      %v1235 = vpop.f32.mrf.mxu0
      %v1236 = vadd.f32 0.0, %v1235
      %1237 = vmatmul.bf16.gmra.mxu0 %v834
      %v1238 = vpop.f32.mrf.mxu0
      %v1239 = vadd.f32 0.0, %v1238
      %v1240 = vpop.f32.mrf.mxu0
      %v1241 = vadd.f32 0.0, %v1240
      %1242 = vmatmul.bf16.gmra.mxu0 %v836
      %v1243 = vpop.f32.mrf.mxu0
      %v1244 = vadd.f32 0.0, %v1243
      %v1245 = vpop.f32.mrf.mxu0
      %v1246 = vadd.f32 0.0, %v1245
      %1247 = vmatmul.bf16.gmra.mxu0 %v838
      %v1248 = vpop.f32.mrf.mxu0
      %v1249 = vadd.f32 0.0, %v1248
      %v1250 = vpop.f32.mrf.mxu0
      %v1251 = vadd.f32 0.0, %v1250
      %1252 = vmatmul.bf16.gmra.mxu0 %v840
      %v1253 = vpop.f32.mrf.mxu0
      %v1254 = vadd.f32 0.0, %v1253
      %v1255 = vpop.f32.mrf.mxu0
      %v1256 = vadd.f32 0.0, %v1255
      %1257 = vmatmul.bf16.gmra.mxu0 %v842
      %v1258 = vpop.f32.mrf.mxu0
      %v1259 = vadd.f32 0.0, %v1258
      %v1260 = vpop.f32.mrf.mxu0
      %v1261 = vadd.f32 0.0, %v1260
      %1262 = vmatmul.bf16.gmra.mxu0 %v844
      %v1263 = vpop.f32.mrf.mxu0
      %v1264 = vadd.f32 0.0, %v1263
      %v1265 = vpop.f32.mrf.mxu0
      %v1266 = vadd.f32 0.0, %v1265
      %1267 = vmatmul.bf16.gmra.mxu0 %v846
      %v1268 = vpop.f32.mrf.mxu0
      %v1269 = vadd.f32 0.0, %v1268
      %v1270 = vpop.f32.mrf.mxu0
      %v1271 = vadd.f32 0.0, %v1270
      %1272 = vmatmul.bf16.gmra.mxu0 %v848
      %v1273 = vpop.f32.mrf.mxu0
      %v1274 = vadd.f32 0.0, %v1273
      %v1275 = vpop.f32.mrf.mxu0
      %v1276 = vadd.f32 0.0, %v1275
      %1277 = vmatmul.bf16.gmra.mxu0 %v850
      %v1278 = vpop.f32.mrf.mxu0
      %v1279 = vadd.f32 0.0, %v1278
      %v1280 = vpop.f32.mrf.mxu0
      %v1281 = vadd.f32 0.0, %v1280
      %1282 = vmatmul.bf16.gmra.mxu0 %v852
      %v1283 = vpop.f32.mrf.mxu0
      %v1284 = vadd.f32 0.0, %v1283
      %v1285 = vpop.f32.mrf.mxu0
      %v1286 = vadd.f32 0.0, %v1285
      %1287 = vmatmul.bf16.gmra.mxu0 %v854
      %v1288 = vpop.f32.mrf.mxu0
      %v1289 = vadd.f32 0.0, %v1288
      %v1290 = vpop.f32.mrf.mxu0
      %v1291 = vadd.f32 0.0, %v1290
      %1292 = vmatmul.bf16.gmra.mxu0 %v856
      %v1293 = vpop.f32.mrf.mxu0
      %v1294 = vadd.f32 0.0, %v1293
      %v1295 = vpop.f32.mrf.mxu0
      %v1296 = vadd.f32 0.0, %v1295
      %1297 = vmatmul.bf16.gmra.mxu0 %v858
      %v1298 = vpop.f32.mrf.mxu0
      %v1299 = vadd.f32 0.0, %v1298
      %v1300 = vpop.f32.mrf.mxu0
      %v1301 = vadd.f32 0.0, %v1300
      %1302 = vmatmul.bf16.gmra.mxu0 %v860
      %v1303 = vpop.f32.mrf.mxu0
      %v1304 = vadd.f32 0.0, %v1303
      %v1305 = vpop.f32.mrf.mxu0
      %v1306 = vadd.f32 0.0, %v1305
      %1307 = vmatmul.bf16.gmra.mxu0 %v862
      %v1308 = vpop.f32.mrf.mxu0
      %v1309 = vadd.f32 0.0, %v1308
      %v1310 = vpop.f32.mrf.mxu0
      %v1311 = vadd.f32 0.0, %v1310
      %1312 = vmatmul.bf16.gmra.mxu0 %v864
      %v1313 = vpop.f32.mrf.mxu0
      %v1314 = vadd.f32 0.0, %v1313
      %v1315 = vpop.f32.mrf.mxu0
      %v1316 = vadd.f32 0.0, %v1315
      %1317 = vmatmul.bf16.gmra.mxu0 %v866
      %v1318 = vpop.f32.mrf.mxu0
      %v1319 = vadd.f32 0.0, %v1318
      %v1320 = vpop.f32.mrf.mxu0
      %v1321 = vadd.f32 0.0, %v1320
      %1322 = vdwg.mxu0
      %1323 = vmatpush.bf16.msra.mxu0 %v1047
      %1324 = vmatpush.bf16.msra.mxu0 %v1046
      %1325 = vmatpush.bf16.msra.mxu0 %v1045
      %1326 = vmatpush.bf16.msra.mxu0 %v1044
      %1327 = vmatpush.bf16.msra.mxu0 %v1043
      %1328 = vmatpush.bf16.msra.mxu0 %v1042
      %1329 = vmatpush.bf16.msra.mxu0 %v1041
      %1330 = vmatpush.bf16.msra.mxu0 %v1040
      %1331 = vmatmul.bf16.gmra.mxu0 %v769
      %v1332 = vpop.f32.mrf.mxu0
      %v1333 = vadd.f32 %v1074, %v1332
      %v1334 = vpop.f32.mrf.mxu0
      %v1335 = vadd.f32 %v1076, %v1334
      %1336 = vmatmul.bf16.gmra.mxu0 %v771
      %v1337 = vpop.f32.mrf.mxu0
      %v1338 = vadd.f32 %v1079, %v1337
      %v1339 = vpop.f32.mrf.mxu0
      %v1340 = vadd.f32 %v1081, %v1339
      %1341 = vmatmul.bf16.gmra.mxu0 %v773
      %v1342 = vpop.f32.mrf.mxu0
      %v1343 = vadd.f32 %v1084, %v1342
      %v1344 = vpop.f32.mrf.mxu0
      %v1345 = vadd.f32 %v1086, %v1344
      %1346 = vmatmul.bf16.gmra.mxu0 %v775
      %v1347 = vpop.f32.mrf.mxu0
      %v1348 = vadd.f32 %v1089, %v1347
      %v1349 = vpop.f32.mrf.mxu0
      %v1350 = vadd.f32 %v1091, %v1349
      %1351 = vmatmul.bf16.gmra.mxu0 %v777
      %v1352 = vpop.f32.mrf.mxu0
      %v1353 = vadd.f32 %v1094, %v1352
      %v1354 = vpop.f32.mrf.mxu0
      %v1355 = vadd.f32 %v1096, %v1354
      %1356 = vmatmul.bf16.gmra.mxu0 %v779
      %v1357 = vpop.f32.mrf.mxu0
      %v1358 = vadd.f32 %v1099, %v1357
      %v1359 = vpop.f32.mrf.mxu0
      %v1360 = vadd.f32 %v1101, %v1359
      %1361 = vmatmul.bf16.gmra.mxu0 %v781
      %v1362 = vpop.f32.mrf.mxu0
      %v1363 = vadd.f32 %v1104, %v1362
      %v1364 = vpop.f32.mrf.mxu0
      %v1365 = vadd.f32 %v1106, %v1364
      %1366 = vmatmul.bf16.gmra.mxu0 %v783
      %v1367 = vpop.f32.mrf.mxu0
      %v1368 = vadd.f32 %v1109, %v1367
      %v1369 = vpop.f32.mrf.mxu0
      %v1370 = vadd.f32 %v1111, %v1369
      %1371 = vmatmul.bf16.gmra.mxu0 %v785
      %v1372 = vpop.f32.mrf.mxu0
      %v1373 = vadd.f32 %v1114, %v1372
      %v1374 = vpop.f32.mrf.mxu0
      %v1375 = vadd.f32 %v1116, %v1374
      %1376 = vmatmul.bf16.gmra.mxu0 %v787
      %v1377 = vpop.f32.mrf.mxu0
      %v1378 = vadd.f32 %v1119, %v1377
      %v1379 = vpop.f32.mrf.mxu0
      %v1380 = vadd.f32 %v1121, %v1379
      %1381 = vmatmul.bf16.gmra.mxu0 %v789
      %v1382 = vpop.f32.mrf.mxu0
      %v1383 = vadd.f32 %v1124, %v1382
      %v1384 = vpop.f32.mrf.mxu0
      %v1385 = vadd.f32 %v1126, %v1384
      %1386 = vmatmul.bf16.gmra.mxu0 %v791
      %v1387 = vpop.f32.mrf.mxu0
      %v1388 = vadd.f32 %v1129, %v1387
      %v1389 = vpop.f32.mrf.mxu0
      %v1390 = vadd.f32 %v1131, %v1389
      %1391 = vmatmul.bf16.gmra.mxu0 %v793
      %v1392 = vpop.f32.mrf.mxu0
      %v1393 = vadd.f32 %v1134, %v1392
      %v1394 = vpop.f32.mrf.mxu0
      %v1395 = vadd.f32 %v1136, %v1394
      %1396 = vmatmul.bf16.gmra.mxu0 %v795
      %v1397 = vpop.f32.mrf.mxu0
      %v1398 = vadd.f32 %v1139, %v1397
      %v1399 = vpop.f32.mrf.mxu0
      %v1400 = vadd.f32 %v1141, %v1399
      %1401 = vmatmul.bf16.gmra.mxu0 %v797
      %v1402 = vpop.f32.mrf.mxu0
      %v1403 = vadd.f32 %v1144, %v1402
      %v1404 = vpop.f32.mrf.mxu0
      %v1405 = vadd.f32 %v1146, %v1404
      %1406 = vmatmul.bf16.gmra.mxu0 %v799
      %v1407 = vpop.f32.mrf.mxu0
      %v1408 = vadd.f32 %v1149, %v1407
      %v1409 = vpop.f32.mrf.mxu0
      %v1410 = vadd.f32 %v1151, %v1409
      %1411 = vmatmul.bf16.gmra.mxu0 %v801
      %v1412 = vpop.f32.mrf.mxu0
      %v1413 = vadd.f32 %v1154, %v1412
      %v1414 = vpop.f32.mrf.mxu0
      %v1415 = vadd.f32 %v1156, %v1414
      %1416 = vmatmul.bf16.gmra.mxu0 %v803
      %v1417 = vpop.f32.mrf.mxu0
      %v1418 = vadd.f32 %v1159, %v1417
      %v1419 = vpop.f32.mrf.mxu0
      %v1420 = vadd.f32 %v1161, %v1419
      %1421 = vmatmul.bf16.gmra.mxu0 %v805
      %v1422 = vpop.f32.mrf.mxu0
      %v1423 = vadd.f32 %v1164, %v1422
      %v1424 = vpop.f32.mrf.mxu0
      %v1425 = vadd.f32 %v1166, %v1424
      %1426 = vmatmul.bf16.gmra.mxu0 %v807
      %v1427 = vpop.f32.mrf.mxu0
      %v1428 = vadd.f32 %v1169, %v1427
      %v1429 = vpop.f32.mrf.mxu0
      %v1430 = vadd.f32 %v1171, %v1429
      %1431 = vmatmul.bf16.gmra.mxu0 %v809
      %v1432 = vpop.f32.mrf.mxu0
      %v1433 = vadd.f32 %v1174, %v1432
      %v1434 = vpop.f32.mrf.mxu0
      %v1435 = vadd.f32 %v1176, %v1434
      %1436 = vmatmul.bf16.gmra.mxu0 %v811
      %v1437 = vpop.f32.mrf.mxu0
      %v1438 = vadd.f32 %v1179, %v1437
      %v1439 = vpop.f32.mrf.mxu0
      %v1440 = vadd.f32 %v1181, %v1439
      %1441 = vmatmul.bf16.gmra.mxu0 %v813
      %v1442 = vpop.f32.mrf.mxu0
      %v1443 = vadd.f32 %v1184, %v1442
      %v1444 = vpop.f32.mrf.mxu0
      %v1445 = vadd.f32 %v1186, %v1444
      %1446 = vmatmul.bf16.gmra.mxu0 %v815
      %v1447 = vpop.f32.mrf.mxu0
      %v1448 = vadd.f32 %v1189, %v1447
      %v1449 = vpop.f32.mrf.mxu0
      %v1450 = vadd.f32 %v1191, %v1449
      %1451 = vmatmul.bf16.gmra.mxu0 %v817
      %v1452 = vpop.f32.mrf.mxu0
      %v1453 = vadd.f32 %v1194, %v1452
      %v1454 = vpop.f32.mrf.mxu0
      %v1455 = vadd.f32 %v1196, %v1454
      %1456 = vmatmul.bf16.gmra.mxu0 %v819
      %v1457 = vpop.f32.mrf.mxu0
      %v1458 = vadd.f32 %v1199, %v1457
      %v1459 = vpop.f32.mrf.mxu0
      %v1460 = vadd.f32 %v1201, %v1459
      %1461 = vmatmul.bf16.gmra.mxu0 %v821
      %v1462 = vpop.f32.mrf.mxu0
      %v1463 = vadd.f32 %v1204, %v1462
      %v1464 = vpop.f32.mrf.mxu0
      %v1465 = vadd.f32 %v1206, %v1464
      %1466 = vmatmul.bf16.gmra.mxu0 %v823
      %v1467 = vpop.f32.mrf.mxu0
      %v1468 = vadd.f32 %v1209, %v1467
      %v1469 = vpop.f32.mrf.mxu0
      %v1470 = vadd.f32 %v1211, %v1469
      %1471 = vmatmul.bf16.gmra.mxu0 %v825
      %v1472 = vpop.f32.mrf.mxu0
      %v1473 = vadd.f32 %v1214, %v1472
      %v1474 = vpop.f32.mrf.mxu0
      %v1475 = vadd.f32 %v1216, %v1474
      %1476 = vmatmul.bf16.gmra.mxu0 %v827
      %v1477 = vpop.f32.mrf.mxu0
      %v1478 = vadd.f32 %v1219, %v1477
      %v1479 = vpop.f32.mrf.mxu0
      %v1480 = vadd.f32 %v1221, %v1479
      %1481 = vmatmul.bf16.gmra.mxu0 %v829
      %v1482 = vpop.f32.mrf.mxu0
      %v1483 = vadd.f32 %v1224, %v1482
      %v1484 = vpop.f32.mrf.mxu0
      %v1485 = vadd.f32 %v1226, %v1484
      %1486 = vmatmul.bf16.gmra.mxu0 %v831
      %v1487 = vpop.f32.mrf.mxu0
      %v1488 = vadd.f32 %v1229, %v1487
      %v1489 = vpop.f32.mrf.mxu0
      %v1490 = vadd.f32 %v1231, %v1489
      %1491 = vmatmul.bf16.gmra.mxu0 %v833
      %v1492 = vpop.f32.mrf.mxu0
      %v1493 = vadd.f32 %v1234, %v1492
      %v1494 = vpop.f32.mrf.mxu0
      %v1495 = vadd.f32 %v1236, %v1494
      %1496 = vmatmul.bf16.gmra.mxu0 %v835
      %v1497 = vpop.f32.mrf.mxu0
      %v1498 = vadd.f32 %v1239, %v1497
      %v1499 = vpop.f32.mrf.mxu0
      %v1500 = vadd.f32 %v1241, %v1499
      %1501 = vmatmul.bf16.gmra.mxu0 %v837
      %v1502 = vpop.f32.mrf.mxu0
      %v1503 = vadd.f32 %v1244, %v1502
      %v1504 = vpop.f32.mrf.mxu0
      %v1505 = vadd.f32 %v1246, %v1504
      %1506 = vmatmul.bf16.gmra.mxu0 %v839
      %v1507 = vpop.f32.mrf.mxu0
      %v1508 = vadd.f32 %v1249, %v1507
      %v1509 = vpop.f32.mrf.mxu0
      %v1510 = vadd.f32 %v1251, %v1509
      %1511 = vmatmul.bf16.gmra.mxu0 %v841
      %v1512 = vpop.f32.mrf.mxu0
      %v1513 = vadd.f32 %v1254, %v1512
      %v1514 = vpop.f32.mrf.mxu0
      %v1515 = vadd.f32 %v1256, %v1514
      %1516 = vmatmul.bf16.gmra.mxu0 %v843
      %v1517 = vpop.f32.mrf.mxu0
      %v1518 = vadd.f32 %v1259, %v1517
      %v1519 = vpop.f32.mrf.mxu0
      %v1520 = vadd.f32 %v1261, %v1519
      %1521 = vmatmul.bf16.gmra.mxu0 %v845
      %v1522 = vpop.f32.mrf.mxu0
      %v1523 = vadd.f32 %v1264, %v1522
      %v1524 = vpop.f32.mrf.mxu0
      %v1525 = vadd.f32 %v1266, %v1524
      %1526 = vmatmul.bf16.gmra.mxu0 %v847
      %v1527 = vpop.f32.mrf.mxu0
      %v1528 = vadd.f32 %v1269, %v1527
      %v1529 = vpop.f32.mrf.mxu0
      %v1530 = vadd.f32 %v1271, %v1529
      %1531 = vmatmul.bf16.gmra.mxu0 %v849
      %v1532 = vpop.f32.mrf.mxu0
      %v1533 = vadd.f32 %v1274, %v1532
      %v1534 = vpop.f32.mrf.mxu0
      %v1535 = vadd.f32 %v1276, %v1534
      %1536 = vmatmul.bf16.gmra.mxu0 %v851
      %v1537 = vpop.f32.mrf.mxu0
      %v1538 = vadd.f32 %v1279, %v1537
      %v1539 = vpop.f32.mrf.mxu0
      %v1540 = vadd.f32 %v1281, %v1539
      %1541 = vmatmul.bf16.gmra.mxu0 %v853
      %v1542 = vpop.f32.mrf.mxu0
      %v1543 = vadd.f32 %v1284, %v1542
      %v1544 = vpop.f32.mrf.mxu0
      %v1545 = vadd.f32 %v1286, %v1544
      %1546 = vmatmul.bf16.gmra.mxu0 %v855
      %v1547 = vpop.f32.mrf.mxu0
      %v1548 = vadd.f32 %v1289, %v1547
      %v1549 = vpop.f32.mrf.mxu0
      %v1550 = vadd.f32 %v1291, %v1549
      %1551 = vmatmul.bf16.gmra.mxu0 %v857
      %v1552 = vpop.f32.mrf.mxu0
      %v1553 = vadd.f32 %v1294, %v1552
      %v1554 = vpop.f32.mrf.mxu0
      %v1555 = vadd.f32 %v1296, %v1554
      %1556 = vmatmul.bf16.gmra.mxu0 %v859
      %v1557 = vpop.f32.mrf.mxu0
      %v1558 = vadd.f32 %v1299, %v1557
      %v1559 = vpop.f32.mrf.mxu0
      %v1560 = vadd.f32 %v1301, %v1559
      %1561 = vmatmul.bf16.gmra.mxu0 %v861
      %v1562 = vpop.f32.mrf.mxu0
      %v1563 = vadd.f32 %v1304, %v1562
      %v1564 = vpop.f32.mrf.mxu0
      %v1565 = vadd.f32 %v1306, %v1564
      %1566 = vmatmul.bf16.gmra.mxu0 %v863
      %v1567 = vpop.f32.mrf.mxu0
      %v1568 = vadd.f32 %v1309, %v1567
      %v1569 = vpop.f32.mrf.mxu0
      %v1570 = vadd.f32 %v1311, %v1569
      %1571 = vmatmul.bf16.gmra.mxu0 %v865
      %v1572 = vpop.f32.mrf.mxu0
      %v1573 = vadd.f32 %v1314, %v1572
      %v1574 = vpop.f32.mrf.mxu0
      %v1575 = vadd.f32 %v1316, %v1574
      %1576 = vmatmul.bf16.gmra.mxu0 %v867
      %v1577 = vpop.f32.mrf.mxu0
      %v1578 = vadd.f32 %v1319, %v1577
      %v1579 = vpop.f32.mrf.mxu0
      %v1580 = vadd.f32 %v1321, %v1579
      %1581 = vdwg.mxu0
      %v1582 = vmax.f32 %v1333, %v1395
      %v1583 = vmax.f32 %v1335, %v1398
      %v1584 = vmax.f32 %v1338, %v1400
      %v1585 = vmax.f32 %v1340, %v1403
      %v1586 = vmax.f32 %v1343, %v1405
      %v1587 = vmax.f32 %v1345, %v1408
      %v1588 = vmax.f32 %v1348, %v1410
      %v1589 = vmax.f32 %v1350, %v1413
      %v1590 = vmax.f32 %v1353, %v1415
      %v1591 = vmax.f32 %v1355, %v1418
      %v1592 = vmax.f32 %v1358, %v1420
      %v1593 = vmax.f32 %v1360, %v1423
      %v1594 = vmax.f32 %v1363, %v1425
      %v1595 = vmax.f32 %v1365, %v1428
      %v1596 = vmax.f32 %v1368, %v1430
      %v1597 = vmax.f32 %v1370, %v1433
      %v1598 = vmax.f32 %v1373, %v1435
      %v1599 = vmax.f32 %v1375, %v1438
      %v1600 = vmax.f32 %v1378, %v1440
      %v1601 = vmax.f32 %v1380, %v1443
      %v1602 = vmax.f32 %v1383, %v1445
      %v1603 = vmax.f32 %v1385, %v1448
      %v1604 = vmax.f32 %v1388, %v1450
      %v1605 = vmax.f32 %v1390, %v1453
      %v1606 = vmax.f32 %v1393, %v1455
      %v1607 = vmax.f32 %v1458, %v1520
      %v1608 = vmax.f32 %v1460, %v1523
      %v1609 = vmax.f32 %v1463, %v1525
      %v1610 = vmax.f32 %v1465, %v1528
      %v1611 = vmax.f32 %v1468, %v1530
      %v1612 = vmax.f32 %v1470, %v1533
      %v1613 = vmax.f32 %v1473, %v1535
      %v1614 = vmax.f32 %v1475, %v1538
      %v1615 = vmax.f32 %v1478, %v1540
      %v1616 = vmax.f32 %v1480, %v1543
      %v1617 = vmax.f32 %v1483, %v1545
      %v1618 = vmax.f32 %v1485, %v1548
      %v1619 = vmax.f32 %v1488, %v1550
      %v1620 = vmax.f32 %v1490, %v1553
      %v1621 = vmax.f32 %v1493, %v1555
      %v1622 = vmax.f32 %v1495, %v1558
      %v1623 = vmax.f32 %v1498, %v1560
      %v1624 = vmax.f32 %v1500, %v1563
      %v1625 = vmax.f32 %v1503, %v1565
      %v1626 = vmax.f32 %v1505, %v1568
      %v1627 = vmax.f32 %v1508, %v1570
      %v1628 = vmax.f32 %v1510, %v1573
      %v1629 = vmax.f32 %v1513, %v1575
      %v1630 = vmax.f32 %v1515, %v1578
      %v1631 = vmax.f32 %v1518, %v1580
      %v1632 = vmax.f32 %v1582, %v1607
      %v1633 = vmax.f32 %v1583, %v1608
      %v1634 = vmax.f32 %v1584, %v1609
      %v1635 = vmax.f32 %v1585, %v1610
      %v1636 = vmax.f32 %v1586, %v1611
      %v1637 = vmax.f32 %v1587, %v1612
      %v1638 = vmax.f32 %v1588, %v1613
      %v1639 = vmax.f32 %v1589, %v1614
      %v1640 = vmax.f32 %v1590, %v1615
      %v1641 = vmax.f32 %v1591, %v1616
      %v1642 = vmax.f32 %v1592, %v1617
      %v1643 = vmax.f32 %v1593, %v1618
      %v1644 = vmax.f32 %v1594, %v1619
      %v1645 = vmax.f32 %v1595, %v1620
      %v1646 = vmax.f32 %v1596, %v1621
      %v1647 = vmax.f32 %v1597, %v1622
      %v1648 = vmax.f32 %v1598, %v1623
      %v1649 = vmax.f32 %v1599, %v1624
      %v1650 = vmax.f32 %v1600, %v1625
      %v1651 = vmax.f32 %v1601, %v1626
      %v1652 = vmax.f32 %v1602, %v1627
      %v1653 = vmax.f32 %v1603, %v1628
      %v1654 = vmax.f32 %v1604, %v1629
      %v1655 = vmax.f32 %v1605, %v1630
      %v1656 = vmax.f32 %v1606, %v1631
      %v1657 = vld [vmem:[%s2] sm:$0x1]
      %v1659 = vperm.slane %v1657, 0
      %v1661 = vadd.f32 %v1632, %v1659
      %v1662 = vadd.f32 %v1633, %v1659
      %v1663 = vadd.f32 %v1634, %v1659
      %v1664 = vadd.f32 %v1635, %v1659
      %v1665 = vadd.f32 %v1636, %v1659
      %v1666 = vadd.f32 %v1637, %v1659
      %v1667 = vadd.f32 %v1638, %v1659
      %v1668 = vadd.f32 %v1639, %v1659
      %v1669 = vadd.f32 %v1640, %v1659
      %v1670 = vadd.f32 %v1641, %v1659
      %v1671 = vadd.f32 %v1642, %v1659
      %v1672 = vadd.f32 %v1643, %v1659
      %v1673 = vadd.f32 %v1644, %v1659
      %v1674 = vadd.f32 %v1645, %v1659
      %v1675 = vadd.f32 %v1646, %v1659
      %v1676 = vadd.f32 %v1647, %v1659
      %v1677 = vadd.f32 %v1648, %v1659
      %v1678 = vadd.f32 %v1649, %v1659
      %v1679 = vadd.f32 %v1650, %v1659
      %v1680 = vadd.f32 %v1651, %v1659
      %v1681 = vadd.f32 %v1652, %v1659
      %v1682 = vadd.f32 %v1653, %v1659
      %v1683 = vadd.f32 %v1654, %v1659
      %v1684 = vadd.f32 %v1655, %v1659
      %v1685 = vadd.f32 %v1656, %v1659
      %v1686 = vmax.f32 %v1661, 0.0
      %v1687 = vmax.f32 %v1662, 0.0
      %v1688 = vmax.f32 %v1663, 0.0
      %v1689 = vmax.f32 %v1664, 0.0
      %v1690 = vmax.f32 %v1665, 0.0
      %v1691 = vmax.f32 %v1666, 0.0
      %v1692 = vmax.f32 %v1667, 0.0
      %v1693 = vmax.f32 %v1668, 0.0
      %v1694 = vmax.f32 %v1669, 0.0
      %v1695 = vmax.f32 %v1670, 0.0
      %v1696 = vmax.f32 %v1671, 0.0
      %v1697 = vmax.f32 %v1672, 0.0
      %v1698 = vmax.f32 %v1673, 0.0
      %v1699 = vmax.f32 %v1674, 0.0
      %v1700 = vmax.f32 %v1675, 0.0
      %v1701 = vmax.f32 %v1676, 0.0
      %v1702 = vmax.f32 %v1677, 0.0
      %v1703 = vmax.f32 %v1678, 0.0
      %v1704 = vmax.f32 %v1679, 0.0
      %v1705 = vmax.f32 %v1680, 0.0
      %v1706 = vmax.f32 %v1681, 0.0
      %v1707 = vmax.f32 %v1682, 0.0
      %v1708 = vmax.f32 %v1683, 0.0
      %v1709 = vmax.f32 %v1684, 0.0
      %v1710 = vmax.f32 %v1685, 0.0
      %v1711 = vpack.c.bf16 %v1686, %v1686
      %v1712 = vpack.c.bf16 %v1687, %v1687
      %v1713 = vpack.c.bf16 %v1688, %v1688
      %v1714 = vpack.c.bf16 %v1689, %v1689
      %v1715 = vpack.c.bf16 %v1690, %v1690
      %v1716 = vpack.c.bf16 %v1691, %v1691
      %v1717 = vpack.c.bf16 %v1692, %v1692
      %v1718 = vpack.c.bf16 %v1693, %v1693
      %v1719 = vpack.c.bf16 %v1694, %v1694
      %v1720 = vpack.c.bf16 %v1695, %v1695
      %v1721 = vpack.c.bf16 %v1696, %v1696
      %v1722 = vpack.c.bf16 %v1697, %v1697
      %v1723 = vpack.c.bf16 %v1698, %v1698
      %v1724 = vpack.c.bf16 %v1699, %v1699
      %v1725 = vpack.c.bf16 %v1700, %v1700
      %v1726 = vpack.c.bf16 %v1701, %v1701
      %v1727 = vpack.c.bf16 %v1702, %v1702
      %v1728 = vpack.c.bf16 %v1703, %v1703
      %v1729 = vpack.c.bf16 %v1704, %v1704
      %v1730 = vpack.c.bf16 %v1705, %v1705
      %v1731 = vpack.c.bf16 %v1706, %v1706
      %v1732 = vpack.c.bf16 %v1707, %v1707
      %v1733 = vpack.c.bf16 %v1708, %v1708
      %v1734 = vpack.c.bf16 %v1709, %v1709
      %v1735 = vpack.c.bf16 %v1710, %v1710
      %v1736 = vld [vmem:[%s3] sm:$0xf]
      %v1737 = vld [vmem:[%s3 + $0x4] sm:$0xf]
      %v1738 = vld [vmem:[%s3 + $0x8] sm:$0xf]
      %v1739 = vld [vmem:[%s3 + $0xc] sm:$0xf]
      %v1740 = vld [vmem:[%s3 + $0x10] sm:$0xf]
      %v1741 = vld [vmem:[%s3 + $0x14] sm:$0xf]
      %v1742 = vld [vmem:[%s3 + $0x18] sm:$0xf]
      %v1743 = vld [vmem:[%s3 + $0x1c] sm:$0xf]
      %v1744 = vld [vmem:[%s3 + $0x20] sm:$0xf]
      %v1745 = vld [vmem:[%s3 + $0x24] sm:$0xf]
      %v1746 = vld [vmem:[%s3 + $0x28] sm:$0xf]
      %v1747 = vld [vmem:[%s3 + $0x2c] sm:$0xf]
      %v1748 = vld [vmem:[%s3 + $0x30] sm:$0xf]
      %v1749 = vld [vmem:[%s3 + $0x34] sm:$0xf]
      %v1750 = vld [vmem:[%s3 + $0x38] sm:$0xf]
      %v1751 = vld [vmem:[%s3 + $0x3c] sm:$0xf]
      %s1752 = scalar_lea.vmem %s3, 64
      %v1753 = vld [vmem:[%s1752] sm:$0xf]
      %v1754 = vld [vmem:[%s1752 + $0x4] sm:$0xf]
      %v1755 = vld [vmem:[%s1752 + $0x8] sm:$0xf]
      %v1756 = vld [vmem:[%s1752 + $0xc] sm:$0xf]
      %v1757 = vld [vmem:[%s1752 + $0x10] sm:$0xf]
      %v1758 = vld [vmem:[%s1752 + $0x14] sm:$0xf]
      %v1759 = vld [vmem:[%s1752 + $0x18] sm:$0xf]
      %v1760 = vld [vmem:[%s1752 + $0x1c] sm:$0xf]
      %v1761 = vld [vmem:[%s1752 + $0x20] sm:$0xf]
      %v1762 = vld [vmem:[%s1752 + $0x24] sm:$0xf]
      %v1763 = vld [vmem:[%s1752 + $0x28] sm:$0xf]
      %v1764 = vld [vmem:[%s1752 + $0x2c] sm:$0xf]
      %v1765 = vld [vmem:[%s1752 + $0x30] sm:$0xf]
      %v1766 = vld [vmem:[%s1752 + $0x34] sm:$0xf]
      %v1767 = vld [vmem:[%s1752 + $0x38] sm:$0xf]
      %v1768 = vld [vmem:[%s1752 + $0x3c] sm:$0xf]
      %v1785 = vunpack.c.l.b16 %v1753
      %v1786 = vunpack.c.l.b16 %v1754
      %v1787 = vunpack.c.l.b16 %v1755
      %v1788 = vunpack.c.l.b16 %v1756
      %v1789 = vunpack.c.l.b16 %v1757
      %v1790 = vunpack.c.l.b16 %v1758
      %v1791 = vunpack.c.l.b16 %v1759
      %v1792 = vunpack.c.l.b16 %v1760
      %v1793 = vunpack.c.l.b16 %v1761
      %v1794 = vunpack.c.l.b16 %v1762
      %v1795 = vunpack.c.l.b16 %v1763
      %v1796 = vunpack.c.l.b16 %v1764
      %v1797 = vunpack.c.l.b16 %v1765
      %v1798 = vunpack.c.l.b16 %v1766
      %v1799 = vunpack.c.l.b16 %v1767
      %v1800 = vunpack.c.l.b16 %v1768
      %v1801 = vpack.c.b16 %v1786, %v1785
      %v1802 = vpack.c.b16 %v1788, %v1787
      %v1803 = vpack.c.b16 %v1790, %v1789
      %v1804 = vpack.c.b16 %v1792, %v1791
      %v1805 = vpack.c.b16 %v1794, %v1793
      %v1806 = vpack.c.b16 %v1796, %v1795
      %v1807 = vpack.c.b16 %v1798, %v1797
      %v1808 = vpack.c.b16 %v1800, %v1799
      %1817 = vmatpush.bf16.msra.mxu0 %v1808
      %1818 = vmatpush.bf16.msra.mxu0 %v1807
      %1819 = vmatpush.bf16.msra.mxu0 %v1806
      %1820 = vmatpush.bf16.msra.mxu0 %v1805
      %1821 = vmatpush.bf16.msra.mxu0 %v1804
      %1822 = vmatpush.bf16.msra.mxu0 %v1803
      %1823 = vmatpush.bf16.msra.mxu0 %v1802
      %1824 = vmatpush.bf16.msra.mxu0 %v1801
      %1825 = vmatmul.bf16.gmra.mxu0 %v1712
      %v1826 = vpop.f32.mrf.mxu0
      %v1827 = vadd.f32 0.0, %v1826
      %v1828 = vpop.f32.mrf.mxu0
      %1829 = vdwg.mxu0
      %v1846 = vunpack.c.l.b16 %v1736
      %v1847 = vunpack.c.l.b16 %v1737
      %v1848 = vunpack.c.l.b16 %v1738
      %v1849 = vunpack.c.l.b16 %v1739
      %v1850 = vunpack.c.l.b16 %v1740
      %v1851 = vunpack.c.l.b16 %v1741
      %v1852 = vunpack.c.l.b16 %v1742
      %v1853 = vunpack.c.l.b16 %v1743
      %v1854 = vunpack.c.l.b16 %v1744
      %v1855 = vunpack.c.l.b16 %v1745
      %v1856 = vunpack.c.l.b16 %v1746
      %v1857 = vunpack.c.l.b16 %v1747
      %v1858 = vunpack.c.l.b16 %v1748
      %v1859 = vunpack.c.l.b16 %v1749
      %v1860 = vunpack.c.l.b16 %v1750
      %v1861 = vunpack.c.l.b16 %v1751
      %v1862 = vpack.c.b16 %v1847, %v1846
      %v1863 = vpack.c.b16 %v1849, %v1848
      %v1864 = vpack.c.b16 %v1851, %v1850
      %v1865 = vpack.c.b16 %v1853, %v1852
      %v1866 = vpack.c.b16 %v1855, %v1854
      %v1867 = vpack.c.b16 %v1857, %v1856
      %v1868 = vpack.c.b16 %v1859, %v1858
      %v1869 = vpack.c.b16 %v1861, %v1860
      %1878 = vmatpush.bf16.msra.mxu0 %v1869
      %1879 = vmatpush.bf16.msra.mxu0 %v1868
      %1880 = vmatpush.bf16.msra.mxu0 %v1867
      %1881 = vmatpush.bf16.msra.mxu0 %v1866
      %1882 = vmatpush.bf16.msra.mxu0 %v1865
      %1883 = vmatpush.bf16.msra.mxu0 %v1864
      %1884 = vmatpush.bf16.msra.mxu0 %v1863
      %1885 = vmatpush.bf16.msra.mxu0 %v1862
      %1886 = vmatmul.bf16.gmra.mxu0 %v1711
      %v1887 = vpop.f32.mrf.mxu0
      %v1888 = vadd.f32 %v1827, %v1887
      %v1889 = vpop.f32.mrf.mxu0
      %1890 = vdwg.mxu0
      %s1891 = scalar_lea.vmem %s3, 128
      %v1892 = vld [vmem:[%s1891] sm:$0xf]
      %v1893 = vld [vmem:[%s1891 + $0x4] sm:$0xf]
      %v1894 = vld [vmem:[%s1891 + $0x8] sm:$0xf]
      %v1895 = vld [vmem:[%s1891 + $0xc] sm:$0xf]
      %v1896 = vld [vmem:[%s1891 + $0x10] sm:$0xf]
      %v1897 = vld [vmem:[%s1891 + $0x14] sm:$0xf]
      %v1898 = vld [vmem:[%s1891 + $0x18] sm:$0xf]
      %v1899 = vld [vmem:[%s1891 + $0x1c] sm:$0xf]
      %v1900 = vld [vmem:[%s1891 + $0x20] sm:$0xf]
      %v1901 = vld [vmem:[%s1891 + $0x24] sm:$0xf]
      %v1902 = vld [vmem:[%s1891 + $0x28] sm:$0xf]
      %v1903 = vld [vmem:[%s1891 + $0x2c] sm:$0xf]
      %v1904 = vld [vmem:[%s1891 + $0x30] sm:$0xf]
      %v1905 = vld [vmem:[%s1891 + $0x34] sm:$0xf]
      %v1906 = vld [vmem:[%s1891 + $0x38] sm:$0xf]
      %v1907 = vld [vmem:[%s1891 + $0x3c] sm:$0xf]
      %v1924 = vunpack.c.l.b16 %v1892
      %v1925 = vunpack.c.l.b16 %v1893
      %v1926 = vunpack.c.l.b16 %v1894
      %v1927 = vunpack.c.l.b16 %v1895
      %v1928 = vunpack.c.l.b16 %v1896
      %v1929 = vunpack.c.l.b16 %v1897
      %v1930 = vunpack.c.l.b16 %v1898
      %v1931 = vunpack.c.l.b16 %v1899
      %v1932 = vunpack.c.l.b16 %v1900
      %v1933 = vunpack.c.l.b16 %v1901
      %v1934 = vunpack.c.l.b16 %v1902
      %v1935 = vunpack.c.l.b16 %v1903
      %v1936 = vunpack.c.l.b16 %v1904
      %v1937 = vunpack.c.l.b16 %v1905
      %v1938 = vunpack.c.l.b16 %v1906
      %v1939 = vunpack.c.l.b16 %v1907
      %v1940 = vpack.c.b16 %v1925, %v1924
      %v1941 = vpack.c.b16 %v1927, %v1926
      %v1942 = vpack.c.b16 %v1929, %v1928
      %v1943 = vpack.c.b16 %v1931, %v1930
      %v1944 = vpack.c.b16 %v1933, %v1932
      %v1945 = vpack.c.b16 %v1935, %v1934
      %v1946 = vpack.c.b16 %v1937, %v1936
      %v1947 = vpack.c.b16 %v1939, %v1938
      %1956 = vmatpush.bf16.msra.mxu0 %v1947
      %1957 = vmatpush.bf16.msra.mxu0 %v1946
      %1958 = vmatpush.bf16.msra.mxu0 %v1945
      %1959 = vmatpush.bf16.msra.mxu0 %v1944
      %1960 = vmatpush.bf16.msra.mxu0 %v1943
      %1961 = vmatpush.bf16.msra.mxu0 %v1942
      %1962 = vmatpush.bf16.msra.mxu0 %v1941
      %1963 = vmatpush.bf16.msra.mxu0 %v1940
      %1964 = vmatmul.bf16.gmra.mxu0 %v1713
      %v1965 = vpop.f32.mrf.mxu0
      %v1966 = vadd.f32 0.0, %v1965
      %v1967 = vpop.f32.mrf.mxu0
      %1968 = vdwg.mxu0
      %v1969 = vadd.f32 %v1888, %v1966
      %s1970 = scalar_lea.vmem %s3, 192
      %v1971 = vld [vmem:[%s1970] sm:$0xf]
      %v1972 = vld [vmem:[%s1970 + $0x4] sm:$0xf]
      %v1973 = vld [vmem:[%s1970 + $0x8] sm:$0xf]
      %v1974 = vld [vmem:[%s1970 + $0xc] sm:$0xf]
      %v1975 = vld [vmem:[%s1970 + $0x10] sm:$0xf]
      %v1976 = vld [vmem:[%s1970 + $0x14] sm:$0xf]
      %v1977 = vld [vmem:[%s1970 + $0x18] sm:$0xf]
      %v1978 = vld [vmem:[%s1970 + $0x1c] sm:$0xf]
      %v1979 = vld [vmem:[%s1970 + $0x20] sm:$0xf]
      %v1980 = vld [vmem:[%s1970 + $0x24] sm:$0xf]
      %v1981 = vld [vmem:[%s1970 + $0x28] sm:$0xf]
      %v1982 = vld [vmem:[%s1970 + $0x2c] sm:$0xf]
      %v1983 = vld [vmem:[%s1970 + $0x30] sm:$0xf]
      %v1984 = vld [vmem:[%s1970 + $0x34] sm:$0xf]
      %v1985 = vld [vmem:[%s1970 + $0x38] sm:$0xf]
      %v1986 = vld [vmem:[%s1970 + $0x3c] sm:$0xf]
      %v2003 = vunpack.c.l.b16 %v1971
      %v2004 = vunpack.c.l.b16 %v1972
      %v2005 = vunpack.c.l.b16 %v1973
      %v2006 = vunpack.c.l.b16 %v1974
      %v2007 = vunpack.c.l.b16 %v1975
      %v2008 = vunpack.c.l.b16 %v1976
      %v2009 = vunpack.c.l.b16 %v1977
      %v2010 = vunpack.c.l.b16 %v1978
      %v2011 = vunpack.c.l.b16 %v1979
      %v2012 = vunpack.c.l.b16 %v1980
      %v2013 = vunpack.c.l.b16 %v1981
      %v2014 = vunpack.c.l.b16 %v1982
      %v2015 = vunpack.c.l.b16 %v1983
      %v2016 = vunpack.c.l.b16 %v1984
      %v2017 = vunpack.c.l.b16 %v1985
      %v2018 = vunpack.c.l.b16 %v1986
      %v2019 = vpack.c.b16 %v2004, %v2003
      %v2020 = vpack.c.b16 %v2006, %v2005
      %v2021 = vpack.c.b16 %v2008, %v2007
      %v2022 = vpack.c.b16 %v2010, %v2009
      %v2023 = vpack.c.b16 %v2012, %v2011
      %v2024 = vpack.c.b16 %v2014, %v2013
      %v2025 = vpack.c.b16 %v2016, %v2015
      %v2026 = vpack.c.b16 %v2018, %v2017
      %2035 = vmatpush.bf16.msra.mxu0 %v2026
      %2036 = vmatpush.bf16.msra.mxu0 %v2025
      %2037 = vmatpush.bf16.msra.mxu0 %v2024
      %2038 = vmatpush.bf16.msra.mxu0 %v2023
      %2039 = vmatpush.bf16.msra.mxu0 %v2022
      %2040 = vmatpush.bf16.msra.mxu0 %v2021
      %2041 = vmatpush.bf16.msra.mxu0 %v2020
      %2042 = vmatpush.bf16.msra.mxu0 %v2019
      %2043 = vmatmul.bf16.gmra.mxu0 %v1714
      %v2044 = vpop.f32.mrf.mxu0
      %v2045 = vadd.f32 0.0, %v2044
      %v2046 = vpop.f32.mrf.mxu0
      %2047 = vdwg.mxu0
      %v2048 = vadd.f32 %v1969, %v2045
      %s2049 = scalar_lea.vmem %s3, 256
      %v2050 = vld [vmem:[%s2049] sm:$0xf]
      %v2051 = vld [vmem:[%s2049 + $0x4] sm:$0xf]
      %v2052 = vld [vmem:[%s2049 + $0x8] sm:$0xf]
      %v2053 = vld [vmem:[%s2049 + $0xc] sm:$0xf]
      %v2054 = vld [vmem:[%s2049 + $0x10] sm:$0xf]
      %v2055 = vld [vmem:[%s2049 + $0x14] sm:$0xf]
      %v2056 = vld [vmem:[%s2049 + $0x18] sm:$0xf]
      %v2057 = vld [vmem:[%s2049 + $0x1c] sm:$0xf]
      %v2058 = vld [vmem:[%s2049 + $0x20] sm:$0xf]
      %v2059 = vld [vmem:[%s2049 + $0x24] sm:$0xf]
      %v2060 = vld [vmem:[%s2049 + $0x28] sm:$0xf]
      %v2061 = vld [vmem:[%s2049 + $0x2c] sm:$0xf]
      %v2062 = vld [vmem:[%s2049 + $0x30] sm:$0xf]
      %v2063 = vld [vmem:[%s2049 + $0x34] sm:$0xf]
      %v2064 = vld [vmem:[%s2049 + $0x38] sm:$0xf]
      %v2065 = vld [vmem:[%s2049 + $0x3c] sm:$0xf]
      %v2082 = vunpack.c.l.b16 %v2050
      %v2083 = vunpack.c.l.b16 %v2051
      %v2084 = vunpack.c.l.b16 %v2052
      %v2085 = vunpack.c.l.b16 %v2053
      %v2086 = vunpack.c.l.b16 %v2054
      %v2087 = vunpack.c.l.b16 %v2055
      %v2088 = vunpack.c.l.b16 %v2056
      %v2089 = vunpack.c.l.b16 %v2057
      %v2090 = vunpack.c.l.b16 %v2058
      %v2091 = vunpack.c.l.b16 %v2059
      %v2092 = vunpack.c.l.b16 %v2060
      %v2093 = vunpack.c.l.b16 %v2061
      %v2094 = vunpack.c.l.b16 %v2062
      %v2095 = vunpack.c.l.b16 %v2063
      %v2096 = vunpack.c.l.b16 %v2064
      %v2097 = vunpack.c.l.b16 %v2065
      %v2098 = vpack.c.b16 %v2083, %v2082
      %v2099 = vpack.c.b16 %v2085, %v2084
      %v2100 = vpack.c.b16 %v2087, %v2086
      %v2101 = vpack.c.b16 %v2089, %v2088
      %v2102 = vpack.c.b16 %v2091, %v2090
      %v2103 = vpack.c.b16 %v2093, %v2092
      %v2104 = vpack.c.b16 %v2095, %v2094
      %v2105 = vpack.c.b16 %v2097, %v2096
      %2114 = vmatpush.bf16.msra.mxu0 %v2105
      %2115 = vmatpush.bf16.msra.mxu0 %v2104
      %2116 = vmatpush.bf16.msra.mxu0 %v2103
      %2117 = vmatpush.bf16.msra.mxu0 %v2102
      %2118 = vmatpush.bf16.msra.mxu0 %v2101
      %2119 = vmatpush.bf16.msra.mxu0 %v2100
      %2120 = vmatpush.bf16.msra.mxu0 %v2099
      %2121 = vmatpush.bf16.msra.mxu0 %v2098
      %2122 = vmatmul.bf16.gmra.mxu0 %v1715
      %v2123 = vpop.f32.mrf.mxu0
      %v2124 = vadd.f32 0.0, %v2123
      %v2125 = vpop.f32.mrf.mxu0
      %2126 = vdwg.mxu0
      %v2127 = vadd.f32 %v2048, %v2124
      %s2128 = scalar_lea.vmem %s3, 320
      %v2129 = vld [vmem:[%s2128] sm:$0xf]
      %v2130 = vld [vmem:[%s2128 + $0x4] sm:$0xf]
      %v2131 = vld [vmem:[%s2128 + $0x8] sm:$0xf]
      %v2132 = vld [vmem:[%s2128 + $0xc] sm:$0xf]
      %v2133 = vld [vmem:[%s2128 + $0x10] sm:$0xf]
      %v2134 = vld [vmem:[%s2128 + $0x14] sm:$0xf]
      %v2135 = vld [vmem:[%s2128 + $0x18] sm:$0xf]
      %v2136 = vld [vmem:[%s2128 + $0x1c] sm:$0xf]
      %v2137 = vld [vmem:[%s2128 + $0x20] sm:$0xf]
      %v2138 = vld [vmem:[%s2128 + $0x24] sm:$0xf]
      %v2139 = vld [vmem:[%s2128 + $0x28] sm:$0xf]
      %v2140 = vld [vmem:[%s2128 + $0x2c] sm:$0xf]
      %v2141 = vld [vmem:[%s2128 + $0x30] sm:$0xf]
      %v2142 = vld [vmem:[%s2128 + $0x34] sm:$0xf]
      %v2143 = vld [vmem:[%s2128 + $0x38] sm:$0xf]
      %v2144 = vld [vmem:[%s2128 + $0x3c] sm:$0xf]
      %v2161 = vunpack.c.l.b16 %v2129
      %v2162 = vunpack.c.l.b16 %v2130
      %v2163 = vunpack.c.l.b16 %v2131
      %v2164 = vunpack.c.l.b16 %v2132
      %v2165 = vunpack.c.l.b16 %v2133
      %v2166 = vunpack.c.l.b16 %v2134
      %v2167 = vunpack.c.l.b16 %v2135
      %v2168 = vunpack.c.l.b16 %v2136
      %v2169 = vunpack.c.l.b16 %v2137
      %v2170 = vunpack.c.l.b16 %v2138
      %v2171 = vunpack.c.l.b16 %v2139
      %v2172 = vunpack.c.l.b16 %v2140
      %v2173 = vunpack.c.l.b16 %v2141
      %v2174 = vunpack.c.l.b16 %v2142
      %v2175 = vunpack.c.l.b16 %v2143
      %v2176 = vunpack.c.l.b16 %v2144
      %v2177 = vpack.c.b16 %v2162, %v2161
      %v2178 = vpack.c.b16 %v2164, %v2163
      %v2179 = vpack.c.b16 %v2166, %v2165
      %v2180 = vpack.c.b16 %v2168, %v2167
      %v2181 = vpack.c.b16 %v2170, %v2169
      %v2182 = vpack.c.b16 %v2172, %v2171
      %v2183 = vpack.c.b16 %v2174, %v2173
      %v2184 = vpack.c.b16 %v2176, %v2175
      %2193 = vmatpush.bf16.msra.mxu0 %v2184
      %2194 = vmatpush.bf16.msra.mxu0 %v2183
      %2195 = vmatpush.bf16.msra.mxu0 %v2182
      %2196 = vmatpush.bf16.msra.mxu0 %v2181
      %2197 = vmatpush.bf16.msra.mxu0 %v2180
      %2198 = vmatpush.bf16.msra.mxu0 %v2179
      %2199 = vmatpush.bf16.msra.mxu0 %v2178
      %2200 = vmatpush.bf16.msra.mxu0 %v2177
      %2201 = vmatmul.bf16.gmra.mxu0 %v1716
      %v2202 = vpop.f32.mrf.mxu0
      %v2203 = vadd.f32 0.0, %v2202
      %v2204 = vpop.f32.mrf.mxu0
      %2205 = vdwg.mxu0
      %v2206 = vadd.f32 %v2127, %v2203
      %s2207 = scalar_lea.vmem %s3, 384
      %v2208 = vld [vmem:[%s2207] sm:$0xf]
      %v2209 = vld [vmem:[%s2207 + $0x4] sm:$0xf]
      %v2210 = vld [vmem:[%s2207 + $0x8] sm:$0xf]
      %v2211 = vld [vmem:[%s2207 + $0xc] sm:$0xf]
      %v2212 = vld [vmem:[%s2207 + $0x10] sm:$0xf]
      %v2213 = vld [vmem:[%s2207 + $0x14] sm:$0xf]
      %v2214 = vld [vmem:[%s2207 + $0x18] sm:$0xf]
      %v2215 = vld [vmem:[%s2207 + $0x1c] sm:$0xf]
      %v2216 = vld [vmem:[%s2207 + $0x20] sm:$0xf]
      %v2217 = vld [vmem:[%s2207 + $0x24] sm:$0xf]
      %v2218 = vld [vmem:[%s2207 + $0x28] sm:$0xf]
      %v2219 = vld [vmem:[%s2207 + $0x2c] sm:$0xf]
      %v2220 = vld [vmem:[%s2207 + $0x30] sm:$0xf]
      %v2221 = vld [vmem:[%s2207 + $0x34] sm:$0xf]
      %v2222 = vld [vmem:[%s2207 + $0x38] sm:$0xf]
      %v2223 = vld [vmem:[%s2207 + $0x3c] sm:$0xf]
      %v2240 = vunpack.c.l.b16 %v2208
      %v2241 = vunpack.c.l.b16 %v2209
      %v2242 = vunpack.c.l.b16 %v2210
      %v2243 = vunpack.c.l.b16 %v2211
      %v2244 = vunpack.c.l.b16 %v2212
      %v2245 = vunpack.c.l.b16 %v2213
      %v2246 = vunpack.c.l.b16 %v2214
      %v2247 = vunpack.c.l.b16 %v2215
      %v2248 = vunpack.c.l.b16 %v2216
      %v2249 = vunpack.c.l.b16 %v2217
      %v2250 = vunpack.c.l.b16 %v2218
      %v2251 = vunpack.c.l.b16 %v2219
      %v2252 = vunpack.c.l.b16 %v2220
      %v2253 = vunpack.c.l.b16 %v2221
      %v2254 = vunpack.c.l.b16 %v2222
      %v2255 = vunpack.c.l.b16 %v2223
      %v2256 = vpack.c.b16 %v2241, %v2240
      %v2257 = vpack.c.b16 %v2243, %v2242
      %v2258 = vpack.c.b16 %v2245, %v2244
      %v2259 = vpack.c.b16 %v2247, %v2246
      %v2260 = vpack.c.b16 %v2249, %v2248
      %v2261 = vpack.c.b16 %v2251, %v2250
      %v2262 = vpack.c.b16 %v2253, %v2252
      %v2263 = vpack.c.b16 %v2255, %v2254
      %2272 = vmatpush.bf16.msra.mxu0 %v2263
      %2273 = vmatpush.bf16.msra.mxu0 %v2262
      %2274 = vmatpush.bf16.msra.mxu0 %v2261
      %2275 = vmatpush.bf16.msra.mxu0 %v2260
      %2276 = vmatpush.bf16.msra.mxu0 %v2259
      %2277 = vmatpush.bf16.msra.mxu0 %v2258
      %2278 = vmatpush.bf16.msra.mxu0 %v2257
      %2279 = vmatpush.bf16.msra.mxu0 %v2256
      %2280 = vmatmul.bf16.gmra.mxu0 %v1717
      %v2281 = vpop.f32.mrf.mxu0
      %v2282 = vadd.f32 0.0, %v2281
      %v2283 = vpop.f32.mrf.mxu0
      %2284 = vdwg.mxu0
      %v2285 = vadd.f32 %v2206, %v2282
      %s2286 = scalar_lea.vmem %s3, 448
      %v2287 = vld [vmem:[%s2286] sm:$0xf]
      %v2288 = vld [vmem:[%s2286 + $0x4] sm:$0xf]
      %v2289 = vld [vmem:[%s2286 + $0x8] sm:$0xf]
      %v2290 = vld [vmem:[%s2286 + $0xc] sm:$0xf]
      %v2291 = vld [vmem:[%s2286 + $0x10] sm:$0xf]
      %v2292 = vld [vmem:[%s2286 + $0x14] sm:$0xf]
      %v2293 = vld [vmem:[%s2286 + $0x18] sm:$0xf]
      %v2294 = vld [vmem:[%s2286 + $0x1c] sm:$0xf]
      %v2295 = vld [vmem:[%s2286 + $0x20] sm:$0xf]
      %v2296 = vld [vmem:[%s2286 + $0x24] sm:$0xf]
      %v2297 = vld [vmem:[%s2286 + $0x28] sm:$0xf]
      %v2298 = vld [vmem:[%s2286 + $0x2c] sm:$0xf]
      %v2299 = vld [vmem:[%s2286 + $0x30] sm:$0xf]
      %v2300 = vld [vmem:[%s2286 + $0x34] sm:$0xf]
      %v2301 = vld [vmem:[%s2286 + $0x38] sm:$0xf]
      %v2302 = vld [vmem:[%s2286 + $0x3c] sm:$0xf]
      %v2319 = vunpack.c.l.b16 %v2287
      %v2320 = vunpack.c.l.b16 %v2288
      %v2321 = vunpack.c.l.b16 %v2289
      %v2322 = vunpack.c.l.b16 %v2290
      %v2323 = vunpack.c.l.b16 %v2291
      %v2324 = vunpack.c.l.b16 %v2292
      %v2325 = vunpack.c.l.b16 %v2293
      %v2326 = vunpack.c.l.b16 %v2294
      %v2327 = vunpack.c.l.b16 %v2295
      %v2328 = vunpack.c.l.b16 %v2296
      %v2329 = vunpack.c.l.b16 %v2297
      %v2330 = vunpack.c.l.b16 %v2298
      %v2331 = vunpack.c.l.b16 %v2299
      %v2332 = vunpack.c.l.b16 %v2300
      %v2333 = vunpack.c.l.b16 %v2301
      %v2334 = vunpack.c.l.b16 %v2302
      %v2335 = vpack.c.b16 %v2320, %v2319
      %v2336 = vpack.c.b16 %v2322, %v2321
      %v2337 = vpack.c.b16 %v2324, %v2323
      %v2338 = vpack.c.b16 %v2326, %v2325
      %v2339 = vpack.c.b16 %v2328, %v2327
      %v2340 = vpack.c.b16 %v2330, %v2329
      %v2341 = vpack.c.b16 %v2332, %v2331
      %v2342 = vpack.c.b16 %v2334, %v2333
      %2351 = vmatpush.bf16.msra.mxu0 %v2342
      %2352 = vmatpush.bf16.msra.mxu0 %v2341
      %2353 = vmatpush.bf16.msra.mxu0 %v2340
      %2354 = vmatpush.bf16.msra.mxu0 %v2339
      %2355 = vmatpush.bf16.msra.mxu0 %v2338
      %2356 = vmatpush.bf16.msra.mxu0 %v2337
      %2357 = vmatpush.bf16.msra.mxu0 %v2336
      %2358 = vmatpush.bf16.msra.mxu0 %v2335
      %2359 = vmatmul.bf16.gmra.mxu0 %v1718
      %v2360 = vpop.f32.mrf.mxu0
      %v2361 = vadd.f32 0.0, %v2360
      %v2362 = vpop.f32.mrf.mxu0
      %2363 = vdwg.mxu0
      %v2364 = vadd.f32 %v2285, %v2361
      %s2365 = scalar_lea.vmem %s3, 512
      %v2366 = vld [vmem:[%s2365] sm:$0xf]
      %v2367 = vld [vmem:[%s2365 + $0x4] sm:$0xf]
      %v2368 = vld [vmem:[%s2365 + $0x8] sm:$0xf]
      %v2369 = vld [vmem:[%s2365 + $0xc] sm:$0xf]
      %v2370 = vld [vmem:[%s2365 + $0x10] sm:$0xf]
      %v2371 = vld [vmem:[%s2365 + $0x14] sm:$0xf]
      %v2372 = vld [vmem:[%s2365 + $0x18] sm:$0xf]
      %v2373 = vld [vmem:[%s2365 + $0x1c] sm:$0xf]
      %v2374 = vld [vmem:[%s2365 + $0x20] sm:$0xf]
      %v2375 = vld [vmem:[%s2365 + $0x24] sm:$0xf]
      %v2376 = vld [vmem:[%s2365 + $0x28] sm:$0xf]
      %v2377 = vld [vmem:[%s2365 + $0x2c] sm:$0xf]
      %v2378 = vld [vmem:[%s2365 + $0x30] sm:$0xf]
      %v2379 = vld [vmem:[%s2365 + $0x34] sm:$0xf]
      %v2380 = vld [vmem:[%s2365 + $0x38] sm:$0xf]
      %v2381 = vld [vmem:[%s2365 + $0x3c] sm:$0xf]
      %v2398 = vunpack.c.l.b16 %v2366
      %v2399 = vunpack.c.l.b16 %v2367
      %v2400 = vunpack.c.l.b16 %v2368
      %v2401 = vunpack.c.l.b16 %v2369
      %v2402 = vunpack.c.l.b16 %v2370
      %v2403 = vunpack.c.l.b16 %v2371
      %v2404 = vunpack.c.l.b16 %v2372
      %v2405 = vunpack.c.l.b16 %v2373
      %v2406 = vunpack.c.l.b16 %v2374
      %v2407 = vunpack.c.l.b16 %v2375
      %v2408 = vunpack.c.l.b16 %v2376
      %v2409 = vunpack.c.l.b16 %v2377
      %v2410 = vunpack.c.l.b16 %v2378
      %v2411 = vunpack.c.l.b16 %v2379
      %v2412 = vunpack.c.l.b16 %v2380
      %v2413 = vunpack.c.l.b16 %v2381
      %v2414 = vpack.c.b16 %v2399, %v2398
      %v2415 = vpack.c.b16 %v2401, %v2400
      %v2416 = vpack.c.b16 %v2403, %v2402
      %v2417 = vpack.c.b16 %v2405, %v2404
      %v2418 = vpack.c.b16 %v2407, %v2406
      %v2419 = vpack.c.b16 %v2409, %v2408
      %v2420 = vpack.c.b16 %v2411, %v2410
      %v2421 = vpack.c.b16 %v2413, %v2412
      %2430 = vmatpush.bf16.msra.mxu0 %v2421
      %2431 = vmatpush.bf16.msra.mxu0 %v2420
      %2432 = vmatpush.bf16.msra.mxu0 %v2419
      %2433 = vmatpush.bf16.msra.mxu0 %v2418
      %2434 = vmatpush.bf16.msra.mxu0 %v2417
      %2435 = vmatpush.bf16.msra.mxu0 %v2416
      %2436 = vmatpush.bf16.msra.mxu0 %v2415
      %2437 = vmatpush.bf16.msra.mxu0 %v2414
      %2438 = vmatmul.bf16.gmra.mxu0 %v1719
      %v2439 = vpop.f32.mrf.mxu0
      %v2440 = vadd.f32 0.0, %v2439
      %v2441 = vpop.f32.mrf.mxu0
      %2442 = vdwg.mxu0
      %v2443 = vadd.f32 %v2364, %v2440
      %s2444 = scalar_lea.vmem %s3, 576
      %v2445 = vld [vmem:[%s2444] sm:$0xf]
      %v2446 = vld [vmem:[%s2444 + $0x4] sm:$0xf]
      %v2447 = vld [vmem:[%s2444 + $0x8] sm:$0xf]
      %v2448 = vld [vmem:[%s2444 + $0xc] sm:$0xf]
      %v2449 = vld [vmem:[%s2444 + $0x10] sm:$0xf]
      %v2450 = vld [vmem:[%s2444 + $0x14] sm:$0xf]
      %v2451 = vld [vmem:[%s2444 + $0x18] sm:$0xf]
      %v2452 = vld [vmem:[%s2444 + $0x1c] sm:$0xf]
      %v2453 = vld [vmem:[%s2444 + $0x20] sm:$0xf]
      %v2454 = vld [vmem:[%s2444 + $0x24] sm:$0xf]
      %v2455 = vld [vmem:[%s2444 + $0x28] sm:$0xf]
      %v2456 = vld [vmem:[%s2444 + $0x2c] sm:$0xf]
      %v2457 = vld [vmem:[%s2444 + $0x30] sm:$0xf]
      %v2458 = vld [vmem:[%s2444 + $0x34] sm:$0xf]
      %v2459 = vld [vmem:[%s2444 + $0x38] sm:$0xf]
      %v2460 = vld [vmem:[%s2444 + $0x3c] sm:$0xf]
      %v2477 = vunpack.c.l.b16 %v2445
      %v2478 = vunpack.c.l.b16 %v2446
      %v2479 = vunpack.c.l.b16 %v2447
      %v2480 = vunpack.c.l.b16 %v2448
      %v2481 = vunpack.c.l.b16 %v2449
      %v2482 = vunpack.c.l.b16 %v2450
      %v2483 = vunpack.c.l.b16 %v2451
      %v2484 = vunpack.c.l.b16 %v2452
      %v2485 = vunpack.c.l.b16 %v2453
      %v2486 = vunpack.c.l.b16 %v2454
      %v2487 = vunpack.c.l.b16 %v2455
      %v2488 = vunpack.c.l.b16 %v2456
      %v2489 = vunpack.c.l.b16 %v2457
      %v2490 = vunpack.c.l.b16 %v2458
      %v2491 = vunpack.c.l.b16 %v2459
      %v2492 = vunpack.c.l.b16 %v2460
      %v2493 = vpack.c.b16 %v2478, %v2477
      %v2494 = vpack.c.b16 %v2480, %v2479
      %v2495 = vpack.c.b16 %v2482, %v2481
      %v2496 = vpack.c.b16 %v2484, %v2483
      %v2497 = vpack.c.b16 %v2486, %v2485
      %v2498 = vpack.c.b16 %v2488, %v2487
      %v2499 = vpack.c.b16 %v2490, %v2489
      %v2500 = vpack.c.b16 %v2492, %v2491
      %2509 = vmatpush.bf16.msra.mxu0 %v2500
      %2510 = vmatpush.bf16.msra.mxu0 %v2499
      %2511 = vmatpush.bf16.msra.mxu0 %v2498
      %2512 = vmatpush.bf16.msra.mxu0 %v2497
      %2513 = vmatpush.bf16.msra.mxu0 %v2496
      %2514 = vmatpush.bf16.msra.mxu0 %v2495
      %2515 = vmatpush.bf16.msra.mxu0 %v2494
      %2516 = vmatpush.bf16.msra.mxu0 %v2493
      %2517 = vmatmul.bf16.gmra.mxu0 %v1720
      %v2518 = vpop.f32.mrf.mxu0
      %v2519 = vadd.f32 0.0, %v2518
      %v2520 = vpop.f32.mrf.mxu0
      %2521 = vdwg.mxu0
      %v2522 = vadd.f32 %v2443, %v2519
      %s2523 = scalar_lea.vmem %s3, 640
      %v2524 = vld [vmem:[%s2523] sm:$0xf]
      %v2525 = vld [vmem:[%s2523 + $0x4] sm:$0xf]
      %v2526 = vld [vmem:[%s2523 + $0x8] sm:$0xf]
      %v2527 = vld [vmem:[%s2523 + $0xc] sm:$0xf]
      %v2528 = vld [vmem:[%s2523 + $0x10] sm:$0xf]
      %v2529 = vld [vmem:[%s2523 + $0x14] sm:$0xf]
      %v2530 = vld [vmem:[%s2523 + $0x18] sm:$0xf]
      %v2531 = vld [vmem:[%s2523 + $0x1c] sm:$0xf]
      %v2532 = vld [vmem:[%s2523 + $0x20] sm:$0xf]
      %v2533 = vld [vmem:[%s2523 + $0x24] sm:$0xf]
      %v2534 = vld [vmem:[%s2523 + $0x28] sm:$0xf]
      %v2535 = vld [vmem:[%s2523 + $0x2c] sm:$0xf]
      %v2536 = vld [vmem:[%s2523 + $0x30] sm:$0xf]
      %v2537 = vld [vmem:[%s2523 + $0x34] sm:$0xf]
      %v2538 = vld [vmem:[%s2523 + $0x38] sm:$0xf]
      %v2539 = vld [vmem:[%s2523 + $0x3c] sm:$0xf]
      %v2556 = vunpack.c.l.b16 %v2524
      %v2557 = vunpack.c.l.b16 %v2525
      %v2558 = vunpack.c.l.b16 %v2526
      %v2559 = vunpack.c.l.b16 %v2527
      %v2560 = vunpack.c.l.b16 %v2528
      %v2561 = vunpack.c.l.b16 %v2529
      %v2562 = vunpack.c.l.b16 %v2530
      %v2563 = vunpack.c.l.b16 %v2531
      %v2564 = vunpack.c.l.b16 %v2532
      %v2565 = vunpack.c.l.b16 %v2533
      %v2566 = vunpack.c.l.b16 %v2534
      %v2567 = vunpack.c.l.b16 %v2535
      %v2568 = vunpack.c.l.b16 %v2536
      %v2569 = vunpack.c.l.b16 %v2537
      %v2570 = vunpack.c.l.b16 %v2538
      %v2571 = vunpack.c.l.b16 %v2539
      %v2572 = vpack.c.b16 %v2557, %v2556
      %v2573 = vpack.c.b16 %v2559, %v2558
      %v2574 = vpack.c.b16 %v2561, %v2560
      %v2575 = vpack.c.b16 %v2563, %v2562
      %v2576 = vpack.c.b16 %v2565, %v2564
      %v2577 = vpack.c.b16 %v2567, %v2566
      %v2578 = vpack.c.b16 %v2569, %v2568
      %v2579 = vpack.c.b16 %v2571, %v2570
      %2588 = vmatpush.bf16.msra.mxu0 %v2579
      %2589 = vmatpush.bf16.msra.mxu0 %v2578
      %2590 = vmatpush.bf16.msra.mxu0 %v2577
      %2591 = vmatpush.bf16.msra.mxu0 %v2576
      %2592 = vmatpush.bf16.msra.mxu0 %v2575
      %2593 = vmatpush.bf16.msra.mxu0 %v2574
      %2594 = vmatpush.bf16.msra.mxu0 %v2573
      %2595 = vmatpush.bf16.msra.mxu0 %v2572
      %2596 = vmatmul.bf16.gmra.mxu0 %v1721
      %v2597 = vpop.f32.mrf.mxu0
      %v2598 = vadd.f32 0.0, %v2597
      %v2599 = vpop.f32.mrf.mxu0
      %2600 = vdwg.mxu0
      %v2601 = vadd.f32 %v2522, %v2598
      %s2602 = scalar_lea.vmem %s3, 704
      %v2603 = vld [vmem:[%s2602] sm:$0xf]
      %v2604 = vld [vmem:[%s2602 + $0x4] sm:$0xf]
      %v2605 = vld [vmem:[%s2602 + $0x8] sm:$0xf]
      %v2606 = vld [vmem:[%s2602 + $0xc] sm:$0xf]
      %v2607 = vld [vmem:[%s2602 + $0x10] sm:$0xf]
      %v2608 = vld [vmem:[%s2602 + $0x14] sm:$0xf]
      %v2609 = vld [vmem:[%s2602 + $0x18] sm:$0xf]
      %v2610 = vld [vmem:[%s2602 + $0x1c] sm:$0xf]
      %v2611 = vld [vmem:[%s2602 + $0x20] sm:$0xf]
      %v2612 = vld [vmem:[%s2602 + $0x24] sm:$0xf]
      %v2613 = vld [vmem:[%s2602 + $0x28] sm:$0xf]
      %v2614 = vld [vmem:[%s2602 + $0x2c] sm:$0xf]
      %v2615 = vld [vmem:[%s2602 + $0x30] sm:$0xf]
      %v2616 = vld [vmem:[%s2602 + $0x34] sm:$0xf]
      %v2617 = vld [vmem:[%s2602 + $0x38] sm:$0xf]
      %v2618 = vld [vmem:[%s2602 + $0x3c] sm:$0xf]
      %v2635 = vunpack.c.l.b16 %v2603
      %v2636 = vunpack.c.l.b16 %v2604
      %v2637 = vunpack.c.l.b16 %v2605
      %v2638 = vunpack.c.l.b16 %v2606
      %v2639 = vunpack.c.l.b16 %v2607
      %v2640 = vunpack.c.l.b16 %v2608
      %v2641 = vunpack.c.l.b16 %v2609
      %v2642 = vunpack.c.l.b16 %v2610
      %v2643 = vunpack.c.l.b16 %v2611
      %v2644 = vunpack.c.l.b16 %v2612
      %v2645 = vunpack.c.l.b16 %v2613
      %v2646 = vunpack.c.l.b16 %v2614
      %v2647 = vunpack.c.l.b16 %v2615
      %v2648 = vunpack.c.l.b16 %v2616
      %v2649 = vunpack.c.l.b16 %v2617
      %v2650 = vunpack.c.l.b16 %v2618
      %v2651 = vpack.c.b16 %v2636, %v2635
      %v2652 = vpack.c.b16 %v2638, %v2637
      %v2653 = vpack.c.b16 %v2640, %v2639
      %v2654 = vpack.c.b16 %v2642, %v2641
      %v2655 = vpack.c.b16 %v2644, %v2643
      %v2656 = vpack.c.b16 %v2646, %v2645
      %v2657 = vpack.c.b16 %v2648, %v2647
      %v2658 = vpack.c.b16 %v2650, %v2649
      %2667 = vmatpush.bf16.msra.mxu0 %v2658
      %2668 = vmatpush.bf16.msra.mxu0 %v2657
      %2669 = vmatpush.bf16.msra.mxu0 %v2656
      %2670 = vmatpush.bf16.msra.mxu0 %v2655
      %2671 = vmatpush.bf16.msra.mxu0 %v2654
      %2672 = vmatpush.bf16.msra.mxu0 %v2653
      %2673 = vmatpush.bf16.msra.mxu0 %v2652
      %2674 = vmatpush.bf16.msra.mxu0 %v2651
      %2675 = vmatmul.bf16.gmra.mxu0 %v1722
      %v2676 = vpop.f32.mrf.mxu0
      %v2677 = vadd.f32 0.0, %v2676
      %v2678 = vpop.f32.mrf.mxu0
      %2679 = vdwg.mxu0
      %v2680 = vadd.f32 %v2601, %v2677
      %s2681 = scalar_lea.vmem %s3, 768
      %v2682 = vld [vmem:[%s2681] sm:$0xf]
      %v2683 = vld [vmem:[%s2681 + $0x4] sm:$0xf]
      %v2684 = vld [vmem:[%s2681 + $0x8] sm:$0xf]
      %v2685 = vld [vmem:[%s2681 + $0xc] sm:$0xf]
      %v2686 = vld [vmem:[%s2681 + $0x10] sm:$0xf]
      %v2687 = vld [vmem:[%s2681 + $0x14] sm:$0xf]
      %v2688 = vld [vmem:[%s2681 + $0x18] sm:$0xf]
      %v2689 = vld [vmem:[%s2681 + $0x1c] sm:$0xf]
      %v2690 = vld [vmem:[%s2681 + $0x20] sm:$0xf]
      %v2691 = vld [vmem:[%s2681 + $0x24] sm:$0xf]
      %v2692 = vld [vmem:[%s2681 + $0x28] sm:$0xf]
      %v2693 = vld [vmem:[%s2681 + $0x2c] sm:$0xf]
      %v2694 = vld [vmem:[%s2681 + $0x30] sm:$0xf]
      %v2695 = vld [vmem:[%s2681 + $0x34] sm:$0xf]
      %v2696 = vld [vmem:[%s2681 + $0x38] sm:$0xf]
      %v2697 = vld [vmem:[%s2681 + $0x3c] sm:$0xf]
      %v2714 = vunpack.c.l.b16 %v2682
      %v2715 = vunpack.c.l.b16 %v2683
      %v2716 = vunpack.c.l.b16 %v2684
      %v2717 = vunpack.c.l.b16 %v2685
      %v2718 = vunpack.c.l.b16 %v2686
      %v2719 = vunpack.c.l.b16 %v2687
      %v2720 = vunpack.c.l.b16 %v2688
      %v2721 = vunpack.c.l.b16 %v2689
      %v2722 = vunpack.c.l.b16 %v2690
      %v2723 = vunpack.c.l.b16 %v2691
      %v2724 = vunpack.c.l.b16 %v2692
      %v2725 = vunpack.c.l.b16 %v2693
      %v2726 = vunpack.c.l.b16 %v2694
      %v2727 = vunpack.c.l.b16 %v2695
      %v2728 = vunpack.c.l.b16 %v2696
      %v2729 = vunpack.c.l.b16 %v2697
      %v2730 = vpack.c.b16 %v2715, %v2714
      %v2731 = vpack.c.b16 %v2717, %v2716
      %v2732 = vpack.c.b16 %v2719, %v2718
      %v2733 = vpack.c.b16 %v2721, %v2720
      %v2734 = vpack.c.b16 %v2723, %v2722
      %v2735 = vpack.c.b16 %v2725, %v2724
      %v2736 = vpack.c.b16 %v2727, %v2726
      %v2737 = vpack.c.b16 %v2729, %v2728
      %2746 = vmatpush.bf16.msra.mxu0 %v2737
      %2747 = vmatpush.bf16.msra.mxu0 %v2736
      %2748 = vmatpush.bf16.msra.mxu0 %v2735
      %2749 = vmatpush.bf16.msra.mxu0 %v2734
      %2750 = vmatpush.bf16.msra.mxu0 %v2733
      %2751 = vmatpush.bf16.msra.mxu0 %v2732
      %2752 = vmatpush.bf16.msra.mxu0 %v2731
      %2753 = vmatpush.bf16.msra.mxu0 %v2730
      %2754 = vmatmul.bf16.gmra.mxu0 %v1723
      %v2755 = vpop.f32.mrf.mxu0
      %v2756 = vadd.f32 0.0, %v2755
      %v2757 = vpop.f32.mrf.mxu0
      %2758 = vdwg.mxu0
      %v2759 = vadd.f32 %v2680, %v2756
      %s2760 = scalar_lea.vmem %s3, 832
      %v2761 = vld [vmem:[%s2760] sm:$0xf]
      %v2762 = vld [vmem:[%s2760 + $0x4] sm:$0xf]
      %v2763 = vld [vmem:[%s2760 + $0x8] sm:$0xf]
      %v2764 = vld [vmem:[%s2760 + $0xc] sm:$0xf]
      %v2765 = vld [vmem:[%s2760 + $0x10] sm:$0xf]
      %v2766 = vld [vmem:[%s2760 + $0x14] sm:$0xf]
      %v2767 = vld [vmem:[%s2760 + $0x18] sm:$0xf]
      %v2768 = vld [vmem:[%s2760 + $0x1c] sm:$0xf]
      %v2769 = vld [vmem:[%s2760 + $0x20] sm:$0xf]
      %v2770 = vld [vmem:[%s2760 + $0x24] sm:$0xf]
      %v2771 = vld [vmem:[%s2760 + $0x28] sm:$0xf]
      %v2772 = vld [vmem:[%s2760 + $0x2c] sm:$0xf]
      %v2773 = vld [vmem:[%s2760 + $0x30] sm:$0xf]
      %v2774 = vld [vmem:[%s2760 + $0x34] sm:$0xf]
      %v2775 = vld [vmem:[%s2760 + $0x38] sm:$0xf]
      %v2776 = vld [vmem:[%s2760 + $0x3c] sm:$0xf]
      %v2793 = vunpack.c.l.b16 %v2761
      %v2794 = vunpack.c.l.b16 %v2762
      %v2795 = vunpack.c.l.b16 %v2763
      %v2796 = vunpack.c.l.b16 %v2764
      %v2797 = vunpack.c.l.b16 %v2765
      %v2798 = vunpack.c.l.b16 %v2766
      %v2799 = vunpack.c.l.b16 %v2767
      %v2800 = vunpack.c.l.b16 %v2768
      %v2801 = vunpack.c.l.b16 %v2769
      %v2802 = vunpack.c.l.b16 %v2770
      %v2803 = vunpack.c.l.b16 %v2771
      %v2804 = vunpack.c.l.b16 %v2772
      %v2805 = vunpack.c.l.b16 %v2773
      %v2806 = vunpack.c.l.b16 %v2774
      %v2807 = vunpack.c.l.b16 %v2775
      %v2808 = vunpack.c.l.b16 %v2776
      %v2809 = vpack.c.b16 %v2794, %v2793
      %v2810 = vpack.c.b16 %v2796, %v2795
      %v2811 = vpack.c.b16 %v2798, %v2797
      %v2812 = vpack.c.b16 %v2800, %v2799
      %v2813 = vpack.c.b16 %v2802, %v2801
      %v2814 = vpack.c.b16 %v2804, %v2803
      %v2815 = vpack.c.b16 %v2806, %v2805
      %v2816 = vpack.c.b16 %v2808, %v2807
      %2825 = vmatpush.bf16.msra.mxu0 %v2816
      %2826 = vmatpush.bf16.msra.mxu0 %v2815
      %2827 = vmatpush.bf16.msra.mxu0 %v2814
      %2828 = vmatpush.bf16.msra.mxu0 %v2813
      %2829 = vmatpush.bf16.msra.mxu0 %v2812
      %2830 = vmatpush.bf16.msra.mxu0 %v2811
      %2831 = vmatpush.bf16.msra.mxu0 %v2810
      %2832 = vmatpush.bf16.msra.mxu0 %v2809
      %2833 = vmatmul.bf16.gmra.mxu0 %v1724
      %v2834 = vpop.f32.mrf.mxu0
      %v2835 = vadd.f32 0.0, %v2834
      %v2836 = vpop.f32.mrf.mxu0
      %2837 = vdwg.mxu0
      %v2838 = vadd.f32 %v2759, %v2835
      %s2839 = scalar_lea.vmem %s3, 896
      %v2840 = vld [vmem:[%s2839] sm:$0xf]
      %v2841 = vld [vmem:[%s2839 + $0x4] sm:$0xf]
      %v2842 = vld [vmem:[%s2839 + $0x8] sm:$0xf]
      %v2843 = vld [vmem:[%s2839 + $0xc] sm:$0xf]
      %v2844 = vld [vmem:[%s2839 + $0x10] sm:$0xf]
      %v2845 = vld [vmem:[%s2839 + $0x14] sm:$0xf]
      %v2846 = vld [vmem:[%s2839 + $0x18] sm:$0xf]
      %v2847 = vld [vmem:[%s2839 + $0x1c] sm:$0xf]
      %v2848 = vld [vmem:[%s2839 + $0x20] sm:$0xf]
      %v2849 = vld [vmem:[%s2839 + $0x24] sm:$0xf]
      %v2850 = vld [vmem:[%s2839 + $0x28] sm:$0xf]
      %v2851 = vld [vmem:[%s2839 + $0x2c] sm:$0xf]
      %v2852 = vld [vmem:[%s2839 + $0x30] sm:$0xf]
      %v2853 = vld [vmem:[%s2839 + $0x34] sm:$0xf]
      %v2854 = vld [vmem:[%s2839 + $0x38] sm:$0xf]
      %v2855 = vld [vmem:[%s2839 + $0x3c] sm:$0xf]
      %v2872 = vunpack.c.l.b16 %v2840
      %v2873 = vunpack.c.l.b16 %v2841
      %v2874 = vunpack.c.l.b16 %v2842
      %v2875 = vunpack.c.l.b16 %v2843
      %v2876 = vunpack.c.l.b16 %v2844
      %v2877 = vunpack.c.l.b16 %v2845
      %v2878 = vunpack.c.l.b16 %v2846
      %v2879 = vunpack.c.l.b16 %v2847
      %v2880 = vunpack.c.l.b16 %v2848
      %v2881 = vunpack.c.l.b16 %v2849
      %v2882 = vunpack.c.l.b16 %v2850
      %v2883 = vunpack.c.l.b16 %v2851
      %v2884 = vunpack.c.l.b16 %v2852
      %v2885 = vunpack.c.l.b16 %v2853
      %v2886 = vunpack.c.l.b16 %v2854
      %v2887 = vunpack.c.l.b16 %v2855
      %v2888 = vpack.c.b16 %v2873, %v2872
      %v2889 = vpack.c.b16 %v2875, %v2874
      %v2890 = vpack.c.b16 %v2877, %v2876
      %v2891 = vpack.c.b16 %v2879, %v2878
      %v2892 = vpack.c.b16 %v2881, %v2880
      %v2893 = vpack.c.b16 %v2883, %v2882
      %v2894 = vpack.c.b16 %v2885, %v2884
      %v2895 = vpack.c.b16 %v2887, %v2886
      %2904 = vmatpush.bf16.msra.mxu0 %v2895
      %2905 = vmatpush.bf16.msra.mxu0 %v2894
      %2906 = vmatpush.bf16.msra.mxu0 %v2893
      %2907 = vmatpush.bf16.msra.mxu0 %v2892
      %2908 = vmatpush.bf16.msra.mxu0 %v2891
      %2909 = vmatpush.bf16.msra.mxu0 %v2890
      %2910 = vmatpush.bf16.msra.mxu0 %v2889
      %2911 = vmatpush.bf16.msra.mxu0 %v2888
      %2912 = vmatmul.bf16.gmra.mxu0 %v1725
      %v2913 = vpop.f32.mrf.mxu0
      %v2914 = vadd.f32 0.0, %v2913
      %v2915 = vpop.f32.mrf.mxu0
      %2916 = vdwg.mxu0
      %v2917 = vadd.f32 %v2838, %v2914
      %s2918 = scalar_lea.vmem %s3, 960
      %v2919 = vld [vmem:[%s2918] sm:$0xf]
      %v2920 = vld [vmem:[%s2918 + $0x4] sm:$0xf]
      %v2921 = vld [vmem:[%s2918 + $0x8] sm:$0xf]
      %v2922 = vld [vmem:[%s2918 + $0xc] sm:$0xf]
      %v2923 = vld [vmem:[%s2918 + $0x10] sm:$0xf]
      %v2924 = vld [vmem:[%s2918 + $0x14] sm:$0xf]
      %v2925 = vld [vmem:[%s2918 + $0x18] sm:$0xf]
      %v2926 = vld [vmem:[%s2918 + $0x1c] sm:$0xf]
      %v2927 = vld [vmem:[%s2918 + $0x20] sm:$0xf]
      %v2928 = vld [vmem:[%s2918 + $0x24] sm:$0xf]
      %v2929 = vld [vmem:[%s2918 + $0x28] sm:$0xf]
      %v2930 = vld [vmem:[%s2918 + $0x2c] sm:$0xf]
      %v2931 = vld [vmem:[%s2918 + $0x30] sm:$0xf]
      %v2932 = vld [vmem:[%s2918 + $0x34] sm:$0xf]
      %v2933 = vld [vmem:[%s2918 + $0x38] sm:$0xf]
      %v2934 = vld [vmem:[%s2918 + $0x3c] sm:$0xf]
      %v2951 = vunpack.c.l.b16 %v2919
      %v2952 = vunpack.c.l.b16 %v2920
      %v2953 = vunpack.c.l.b16 %v2921
      %v2954 = vunpack.c.l.b16 %v2922
      %v2955 = vunpack.c.l.b16 %v2923
      %v2956 = vunpack.c.l.b16 %v2924
      %v2957 = vunpack.c.l.b16 %v2925
      %v2958 = vunpack.c.l.b16 %v2926
      %v2959 = vunpack.c.l.b16 %v2927
      %v2960 = vunpack.c.l.b16 %v2928
      %v2961 = vunpack.c.l.b16 %v2929
      %v2962 = vunpack.c.l.b16 %v2930
      %v2963 = vunpack.c.l.b16 %v2931
      %v2964 = vunpack.c.l.b16 %v2932
      %v2965 = vunpack.c.l.b16 %v2933
      %v2966 = vunpack.c.l.b16 %v2934
      %v2967 = vpack.c.b16 %v2952, %v2951
      %v2968 = vpack.c.b16 %v2954, %v2953
      %v2969 = vpack.c.b16 %v2956, %v2955
      %v2970 = vpack.c.b16 %v2958, %v2957
      %v2971 = vpack.c.b16 %v2960, %v2959
      %v2972 = vpack.c.b16 %v2962, %v2961
      %v2973 = vpack.c.b16 %v2964, %v2963
      %v2974 = vpack.c.b16 %v2966, %v2965
      %2983 = vmatpush.bf16.msra.mxu0 %v2974
      %2984 = vmatpush.bf16.msra.mxu0 %v2973
      %2985 = vmatpush.bf16.msra.mxu0 %v2972
      %2986 = vmatpush.bf16.msra.mxu0 %v2971
      %2987 = vmatpush.bf16.msra.mxu0 %v2970
      %2988 = vmatpush.bf16.msra.mxu0 %v2969
      %2989 = vmatpush.bf16.msra.mxu0 %v2968
      %2990 = vmatpush.bf16.msra.mxu0 %v2967
      %2991 = vmatmul.bf16.gmra.mxu0 %v1726
      %v2992 = vpop.f32.mrf.mxu0
      %v2993 = vadd.f32 0.0, %v2992
      %v2994 = vpop.f32.mrf.mxu0
      %2995 = vdwg.mxu0
      %v2996 = vadd.f32 %v2917, %v2993
      %s2997 = scalar_lea.vmem %s3, 1024
      %v2998 = vld [vmem:[%s2997] sm:$0xf]
      %v2999 = vld [vmem:[%s2997 + $0x4] sm:$0xf]
      %v3000 = vld [vmem:[%s2997 + $0x8] sm:$0xf]
      %v3001 = vld [vmem:[%s2997 + $0xc] sm:$0xf]
      %v3002 = vld [vmem:[%s2997 + $0x10] sm:$0xf]
      %v3003 = vld [vmem:[%s2997 + $0x14] sm:$0xf]
      %v3004 = vld [vmem:[%s2997 + $0x18] sm:$0xf]
      %v3005 = vld [vmem:[%s2997 + $0x1c] sm:$0xf]
      %v3006 = vld [vmem:[%s2997 + $0x20] sm:$0xf]
      %v3007 = vld [vmem:[%s2997 + $0x24] sm:$0xf]
      %v3008 = vld [vmem:[%s2997 + $0x28] sm:$0xf]
      %v3009 = vld [vmem:[%s2997 + $0x2c] sm:$0xf]
      %v3010 = vld [vmem:[%s2997 + $0x30] sm:$0xf]
      %v3011 = vld [vmem:[%s2997 + $0x34] sm:$0xf]
      %v3012 = vld [vmem:[%s2997 + $0x38] sm:$0xf]
      %v3013 = vld [vmem:[%s2997 + $0x3c] sm:$0xf]
      %v3030 = vunpack.c.l.b16 %v2998
      %v3031 = vunpack.c.l.b16 %v2999
      %v3032 = vunpack.c.l.b16 %v3000
      %v3033 = vunpack.c.l.b16 %v3001
      %v3034 = vunpack.c.l.b16 %v3002
      %v3035 = vunpack.c.l.b16 %v3003
      %v3036 = vunpack.c.l.b16 %v3004
      %v3037 = vunpack.c.l.b16 %v3005
      %v3038 = vunpack.c.l.b16 %v3006
      %v3039 = vunpack.c.l.b16 %v3007
      %v3040 = vunpack.c.l.b16 %v3008
      %v3041 = vunpack.c.l.b16 %v3009
      %v3042 = vunpack.c.l.b16 %v3010
      %v3043 = vunpack.c.l.b16 %v3011
      %v3044 = vunpack.c.l.b16 %v3012
      %v3045 = vunpack.c.l.b16 %v3013
      %v3046 = vpack.c.b16 %v3031, %v3030
      %v3047 = vpack.c.b16 %v3033, %v3032
      %v3048 = vpack.c.b16 %v3035, %v3034
      %v3049 = vpack.c.b16 %v3037, %v3036
      %v3050 = vpack.c.b16 %v3039, %v3038
      %v3051 = vpack.c.b16 %v3041, %v3040
      %v3052 = vpack.c.b16 %v3043, %v3042
      %v3053 = vpack.c.b16 %v3045, %v3044
      %3062 = vmatpush.bf16.msra.mxu0 %v3053
      %3063 = vmatpush.bf16.msra.mxu0 %v3052
      %3064 = vmatpush.bf16.msra.mxu0 %v3051
      %3065 = vmatpush.bf16.msra.mxu0 %v3050
      %3066 = vmatpush.bf16.msra.mxu0 %v3049
      %3067 = vmatpush.bf16.msra.mxu0 %v3048
      %3068 = vmatpush.bf16.msra.mxu0 %v3047
      %3069 = vmatpush.bf16.msra.mxu0 %v3046
      %3070 = vmatmul.bf16.gmra.mxu0 %v1727
      %v3071 = vpop.f32.mrf.mxu0
      %v3072 = vadd.f32 0.0, %v3071
      %v3073 = vpop.f32.mrf.mxu0
      %3074 = vdwg.mxu0
      %v3075 = vadd.f32 %v2996, %v3072
      %s3076 = scalar_lea.vmem %s3, 1088
      %v3077 = vld [vmem:[%s3076] sm:$0xf]
      %v3078 = vld [vmem:[%s3076 + $0x4] sm:$0xf]
      %v3079 = vld [vmem:[%s3076 + $0x8] sm:$0xf]
      %v3080 = vld [vmem:[%s3076 + $0xc] sm:$0xf]
      %v3081 = vld [vmem:[%s3076 + $0x10] sm:$0xf]
      %v3082 = vld [vmem:[%s3076 + $0x14] sm:$0xf]
      %v3083 = vld [vmem:[%s3076 + $0x18] sm:$0xf]
      %v3084 = vld [vmem:[%s3076 + $0x1c] sm:$0xf]
      %v3085 = vld [vmem:[%s3076 + $0x20] sm:$0xf]
      %v3086 = vld [vmem:[%s3076 + $0x24] sm:$0xf]
      %v3087 = vld [vmem:[%s3076 + $0x28] sm:$0xf]
      %v3088 = vld [vmem:[%s3076 + $0x2c] sm:$0xf]
      %v3089 = vld [vmem:[%s3076 + $0x30] sm:$0xf]
      %v3090 = vld [vmem:[%s3076 + $0x34] sm:$0xf]
      %v3091 = vld [vmem:[%s3076 + $0x38] sm:$0xf]
      %v3092 = vld [vmem:[%s3076 + $0x3c] sm:$0xf]
      %v3109 = vunpack.c.l.b16 %v3077
      %v3110 = vunpack.c.l.b16 %v3078
      %v3111 = vunpack.c.l.b16 %v3079
      %v3112 = vunpack.c.l.b16 %v3080
      %v3113 = vunpack.c.l.b16 %v3081
      %v3114 = vunpack.c.l.b16 %v3082
      %v3115 = vunpack.c.l.b16 %v3083
      %v3116 = vunpack.c.l.b16 %v3084
      %v3117 = vunpack.c.l.b16 %v3085
      %v3118 = vunpack.c.l.b16 %v3086
      %v3119 = vunpack.c.l.b16 %v3087
      %v3120 = vunpack.c.l.b16 %v3088
      %v3121 = vunpack.c.l.b16 %v3089
      %v3122 = vunpack.c.l.b16 %v3090
      %v3123 = vunpack.c.l.b16 %v3091
      %v3124 = vunpack.c.l.b16 %v3092
      %v3125 = vpack.c.b16 %v3110, %v3109
      %v3126 = vpack.c.b16 %v3112, %v3111
      %v3127 = vpack.c.b16 %v3114, %v3113
      %v3128 = vpack.c.b16 %v3116, %v3115
      %v3129 = vpack.c.b16 %v3118, %v3117
      %v3130 = vpack.c.b16 %v3120, %v3119
      %v3131 = vpack.c.b16 %v3122, %v3121
      %v3132 = vpack.c.b16 %v3124, %v3123
      %3141 = vmatpush.bf16.msra.mxu0 %v3132
      %3142 = vmatpush.bf16.msra.mxu0 %v3131
      %3143 = vmatpush.bf16.msra.mxu0 %v3130
      %3144 = vmatpush.bf16.msra.mxu0 %v3129
      %3145 = vmatpush.bf16.msra.mxu0 %v3128
      %3146 = vmatpush.bf16.msra.mxu0 %v3127
      %3147 = vmatpush.bf16.msra.mxu0 %v3126
      %3148 = vmatpush.bf16.msra.mxu0 %v3125
      %3149 = vmatmul.bf16.gmra.mxu0 %v1728
      %v3150 = vpop.f32.mrf.mxu0
      %v3151 = vadd.f32 0.0, %v3150
      %v3152 = vpop.f32.mrf.mxu0
      %3153 = vdwg.mxu0
      %v3154 = vadd.f32 %v3075, %v3151
      %s3155 = scalar_lea.vmem %s3, 1152
      %v3156 = vld [vmem:[%s3155] sm:$0xf]
      %v3157 = vld [vmem:[%s3155 + $0x4] sm:$0xf]
      %v3158 = vld [vmem:[%s3155 + $0x8] sm:$0xf]
      %v3159 = vld [vmem:[%s3155 + $0xc] sm:$0xf]
      %v3160 = vld [vmem:[%s3155 + $0x10] sm:$0xf]
      %v3161 = vld [vmem:[%s3155 + $0x14] sm:$0xf]
      %v3162 = vld [vmem:[%s3155 + $0x18] sm:$0xf]
      %v3163 = vld [vmem:[%s3155 + $0x1c] sm:$0xf]
      %v3164 = vld [vmem:[%s3155 + $0x20] sm:$0xf]
      %v3165 = vld [vmem:[%s3155 + $0x24] sm:$0xf]
      %v3166 = vld [vmem:[%s3155 + $0x28] sm:$0xf]
      %v3167 = vld [vmem:[%s3155 + $0x2c] sm:$0xf]
      %v3168 = vld [vmem:[%s3155 + $0x30] sm:$0xf]
      %v3169 = vld [vmem:[%s3155 + $0x34] sm:$0xf]
      %v3170 = vld [vmem:[%s3155 + $0x38] sm:$0xf]
      %v3171 = vld [vmem:[%s3155 + $0x3c] sm:$0xf]
      %v3188 = vunpack.c.l.b16 %v3156
      %v3189 = vunpack.c.l.b16 %v3157
      %v3190 = vunpack.c.l.b16 %v3158
      %v3191 = vunpack.c.l.b16 %v3159
      %v3192 = vunpack.c.l.b16 %v3160
      %v3193 = vunpack.c.l.b16 %v3161
      %v3194 = vunpack.c.l.b16 %v3162
      %v3195 = vunpack.c.l.b16 %v3163
      %v3196 = vunpack.c.l.b16 %v3164
      %v3197 = vunpack.c.l.b16 %v3165
      %v3198 = vunpack.c.l.b16 %v3166
      %v3199 = vunpack.c.l.b16 %v3167
      %v3200 = vunpack.c.l.b16 %v3168
      %v3201 = vunpack.c.l.b16 %v3169
      %v3202 = vunpack.c.l.b16 %v3170
      %v3203 = vunpack.c.l.b16 %v3171
      %v3204 = vpack.c.b16 %v3189, %v3188
      %v3205 = vpack.c.b16 %v3191, %v3190
      %v3206 = vpack.c.b16 %v3193, %v3192
      %v3207 = vpack.c.b16 %v3195, %v3194
      %v3208 = vpack.c.b16 %v3197, %v3196
      %v3209 = vpack.c.b16 %v3199, %v3198
      %v3210 = vpack.c.b16 %v3201, %v3200
      %v3211 = vpack.c.b16 %v3203, %v3202
      %3220 = vmatpush.bf16.msra.mxu0 %v3211
      %3221 = vmatpush.bf16.msra.mxu0 %v3210
      %3222 = vmatpush.bf16.msra.mxu0 %v3209
      %3223 = vmatpush.bf16.msra.mxu0 %v3208
      %3224 = vmatpush.bf16.msra.mxu0 %v3207
      %3225 = vmatpush.bf16.msra.mxu0 %v3206
      %3226 = vmatpush.bf16.msra.mxu0 %v3205
      %3227 = vmatpush.bf16.msra.mxu0 %v3204
      %3228 = vmatmul.bf16.gmra.mxu0 %v1729
      %v3229 = vpop.f32.mrf.mxu0
      %v3230 = vadd.f32 0.0, %v3229
      %v3231 = vpop.f32.mrf.mxu0
      %3232 = vdwg.mxu0
      %v3233 = vadd.f32 %v3154, %v3230
      %s3234 = scalar_lea.vmem %s3, 1216
      %v3235 = vld [vmem:[%s3234] sm:$0xf]
      %v3236 = vld [vmem:[%s3234 + $0x4] sm:$0xf]
      %v3237 = vld [vmem:[%s3234 + $0x8] sm:$0xf]
      %v3238 = vld [vmem:[%s3234 + $0xc] sm:$0xf]
      %v3239 = vld [vmem:[%s3234 + $0x10] sm:$0xf]
      %v3240 = vld [vmem:[%s3234 + $0x14] sm:$0xf]
      %v3241 = vld [vmem:[%s3234 + $0x18] sm:$0xf]
      %v3242 = vld [vmem:[%s3234 + $0x1c] sm:$0xf]
      %v3243 = vld [vmem:[%s3234 + $0x20] sm:$0xf]
      %v3244 = vld [vmem:[%s3234 + $0x24] sm:$0xf]
      %v3245 = vld [vmem:[%s3234 + $0x28] sm:$0xf]
      %v3246 = vld [vmem:[%s3234 + $0x2c] sm:$0xf]
      %v3247 = vld [vmem:[%s3234 + $0x30] sm:$0xf]
      %v3248 = vld [vmem:[%s3234 + $0x34] sm:$0xf]
      %v3249 = vld [vmem:[%s3234 + $0x38] sm:$0xf]
      %v3250 = vld [vmem:[%s3234 + $0x3c] sm:$0xf]
      %v3267 = vunpack.c.l.b16 %v3235
      %v3268 = vunpack.c.l.b16 %v3236
      %v3269 = vunpack.c.l.b16 %v3237
      %v3270 = vunpack.c.l.b16 %v3238
      %v3271 = vunpack.c.l.b16 %v3239
      %v3272 = vunpack.c.l.b16 %v3240
      %v3273 = vunpack.c.l.b16 %v3241
      %v3274 = vunpack.c.l.b16 %v3242
      %v3275 = vunpack.c.l.b16 %v3243
      %v3276 = vunpack.c.l.b16 %v3244
      %v3277 = vunpack.c.l.b16 %v3245
      %v3278 = vunpack.c.l.b16 %v3246
      %v3279 = vunpack.c.l.b16 %v3247
      %v3280 = vunpack.c.l.b16 %v3248
      %v3281 = vunpack.c.l.b16 %v3249
      %v3282 = vunpack.c.l.b16 %v3250
      %v3283 = vpack.c.b16 %v3268, %v3267
      %v3284 = vpack.c.b16 %v3270, %v3269
      %v3285 = vpack.c.b16 %v3272, %v3271
      %v3286 = vpack.c.b16 %v3274, %v3273
      %v3287 = vpack.c.b16 %v3276, %v3275
      %v3288 = vpack.c.b16 %v3278, %v3277
      %v3289 = vpack.c.b16 %v3280, %v3279
      %v3290 = vpack.c.b16 %v3282, %v3281
      %3299 = vmatpush.bf16.msra.mxu0 %v3290
      %3300 = vmatpush.bf16.msra.mxu0 %v3289
      %3301 = vmatpush.bf16.msra.mxu0 %v3288
      %3302 = vmatpush.bf16.msra.mxu0 %v3287
      %3303 = vmatpush.bf16.msra.mxu0 %v3286
      %3304 = vmatpush.bf16.msra.mxu0 %v3285
      %3305 = vmatpush.bf16.msra.mxu0 %v3284
      %3306 = vmatpush.bf16.msra.mxu0 %v3283
      %3307 = vmatmul.bf16.gmra.mxu0 %v1730
      %v3308 = vpop.f32.mrf.mxu0
      %v3309 = vadd.f32 0.0, %v3308
      %v3310 = vpop.f32.mrf.mxu0
      %3311 = vdwg.mxu0
      %v3312 = vadd.f32 %v3233, %v3309
      %s3313 = scalar_lea.vmem %s3, 1280
      %v3314 = vld [vmem:[%s3313] sm:$0xf]
      %v3315 = vld [vmem:[%s3313 + $0x4] sm:$0xf]
      %v3316 = vld [vmem:[%s3313 + $0x8] sm:$0xf]
      %v3317 = vld [vmem:[%s3313 + $0xc] sm:$0xf]
      %v3318 = vld [vmem:[%s3313 + $0x10] sm:$0xf]
      %v3319 = vld [vmem:[%s3313 + $0x14] sm:$0xf]
      %v3320 = vld [vmem:[%s3313 + $0x18] sm:$0xf]
      %v3321 = vld [vmem:[%s3313 + $0x1c] sm:$0xf]
      %v3322 = vld [vmem:[%s3313 + $0x20] sm:$0xf]
      %v3323 = vld [vmem:[%s3313 + $0x24] sm:$0xf]
      %v3324 = vld [vmem:[%s3313 + $0x28] sm:$0xf]
      %v3325 = vld [vmem:[%s3313 + $0x2c] sm:$0xf]
      %v3326 = vld [vmem:[%s3313 + $0x30] sm:$0xf]
      %v3327 = vld [vmem:[%s3313 + $0x34] sm:$0xf]
      %v3328 = vld [vmem:[%s3313 + $0x38] sm:$0xf]
      %v3329 = vld [vmem:[%s3313 + $0x3c] sm:$0xf]
      %v3346 = vunpack.c.l.b16 %v3314
      %v3347 = vunpack.c.l.b16 %v3315
      %v3348 = vunpack.c.l.b16 %v3316
      %v3349 = vunpack.c.l.b16 %v3317
      %v3350 = vunpack.c.l.b16 %v3318
      %v3351 = vunpack.c.l.b16 %v3319
      %v3352 = vunpack.c.l.b16 %v3320
      %v3353 = vunpack.c.l.b16 %v3321
      %v3354 = vunpack.c.l.b16 %v3322
      %v3355 = vunpack.c.l.b16 %v3323
      %v3356 = vunpack.c.l.b16 %v3324
      %v3357 = vunpack.c.l.b16 %v3325
      %v3358 = vunpack.c.l.b16 %v3326
      %v3359 = vunpack.c.l.b16 %v3327
      %v3360 = vunpack.c.l.b16 %v3328
      %v3361 = vunpack.c.l.b16 %v3329
      %v3362 = vpack.c.b16 %v3347, %v3346
      %v3363 = vpack.c.b16 %v3349, %v3348
      %v3364 = vpack.c.b16 %v3351, %v3350
      %v3365 = vpack.c.b16 %v3353, %v3352
      %v3366 = vpack.c.b16 %v3355, %v3354
      %v3367 = vpack.c.b16 %v3357, %v3356
      %v3368 = vpack.c.b16 %v3359, %v3358
      %v3369 = vpack.c.b16 %v3361, %v3360
      %3378 = vmatpush.bf16.msra.mxu0 %v3369
      %3379 = vmatpush.bf16.msra.mxu0 %v3368
      %3380 = vmatpush.bf16.msra.mxu0 %v3367
      %3381 = vmatpush.bf16.msra.mxu0 %v3366
      %3382 = vmatpush.bf16.msra.mxu0 %v3365
      %3383 = vmatpush.bf16.msra.mxu0 %v3364
      %3384 = vmatpush.bf16.msra.mxu0 %v3363
      %3385 = vmatpush.bf16.msra.mxu0 %v3362
      %3386 = vmatmul.bf16.gmra.mxu0 %v1731
      %v3387 = vpop.f32.mrf.mxu0
      %v3388 = vadd.f32 0.0, %v3387
      %v3389 = vpop.f32.mrf.mxu0
      %3390 = vdwg.mxu0
      %v3391 = vadd.f32 %v3312, %v3388
      %s3392 = scalar_lea.vmem %s3, 1344
      %v3393 = vld [vmem:[%s3392] sm:$0xf]
      %v3394 = vld [vmem:[%s3392 + $0x4] sm:$0xf]
      %v3395 = vld [vmem:[%s3392 + $0x8] sm:$0xf]
      %v3396 = vld [vmem:[%s3392 + $0xc] sm:$0xf]
      %v3397 = vld [vmem:[%s3392 + $0x10] sm:$0xf]
      %v3398 = vld [vmem:[%s3392 + $0x14] sm:$0xf]
      %v3399 = vld [vmem:[%s3392 + $0x18] sm:$0xf]
      %v3400 = vld [vmem:[%s3392 + $0x1c] sm:$0xf]
      %v3401 = vld [vmem:[%s3392 + $0x20] sm:$0xf]
      %v3402 = vld [vmem:[%s3392 + $0x24] sm:$0xf]
      %v3403 = vld [vmem:[%s3392 + $0x28] sm:$0xf]
      %v3404 = vld [vmem:[%s3392 + $0x2c] sm:$0xf]
      %v3405 = vld [vmem:[%s3392 + $0x30] sm:$0xf]
      %v3406 = vld [vmem:[%s3392 + $0x34] sm:$0xf]
      %v3407 = vld [vmem:[%s3392 + $0x38] sm:$0xf]
      %v3408 = vld [vmem:[%s3392 + $0x3c] sm:$0xf]
      %v3425 = vunpack.c.l.b16 %v3393
      %v3426 = vunpack.c.l.b16 %v3394
      %v3427 = vunpack.c.l.b16 %v3395
      %v3428 = vunpack.c.l.b16 %v3396
      %v3429 = vunpack.c.l.b16 %v3397
      %v3430 = vunpack.c.l.b16 %v3398
      %v3431 = vunpack.c.l.b16 %v3399
      %v3432 = vunpack.c.l.b16 %v3400
      %v3433 = vunpack.c.l.b16 %v3401
      %v3434 = vunpack.c.l.b16 %v3402
      %v3435 = vunpack.c.l.b16 %v3403
      %v3436 = vunpack.c.l.b16 %v3404
      %v3437 = vunpack.c.l.b16 %v3405
      %v3438 = vunpack.c.l.b16 %v3406
      %v3439 = vunpack.c.l.b16 %v3407
      %v3440 = vunpack.c.l.b16 %v3408
      %v3441 = vpack.c.b16 %v3426, %v3425
      %v3442 = vpack.c.b16 %v3428, %v3427
      %v3443 = vpack.c.b16 %v3430, %v3429
      %v3444 = vpack.c.b16 %v3432, %v3431
      %v3445 = vpack.c.b16 %v3434, %v3433
      %v3446 = vpack.c.b16 %v3436, %v3435
      %v3447 = vpack.c.b16 %v3438, %v3437
      %v3448 = vpack.c.b16 %v3440, %v3439
      %3457 = vmatpush.bf16.msra.mxu0 %v3448
      %3458 = vmatpush.bf16.msra.mxu0 %v3447
      %3459 = vmatpush.bf16.msra.mxu0 %v3446
      %3460 = vmatpush.bf16.msra.mxu0 %v3445
      %3461 = vmatpush.bf16.msra.mxu0 %v3444
      %3462 = vmatpush.bf16.msra.mxu0 %v3443
      %3463 = vmatpush.bf16.msra.mxu0 %v3442
      %3464 = vmatpush.bf16.msra.mxu0 %v3441
      %3465 = vmatmul.bf16.gmra.mxu0 %v1732
      %v3466 = vpop.f32.mrf.mxu0
      %v3467 = vadd.f32 0.0, %v3466
      %v3468 = vpop.f32.mrf.mxu0
      %3469 = vdwg.mxu0
      %v3470 = vadd.f32 %v3391, %v3467
      %s3471 = scalar_lea.vmem %s3, 1408
      %v3472 = vld [vmem:[%s3471] sm:$0xf]
      %v3473 = vld [vmem:[%s3471 + $0x4] sm:$0xf]
      %v3474 = vld [vmem:[%s3471 + $0x8] sm:$0xf]
      %v3475 = vld [vmem:[%s3471 + $0xc] sm:$0xf]
      %v3476 = vld [vmem:[%s3471 + $0x10] sm:$0xf]
      %v3477 = vld [vmem:[%s3471 + $0x14] sm:$0xf]
      %v3478 = vld [vmem:[%s3471 + $0x18] sm:$0xf]
      %v3479 = vld [vmem:[%s3471 + $0x1c] sm:$0xf]
      %v3480 = vld [vmem:[%s3471 + $0x20] sm:$0xf]
      %v3481 = vld [vmem:[%s3471 + $0x24] sm:$0xf]
      %v3482 = vld [vmem:[%s3471 + $0x28] sm:$0xf]
      %v3483 = vld [vmem:[%s3471 + $0x2c] sm:$0xf]
      %v3484 = vld [vmem:[%s3471 + $0x30] sm:$0xf]
      %v3485 = vld [vmem:[%s3471 + $0x34] sm:$0xf]
      %v3486 = vld [vmem:[%s3471 + $0x38] sm:$0xf]
      %v3487 = vld [vmem:[%s3471 + $0x3c] sm:$0xf]
      %v3504 = vunpack.c.l.b16 %v3472
      %v3505 = vunpack.c.l.b16 %v3473
      %v3506 = vunpack.c.l.b16 %v3474
      %v3507 = vunpack.c.l.b16 %v3475
      %v3508 = vunpack.c.l.b16 %v3476
      %v3509 = vunpack.c.l.b16 %v3477
      %v3510 = vunpack.c.l.b16 %v3478
      %v3511 = vunpack.c.l.b16 %v3479
      %v3512 = vunpack.c.l.b16 %v3480
      %v3513 = vunpack.c.l.b16 %v3481
      %v3514 = vunpack.c.l.b16 %v3482
      %v3515 = vunpack.c.l.b16 %v3483
      %v3516 = vunpack.c.l.b16 %v3484
      %v3517 = vunpack.c.l.b16 %v3485
      %v3518 = vunpack.c.l.b16 %v3486
      %v3519 = vunpack.c.l.b16 %v3487
      %v3520 = vpack.c.b16 %v3505, %v3504
      %v3521 = vpack.c.b16 %v3507, %v3506
      %v3522 = vpack.c.b16 %v3509, %v3508
      %v3523 = vpack.c.b16 %v3511, %v3510
      %v3524 = vpack.c.b16 %v3513, %v3512
      %v3525 = vpack.c.b16 %v3515, %v3514
      %v3526 = vpack.c.b16 %v3517, %v3516
      %v3527 = vpack.c.b16 %v3519, %v3518
      %3536 = vmatpush.bf16.msra.mxu0 %v3527
      %3537 = vmatpush.bf16.msra.mxu0 %v3526
      %3538 = vmatpush.bf16.msra.mxu0 %v3525
      %3539 = vmatpush.bf16.msra.mxu0 %v3524
      %3540 = vmatpush.bf16.msra.mxu0 %v3523
      %3541 = vmatpush.bf16.msra.mxu0 %v3522
      %3542 = vmatpush.bf16.msra.mxu0 %v3521
      %3543 = vmatpush.bf16.msra.mxu0 %v3520
      %3544 = vmatmul.bf16.gmra.mxu0 %v1733
      %v3545 = vpop.f32.mrf.mxu0
      %v3546 = vadd.f32 0.0, %v3545
      %v3547 = vpop.f32.mrf.mxu0
      %3548 = vdwg.mxu0
      %v3549 = vadd.f32 %v3470, %v3546
      %s3550 = scalar_lea.vmem %s3, 1472
      %v3551 = vld [vmem:[%s3550] sm:$0xf]
      %v3552 = vld [vmem:[%s3550 + $0x4] sm:$0xf]
      %v3553 = vld [vmem:[%s3550 + $0x8] sm:$0xf]
      %v3554 = vld [vmem:[%s3550 + $0xc] sm:$0xf]
      %v3555 = vld [vmem:[%s3550 + $0x10] sm:$0xf]
      %v3556 = vld [vmem:[%s3550 + $0x14] sm:$0xf]
      %v3557 = vld [vmem:[%s3550 + $0x18] sm:$0xf]
      %v3558 = vld [vmem:[%s3550 + $0x1c] sm:$0xf]
      %v3559 = vld [vmem:[%s3550 + $0x20] sm:$0xf]
      %v3560 = vld [vmem:[%s3550 + $0x24] sm:$0xf]
      %v3561 = vld [vmem:[%s3550 + $0x28] sm:$0xf]
      %v3562 = vld [vmem:[%s3550 + $0x2c] sm:$0xf]
      %v3563 = vld [vmem:[%s3550 + $0x30] sm:$0xf]
      %v3564 = vld [vmem:[%s3550 + $0x34] sm:$0xf]
      %v3565 = vld [vmem:[%s3550 + $0x38] sm:$0xf]
      %v3566 = vld [vmem:[%s3550 + $0x3c] sm:$0xf]
      %v3583 = vunpack.c.l.b16 %v3551
      %v3584 = vunpack.c.l.b16 %v3552
      %v3585 = vunpack.c.l.b16 %v3553
      %v3586 = vunpack.c.l.b16 %v3554
      %v3587 = vunpack.c.l.b16 %v3555
      %v3588 = vunpack.c.l.b16 %v3556
      %v3589 = vunpack.c.l.b16 %v3557
      %v3590 = vunpack.c.l.b16 %v3558
      %v3591 = vunpack.c.l.b16 %v3559
      %v3592 = vunpack.c.l.b16 %v3560
      %v3593 = vunpack.c.l.b16 %v3561
      %v3594 = vunpack.c.l.b16 %v3562
      %v3595 = vunpack.c.l.b16 %v3563
      %v3596 = vunpack.c.l.b16 %v3564
      %v3597 = vunpack.c.l.b16 %v3565
      %v3598 = vunpack.c.l.b16 %v3566
      %v3599 = vpack.c.b16 %v3584, %v3583
      %v3600 = vpack.c.b16 %v3586, %v3585
      %v3601 = vpack.c.b16 %v3588, %v3587
      %v3602 = vpack.c.b16 %v3590, %v3589
      %v3603 = vpack.c.b16 %v3592, %v3591
      %v3604 = vpack.c.b16 %v3594, %v3593
      %v3605 = vpack.c.b16 %v3596, %v3595
      %v3606 = vpack.c.b16 %v3598, %v3597
      %3615 = vmatpush.bf16.msra.mxu0 %v3606
      %3616 = vmatpush.bf16.msra.mxu0 %v3605
      %3617 = vmatpush.bf16.msra.mxu0 %v3604
      %3618 = vmatpush.bf16.msra.mxu0 %v3603
      %3619 = vmatpush.bf16.msra.mxu0 %v3602
      %3620 = vmatpush.bf16.msra.mxu0 %v3601
      %3621 = vmatpush.bf16.msra.mxu0 %v3600
      %3622 = vmatpush.bf16.msra.mxu0 %v3599
      %3623 = vmatmul.bf16.gmra.mxu0 %v1734
      %v3624 = vpop.f32.mrf.mxu0
      %v3625 = vadd.f32 0.0, %v3624
      %v3626 = vpop.f32.mrf.mxu0
      %3627 = vdwg.mxu0
      %v3628 = vadd.f32 %v3549, %v3625
      %s3629 = scalar_lea.vmem %s3, 1536
      %v3630 = vld [vmem:[%s3629] sm:$0xf]
      %v3631 = vld [vmem:[%s3629 + $0x4] sm:$0xf]
      %v3632 = vld [vmem:[%s3629 + $0x8] sm:$0xf]
      %v3633 = vld [vmem:[%s3629 + $0xc] sm:$0xf]
      %v3634 = vld [vmem:[%s3629 + $0x10] sm:$0xf]
      %v3635 = vld [vmem:[%s3629 + $0x14] sm:$0xf]
      %v3636 = vld [vmem:[%s3629 + $0x18] sm:$0xf]
      %v3637 = vld [vmem:[%s3629 + $0x1c] sm:$0xf]
      %v3638 = vld [vmem:[%s3629 + $0x20] sm:$0xf]
      %v3639 = vld [vmem:[%s3629 + $0x24] sm:$0xf]
      %v3640 = vld [vmem:[%s3629 + $0x28] sm:$0xf]
      %v3641 = vld [vmem:[%s3629 + $0x2c] sm:$0xf]
      %v3642 = vld [vmem:[%s3629 + $0x30] sm:$0xf]
      %v3643 = vld [vmem:[%s3629 + $0x34] sm:$0xf]
      %v3644 = vld [vmem:[%s3629 + $0x38] sm:$0xf]
      %v3645 = vld [vmem:[%s3629 + $0x3c] sm:$0xf]
      %v3662 = vunpack.c.l.b16 %v3630
      %v3663 = vunpack.c.l.b16 %v3631
      %v3664 = vunpack.c.l.b16 %v3632
      %v3665 = vunpack.c.l.b16 %v3633
      %v3666 = vunpack.c.l.b16 %v3634
      %v3667 = vunpack.c.l.b16 %v3635
      %v3668 = vunpack.c.l.b16 %v3636
      %v3669 = vunpack.c.l.b16 %v3637
      %v3670 = vunpack.c.l.b16 %v3638
      %v3671 = vunpack.c.l.b16 %v3639
      %v3672 = vunpack.c.l.b16 %v3640
      %v3673 = vunpack.c.l.b16 %v3641
      %v3674 = vunpack.c.l.b16 %v3642
      %v3675 = vunpack.c.l.b16 %v3643
      %v3676 = vunpack.c.l.b16 %v3644
      %v3677 = vunpack.c.l.b16 %v3645
      %v3678 = vpack.c.b16 %v3663, %v3662
      %v3679 = vpack.c.b16 %v3665, %v3664
      %v3680 = vpack.c.b16 %v3667, %v3666
      %v3681 = vpack.c.b16 %v3669, %v3668
      %v3682 = vpack.c.b16 %v3671, %v3670
      %v3683 = vpack.c.b16 %v3673, %v3672
      %v3684 = vpack.c.b16 %v3675, %v3674
      %v3685 = vpack.c.b16 %v3677, %v3676
      %3694 = vmatpush.bf16.msra.mxu0 %v3685
      %3695 = vmatpush.bf16.msra.mxu0 %v3684
      %3696 = vmatpush.bf16.msra.mxu0 %v3683
      %3697 = vmatpush.bf16.msra.mxu0 %v3682
      %3698 = vmatpush.bf16.msra.mxu0 %v3681
      %3699 = vmatpush.bf16.msra.mxu0 %v3680
      %3700 = vmatpush.bf16.msra.mxu0 %v3679
      %3701 = vmatpush.bf16.msra.mxu0 %v3678
      %3702 = vmatmul.bf16.gmra.mxu0 %v1735
      %v3703 = vpop.f32.mrf.mxu0
      %v3704 = vadd.f32 0.0, %v3703
      %v3705 = vpop.f32.mrf.mxu0
      %3706 = vdwg.mxu0
      %v3707 = vadd.f32 %v3628, %v3704
      %v3708 = vld [vmem:[%s4] sm:$0x1]
      %v3710 = vperm.slane %v3708, 0
      %v3712 = vadd.f32 %v3707, %v3710
      %v3713 = vmax.f32 %v3712, 0.0
      %v3714 = vpack.c.bf16 %v3713, %v3713
      %v3715 = vld [vmem:[%s5] sm:$0xff]
      %v3716 = vld [vmem:[%s5 + $0x8] sm:$0xff]
      %v3717 = vld [vmem:[%s5 + $0x10] sm:$0xff]
      %v3718 = vld [vmem:[%s5 + $0x18] sm:$0xff]
      %v3719 = vld [vmem:[%s5 + $0x20] sm:$0xff]
      %v3720 = vld [vmem:[%s5 + $0x28] sm:$0xff]
      %v3721 = vld [vmem:[%s5 + $0x30] sm:$0xff]
      %v3722 = vld [vmem:[%s5 + $0x38] sm:$0xff]
      %v3723 = vld [vmem:[%s5 + $0x40] sm:$0xff]
      %v3724 = vld [vmem:[%s5 + $0x48] sm:$0xff]
      %v3725 = vld [vmem:[%s5 + $0x50] sm:$0xff]
      %v3726 = vld [vmem:[%s5 + $0x58] sm:$0xff]
      %v3727 = vld [vmem:[%s5 + $0x60] sm:$0xff]
      %v3728 = vld [vmem:[%s5 + $0x68] sm:$0xff]
      %v3729 = vld [vmem:[%s5 + $0x70] sm:$0xff]
      %v3730 = vld [vmem:[%s5 + $0x78] sm:$0xff]
      %v3731 = vld [vmem:[%s6] sm:$0x3]
      %v3733 = vperm.slane %v3731, 0
      %v3734 = vperm.slane %v3731, 1
      %v3753 = vunpack.c.l.b16 %v3715
      %v3754 = vunpack.c.h.b16 %v3715
      %v3755 = vunpack.c.l.b16 %v3716
      %v3756 = vunpack.c.h.b16 %v3716
      %v3757 = vunpack.c.l.b16 %v3717
      %v3758 = vunpack.c.h.b16 %v3717
      %v3759 = vunpack.c.l.b16 %v3718
      %v3760 = vunpack.c.h.b16 %v3718
      %v3761 = vunpack.c.l.b16 %v3719
      %v3762 = vunpack.c.h.b16 %v3719
      %v3763 = vunpack.c.l.b16 %v3720
      %v3764 = vunpack.c.h.b16 %v3720
      %v3765 = vunpack.c.l.b16 %v3721
      %v3766 = vunpack.c.h.b16 %v3721
      %v3767 = vunpack.c.l.b16 %v3722
      %v3768 = vunpack.c.h.b16 %v3722
      %v3769 = vunpack.c.l.b16 %v3723
      %v3770 = vunpack.c.h.b16 %v3723
      %v3771 = vunpack.c.l.b16 %v3724
      %v3772 = vunpack.c.h.b16 %v3724
      %v3773 = vunpack.c.l.b16 %v3725
      %v3774 = vunpack.c.h.b16 %v3725
      %v3775 = vunpack.c.l.b16 %v3726
      %v3776 = vunpack.c.h.b16 %v3726
      %v3777 = vunpack.c.l.b16 %v3727
      %v3778 = vunpack.c.h.b16 %v3727
      %v3779 = vunpack.c.l.b16 %v3728
      %v3780 = vunpack.c.h.b16 %v3728
      %v3781 = vunpack.c.l.b16 %v3729
      %v3782 = vunpack.c.h.b16 %v3729
      %v3783 = vunpack.c.l.b16 %v3730
      %v3784 = vunpack.c.h.b16 %v3730
      %v3785 = vpack.c.b16 %v3755, %v3753
      %v3786 = vpack.c.b16 %v3756, %v3754
      %v3787 = vpack.c.b16 %v3759, %v3757
      %v3788 = vpack.c.b16 %v3760, %v3758
      %v3789 = vpack.c.b16 %v3763, %v3761
      %v3790 = vpack.c.b16 %v3764, %v3762
      %v3791 = vpack.c.b16 %v3767, %v3765
      %v3792 = vpack.c.b16 %v3768, %v3766
      %v3793 = vpack.c.b16 %v3771, %v3769
      %v3794 = vpack.c.b16 %v3772, %v3770
      %v3795 = vpack.c.b16 %v3775, %v3773
      %v3796 = vpack.c.b16 %v3776, %v3774
      %v3797 = vpack.c.b16 %v3779, %v3777
      %v3798 = vpack.c.b16 %v3780, %v3778
      %v3799 = vpack.c.b16 %v3783, %v3781
      %v3800 = vpack.c.b16 %v3784, %v3782
      %3817 = vmatpush.bf16.msra.mxu0 %v3799
      %3818 = vmatpush.bf16.msra.mxu0 %v3797
      %3819 = vmatpush.bf16.msra.mxu0 %v3795
      %3820 = vmatpush.bf16.msra.mxu0 %v3793
      %3821 = vmatpush.bf16.msra.mxu0 %v3791
      %3822 = vmatpush.bf16.msra.mxu0 %v3789
      %3823 = vmatpush.bf16.msra.mxu0 %v3787
      %3824 = vmatpush.bf16.msra.mxu0 %v3785
      %3825 = vmatmul.bf16.gmra.mxu0 %v3714
      %v3826 = vpop.f32.mrf.mxu0
      %v3827 = vadd.f32 %v3733, %v3826
      %v3828 = vpop.f32.mrf.mxu0
      %3829 = vdwg.mxu0
      %3830 = vmatpush.bf16.msra.mxu0 %v3800
      %3831 = vmatpush.bf16.msra.mxu0 %v3798
      %3832 = vmatpush.bf16.msra.mxu0 %v3796
      %3833 = vmatpush.bf16.msra.mxu0 %v3794
      %3834 = vmatpush.bf16.msra.mxu0 %v3792
      %3835 = vmatpush.bf16.msra.mxu0 %v3790
      %3836 = vmatpush.bf16.msra.mxu0 %v3788
      %3837 = vmatpush.bf16.msra.mxu0 %v3786
      %3838 = vmatmul.bf16.gmra.mxu0 %v3714
      %v3839 = vpop.f32.mrf.mxu0
      %v3840 = vadd.f32 %v3734, %v3839
      %v3841 = vpop.f32.mrf.mxu0
      %3842 = vdwg.mxu0
      %v3843 = vmax.f32 %v3827, 0.0
      %v3844 = vmax.f32 %v3840, 0.0
      %v3845 = vpack.c.bf16 %v3843, %v3843
      %v3846 = vpack.c.bf16 %v3844, %v3844
      %v3847 = vld [vmem:[%s7] sm:$0xf]
      %v3848 = vld [vmem:[%s7 + $0x4] sm:$0xf]
      %v3849 = vld [vmem:[%s7 + $0x8] sm:$0xf]
      %v3850 = vld [vmem:[%s7 + $0xc] sm:$0xf]
      %v3851 = vld [vmem:[%s7 + $0x10] sm:$0xf]
      %v3852 = vld [vmem:[%s7 + $0x14] sm:$0xf]
      %v3853 = vld [vmem:[%s7 + $0x18] sm:$0xf]
      %v3854 = vld [vmem:[%s7 + $0x1c] sm:$0xf]
      %v3855 = vld [vmem:[%s7 + $0x20] sm:$0xf]
      %v3856 = vld [vmem:[%s7 + $0x24] sm:$0xf]
      %v3857 = vld [vmem:[%s7 + $0x28] sm:$0xf]
      %v3858 = vld [vmem:[%s7 + $0x2c] sm:$0xf]
      %v3859 = vld [vmem:[%s7 + $0x30] sm:$0xf]
      %v3860 = vld [vmem:[%s7 + $0x34] sm:$0xf]
      %v3861 = vld [vmem:[%s7 + $0x38] sm:$0xf]
      %v3862 = vld [vmem:[%s7 + $0x3c] sm:$0xf]
      %v3863 = vld [vmem:[%s7 + $0x40] sm:$0xf]
      %v3864 = vld [vmem:[%s7 + $0x44] sm:$0xf]
      %v3865 = vld [vmem:[%s7 + $0x48] sm:$0xf]
      %v3866 = vld [vmem:[%s7 + $0x4c] sm:$0xf]
      %v3867 = vld [vmem:[%s7 + $0x50] sm:$0xf]
      %v3868 = vld [vmem:[%s7 + $0x54] sm:$0xf]
      %v3869 = vld [vmem:[%s7 + $0x58] sm:$0xf]
      %v3870 = vld [vmem:[%s7 + $0x5c] sm:$0xf]
      %v3871 = vld [vmem:[%s7 + $0x60] sm:$0xf]
      %v3872 = vld [vmem:[%s7 + $0x64] sm:$0xf]
      %v3873 = vld [vmem:[%s7 + $0x68] sm:$0xf]
      %v3874 = vld [vmem:[%s7 + $0x6c] sm:$0xf]
      %v3875 = vld [vmem:[%s7 + $0x70] sm:$0xf]
      %v3876 = vld [vmem:[%s7 + $0x74] sm:$0xf]
      %v3877 = vld [vmem:[%s7 + $0x78] sm:$0xf]
      %v3878 = vld [vmem:[%s7 + $0x7c] sm:$0xf]
      %v3879 = vld [vmem:[%s8] sm:$0x1]
      %v3881 = vperm.slane %v3879, 0
      %v3915 = vunpack.c.l.b16 %v3847
      %v3916 = vunpack.c.l.b16 %v3848
      %v3917 = vunpack.c.l.b16 %v3849
      %v3918 = vunpack.c.l.b16 %v3850
      %v3919 = vunpack.c.l.b16 %v3851
      %v3920 = vunpack.c.l.b16 %v3852
      %v3921 = vunpack.c.l.b16 %v3853
      %v3922 = vunpack.c.l.b16 %v3854
      %v3923 = vunpack.c.l.b16 %v3855
      %v3924 = vunpack.c.l.b16 %v3856
      %v3925 = vunpack.c.l.b16 %v3857
      %v3926 = vunpack.c.l.b16 %v3858
      %v3927 = vunpack.c.l.b16 %v3859
      %v3928 = vunpack.c.l.b16 %v3860
      %v3929 = vunpack.c.l.b16 %v3861
      %v3930 = vunpack.c.l.b16 %v3862
      %v3931 = vunpack.c.l.b16 %v3863
      %v3932 = vunpack.c.l.b16 %v3864
      %v3933 = vunpack.c.l.b16 %v3865
      %v3934 = vunpack.c.l.b16 %v3866
      %v3935 = vunpack.c.l.b16 %v3867
      %v3936 = vunpack.c.l.b16 %v3868
      %v3937 = vunpack.c.l.b16 %v3869
      %v3938 = vunpack.c.l.b16 %v3870
      %v3939 = vunpack.c.l.b16 %v3871
      %v3940 = vunpack.c.l.b16 %v3872
      %v3941 = vunpack.c.l.b16 %v3873
      %v3942 = vunpack.c.l.b16 %v3874
      %v3943 = vunpack.c.l.b16 %v3875
      %v3944 = vunpack.c.l.b16 %v3876
      %v3945 = vunpack.c.l.b16 %v3877
      %v3946 = vunpack.c.l.b16 %v3878
      %v3947 = vpack.c.b16 %v3916, %v3915
      %v3948 = vpack.c.b16 %v3918, %v3917
      %v3949 = vpack.c.b16 %v3920, %v3919
      %v3950 = vpack.c.b16 %v3922, %v3921
      %v3951 = vpack.c.b16 %v3924, %v3923
      %v3952 = vpack.c.b16 %v3926, %v3925
      %v3953 = vpack.c.b16 %v3928, %v3927
      %v3954 = vpack.c.b16 %v3930, %v3929
      %v3955 = vpack.c.b16 %v3932, %v3931
      %v3956 = vpack.c.b16 %v3934, %v3933
      %v3957 = vpack.c.b16 %v3936, %v3935
      %v3958 = vpack.c.b16 %v3938, %v3937
      %v3959 = vpack.c.b16 %v3940, %v3939
      %v3960 = vpack.c.b16 %v3942, %v3941
      %v3961 = vpack.c.b16 %v3944, %v3943
      %v3962 = vpack.c.b16 %v3946, %v3945
      %3979 = vmatpush.bf16.msra.mxu0 %v3954
      %3980 = vmatpush.bf16.msra.mxu0 %v3953
      %3981 = vmatpush.bf16.msra.mxu0 %v3952
      %3982 = vmatpush.bf16.msra.mxu0 %v3951
      %3983 = vmatpush.bf16.msra.mxu0 %v3950
      %3984 = vmatpush.bf16.msra.mxu0 %v3949
      %3985 = vmatpush.bf16.msra.mxu0 %v3948
      %3986 = vmatpush.bf16.msra.mxu0 %v3947
      %3987 = vmatmul.bf16.gmra.mxu0 %v3845
      %v3988 = vpop.f32.mrf.mxu0
      %v3989 = vadd.f32 %v3881, %v3988
      %v3990 = vpop.f32.mrf.mxu0
      %3991 = vdwg.mxu0
      %3992 = vmatpush.bf16.msra.mxu0 %v3962
      %3993 = vmatpush.bf16.msra.mxu0 %v3961
      %3994 = vmatpush.bf16.msra.mxu0 %v3960
      %3995 = vmatpush.bf16.msra.mxu0 %v3959
      %3996 = vmatpush.bf16.msra.mxu0 %v3958
      %3997 = vmatpush.bf16.msra.mxu0 %v3957
      %3998 = vmatpush.bf16.msra.mxu0 %v3956
      %3999 = vmatpush.bf16.msra.mxu0 %v3955
      %4000 = vmatmul.bf16.gmra.mxu0 %v3846
      %v4001 = vpop.f32.mrf.mxu0
      %v4002 = vadd.f32 %v3989, %v4001
      %v4003 = vpop.f32.mrf.mxu0
      %4004 = vdwg.mxu0
      %4005 = vst [vmem:[%s335] sm:$0xff] %v4002
      %p4006 = scmp.lt.s32.totalorder %s20, 1
      %s4007 = scalar_select %p4006, %s20, 1
      %s4008 = smul.addr %s4007, 8
      %s4009 = scalar_lea.vmem %s9, %s4008
      // Predicated region
      $region57: #{dann_forward.3} parent=55 // pred_check
        %p4010 = pneg %p232
      $region58: #{dann_forward.3} parent=55 // pred_check_branch
        %4012 = sbr.rel (%p4010) target = $region60
      $region59: #{dann_forward.3} parent=55 // pred_region
        _
      $region60: #{dann_forward.3} parent=55 // pred_fallthru
        _
    $region56: #{dann_forward.3} parent=5 // pred_fallthru
      _
    %p4013 = scmp.le.s32.totalorder 2, %s15
    // Predicated region
    $region61: #{dann_forward.3} parent=5 // pred_check
      %p4014 = pneg %p4013
    $region62: #{dann_forward.3} parent=5 // pred_check_branch
      %4016 = sbr.rel (%p4014) target = $region64
    $region63: #{dann_forward.3} parent=5 // pred_region
      %s4017 = ssub.s32 %s15, 2
      // Predicated region
      $region65: #{dann_forward.3} parent=63 // pred_check
        %p4018 = pneg %p238
      $region66: #{dann_forward.3} parent=63 // pred_check_branch
        %4020 = sbr.rel (%p4018) target = $region68
      $region67: #{dann_forward.3} parent=63 // pred_region
        %p4021 = scmp.lt.s32.totalorder %s21, 1
        %s4022 = scalar_select %p4021, %s21, 1
        %s4023 = smul.addr %s4022, 8
        %s4024 = scalar_lea.vmem %s9, %s4023
      $region68: #{dann_forward.3} parent=63 // pred_fallthru
        _
    $region64: #{dann_forward.3} parent=5 // pred_fallthru
      _
  $region6: #{dann_forward.3} parent=0 // loop_footer
    %s19 = sadd.s32 1, %s15
  $region7: #{dann_forward.3} parent=0 // loop_footer_branch
    %14 = sbr.rel target = $region3
  $region8: #{dann_forward.3} parent=0 // loop_exit
    _

</llo_original>
